<compile_context>
chip_gen: v7x
topology: tpu7x:2x2x1
jax: 0.10.0
libtpu: 0.0.40
codegen_flags: <defaults>
</compile_context>

<pallas_src>
import jax
import jax.numpy as jnp
from jax import lax
from jax.experimental import pallas as pl
from jax.experimental.pallas import tpu as pltpu

EPS = 1e-6
IN_FEATURES = 512
OUT_FEATURES = 2048


def _ln_linear_kernel(x_ref, w_ref, b_ref, o_ref):
    """LayerNorm(512) (affine pre-folded into w/b) + matmul for one column tile.

    x_ref: (M, 512)  full activation slab (resident across grid steps)
    w_ref: (512, tn) folded weight column tile (bf16 by default)
    b_ref: (1, tn)   folded bias column tile (f32)
    o_ref: (M, tn)   output column tile
    """
    x = x_ref[...].astype(jnp.float32)

    # Single-pass statistics: mean and mean-of-squares are independent
    # cross-lane reductions (shorter critical path than mean -> centered -> var).
    mean = jnp.mean(x, axis=-1, keepdims=True)
    mean_sq = jnp.mean(x * x, axis=-1, keepdims=True)
    var = mean_sq - mean * mean
    xn = (x - mean) * lax.rsqrt(var + EPS)

    acc = jnp.dot(
        xn.astype(w_ref.dtype),          # bf16 operands, f32 accumulate on MXU
        w_ref[...],
        preferred_element_type=jnp.float32,
    )
    o_ref[...] = (acc + b_ref[...]).astype(o_ref.dtype)


def prepare_params(gamma, beta, weight, bias, *, weight_dtype=jnp.bfloat16):
    """Fold the LayerNorm affine into the Linear params. Call ONCE and cache.

    y = ((x - mu) * rsqrt(var + eps) * gamma + beta) @ W^T + b
      = ((x - mu) * rsqrt(var + eps)) @ (gamma[:, None] * W^T) + (beta @ W^T + b)
    """
    w_t = weight.T.astype(jnp.float32)                                  # (512, 2048)
    w_folded = (gamma.astype(jnp.float32)[:, None] * w_t).astype(weight_dtype)
    b_folded = beta.astype(jnp.float32) @ w_t + bias.astype(jnp.float32)
    return w_folded, b_folded.reshape(1, OUT_FEATURES)


def _num_col_tiles():
    """2 column tiles (one per TensorCore) on multi-TC chips, else 1."""
    try:
        kind = jax.devices()[0].device_kind.lower()
    except Exception:
        return 1
    if any(tag in kind for tag in ("7", "v4", "v5p")):
        return 2
    return 1


def layernorm_linear(x_nhwc, w_folded, b_folded, *, num_col_tiles=None):
    """x_nhwc: (N, H, W, 512). w_folded: (512, 2048). b_folded: (1, 2048)."""
    n, h, w, c = x_nhwc.shape
    assert c == IN_FEATURES
    m = n * h * w
    x2d = x_nhwc.reshape(m, c)

    if num_col_tiles is None:
        num_col_tiles = _num_col_tiles()
    tn = OUT_FEATURES // num_col_tiles

    # NOTE: at this problem size (m = 196) the whole x slab + one W column tile
    # + the output tile fit VMEM with large headroom on all of v5e/v6e/v7x.
    # For much larger batches, add an M grid axis (tile M at 512-1024 rows).
    out2d = pl.pallas_call(
        _ln_linear_kernel,
        out_shape=jax.ShapeDtypeStruct((m, OUT_FEATURES), x_nhwc.dtype),
        grid_spec=pltpu.PrefetchScalarGridSpec(
            num_scalar_prefetch=0,
            grid=(num_col_tiles,),
            in_specs=[
                pl.BlockSpec((m, c), lambda j: (0, 0)),    # x slab (full)
                pl.BlockSpec((c, tn), lambda j: (0, j)),   # folded weight col tile
                pl.BlockSpec((1, tn), lambda j: (0, j)),   # folded bias col tile
            ],
            out_specs=pl.BlockSpec((m, tn), lambda j: (0, j)),
        ),
        compiler_params=pltpu.CompilerParams(
            dimension_semantics=("parallel",),
        ),
    )(x2d, w_folded, b_folded)

    return out2d.reshape(n, h, w, OUT_FEATURES)


def _reference(x_nhwc, gamma, beta, weight, bias):
    xf = x_nhwc.astype(jnp.float32)
    mean = jnp.mean(xf, axis=-1, keepdims=True)
    var = jnp.mean((xf - mean) ** 2, axis=-1, keepdims=True)
    xn = (xf - mean) / jnp.sqrt(var + EPS)
    xn = xn * gamma + beta
    return xn @ weight.T.astype(jnp.float32) + bias.astype(jnp.float32)


if __name__ == "__main__":
    key = jax.random.PRNGKey(0)
    kx, kg, kb, kw, kbias = jax.random.split(key, 5)

    # Same shape as the module's example input: (1, 14, 14, 512)
    x = jax.random.normal(kx, (1, 14, 14, IN_FEATURES), dtype=jnp.float32)

    gamma = 1.0 + 0.01 * jax.random.normal(kg, (IN_FEATURES,), dtype=jnp.float32)
    beta = 0.01 * jax.random.normal(kb, (IN_FEATURES,), dtype=jnp.float32)
    weight = 0.02 * jax.random.normal(
        kw, (OUT_FEATURES, IN_FEATURES), dtype=jnp.float32
    )
    bias = 0.01 * jax.random.normal(kbias, (OUT_FEATURES,), dtype=jnp.float32)

    # Fold + transpose + bf16-cast the params ONCE (cached across forward calls).
    w_folded, b_folded = prepare_params(gamma, beta, weight, bias)

    fwd = jax.jit(layernorm_linear)
    out = jax.block_until_ready(fwd(x, w_folded, b_folded))

    ref = _reference(x, gamma, beta, weight, bias)
    assert out.shape == (1, 14, 14, OUT_FEATURES), out.shape
    # Weights are streamed in bf16 (f32 accumulate), so compare against the
    # exact-f32 module reference with a bf16-appropriate tolerance.
    assert jnp.allclose(out, ref, atol=2e-2, rtol=2e-2), "mismatch vs reference"

    print("KERNEL_OK")
</pallas_src>

<mosaic_0001>
module attributes {stable_mosaic.version = 11 : i64} {
  func.func @_ln_linear_kernel(%arg0: i32, %arg1: memref<196x512xf32, #tpu.memory_space<vmem>>, %arg2: memref<512x2048xbf16, #tpu.memory_space<vmem>>, %arg3: memref<1x2048xf32, #tpu.memory_space<vmem>>, %arg4: memref<196x2048xf32, #tpu.memory_space<vmem>>) attributes {dimension_semantics = [#tpu.dimension_semantics<parallel>], iteration_bounds = array<i64: 1>, scalar_prefetch = 0 : i64, scratch_operands = 0 : i64, tpu.core_type = #tpu.core_type<tc>, window_params = [{pipeline_mode = #tpu.pipeline_mode<synchronous>, transform_indices = @transform_0, window_bounds = array<i64: 196, 512>}, {transform_indices = @transform_1, window_bounds = array<i64: 512, 2048>}, {transform_indices = @transform_2, window_bounds = array<i64: 1, 2048>}, {transform_indices = @transform_3, window_bounds = array<i64: 196, 2048>}]} {
    %c0 = arith.constant 0 : index
    %c0_0 = arith.constant 0 : index
    %0 = vector.load %arg1[%c0, %c0_0] : memref<196x512xf32, #tpu.memory_space<vmem>>, vector<196x512xf32>
    %cst = arith.constant dense<0.000000e+00> : vector<196xf32>
    %1 = vector.multi_reduction <add>, %0, %cst [1] : vector<196x512xf32> to vector<196xf32>
    %2 = vector.shape_cast %1 : vector<196xf32> to vector<196x1xf32>
    %cst_1 = arith.constant 5.120000e+02 : f32
    %3 = vector.broadcast %cst_1 : f32 to vector<196x1xf32>
    %4 = arith.divf %2, %3 : vector<196x1xf32>
    %5 = arith.mulf %0, %0 : vector<196x512xf32>
    %cst_2 = arith.constant dense<0.000000e+00> : vector<196xf32>
    %6 = vector.multi_reduction <add>, %5, %cst_2 [1] : vector<196x512xf32> to vector<196xf32>
    %7 = vector.shape_cast %6 : vector<196xf32> to vector<196x1xf32>
    %cst_3 = arith.constant 5.120000e+02 : f32
    %8 = vector.broadcast %cst_3 : f32 to vector<196x1xf32>
    %9 = arith.divf %7, %8 : vector<196x1xf32>
    %10 = arith.mulf %4, %4 : vector<196x1xf32>
    %11 = arith.subf %9, %10 : vector<196x1xf32>
    %12 = vector.broadcast %4 : vector<196x1xf32> to vector<196x512xf32>
    %13 = arith.subf %0, %12 : vector<196x512xf32>
    %cst_4 = arith.constant 9.99999997E-7 : f32
    %14 = vector.broadcast %cst_4 : f32 to vector<196x1xf32>
    %15 = arith.addf %11, %14 : vector<196x1xf32>
    %16 = math.rsqrt %15 : vector<196x1xf32>
    %17 = vector.broadcast %16 : vector<196x1xf32> to vector<196x512xf32>
    %18 = arith.mulf %13, %17 : vector<196x512xf32>
    %19 = arith.truncf %18 : vector<196x512xf32> to vector<196x512xbf16>
    %c0_5 = arith.constant 0 : index
    %c0_6 = arith.constant 0 : index
    %20 = vector.load %arg2[%c0_5, %c0_6] : memref<512x2048xbf16, #tpu.memory_space<vmem>>, vector<512x2048xbf16>
    %cst_7 = arith.constant dense<0.000000e+00> : vector<196x2048xf32>
    %21 = tpu.matmul %19, %20, %cst_7 {dimension_numbers = #tpu.dot_dimension_numbers<[1], [0], [0], [1], [0, 0, 1, 1], [], []>} : vector<196x512xbf16>, vector<512x2048xbf16>, vector<196x2048xf32> -> vector<196x2048xf32>
    %c0_8 = arith.constant 0 : index
    %c0_9 = arith.constant 0 : index
    %22 = vector.load %arg3[%c0_8, %c0_9] : memref<1x2048xf32, #tpu.memory_space<vmem>>, vector<1x2048xf32>
    %23 = vector.broadcast %22 : vector<1x2048xf32> to vector<196x2048xf32>
    %24 = arith.addf %21, %23 : vector<196x2048xf32>
    %c0_10 = arith.constant 0 : index
    %c0_11 = arith.constant 0 : index
    %25 = vector.load %arg4[%c0_10, %c0_11] : memref<196x2048xf32, #tpu.memory_space<vmem>>, vector<196x2048xf32>
    tpu.vector_store %arg4[%c0_10, %c0_11], %24 {strides = array<i32>} : memref<196x2048xf32, #tpu.memory_space<vmem>>, vector<196x2048xf32>,
    return
  }
  func.func @transform_0(%arg0: i32) -> (i32, i32) {
    %c0_i32 = arith.constant 0 : i32
    %c0_i32_0 = arith.constant 0 : i32
    %c0_i32_1 = arith.constant 0 : i32
    return %c0_i32, %c0_i32_0 : i32, i32
  }
  func.func @transform_1(%arg0: i32) -> (i32, i32) {
    %c0_i32 = arith.constant 0 : i32
    %c0_i32_0 = arith.constant 0 : i32
    return %c0_i32, %arg0 : i32, i32
  }
  func.func @transform_2(%arg0: i32) -> (i32, i32) {
    %c0_i32 = arith.constant 0 : i32
    %c0_i32_0 = arith.constant 0 : i32
    return %c0_i32, %arg0 : i32, i32
  }
  func.func @transform_3(%arg0: i32) -> (i32, i32) {
    %c0_i32 = arith.constant 0 : i32
    %c0_i32_0 = arith.constant 0 : i32
    return %c0_i32, %arg0 : i32, i32
  }
}

</mosaic_0001>

<llo_original>
// kernel: layernorm_linear.1
$region0: #{layernorm_linear.1}
  #allocation0 [shape = 'u32[]', space=smem, size = 0x4, offset = 0x4, fixed_abs, tag = 'smem constant byte address 0x4 - core index']
  #allocation1 [shape = 'u32[144,128]{1,0:T(1,128)}', space=vmem, size = 0x12000, scoped, tag = 'internal scratch']
  %s0 = inlined_call_operand.vmem [shape: f32[196,512], index: 0, kind: input, shape index: {}]
  %s1 = inlined_call_operand.hbm [shape: bf16[512,2048], index: 1, kind: input, shape index: {}]
  %s2 = inlined_call_operand.vmem [shape: f32[1,2048], index: 2, kind: input, shape index: {}]
  %s3 = inlined_call_operand.vmem [shape: f32[196,2048], index: 3, kind: output, shape index: {}]
  %s4 = sld [smem:[#allocation0]]
  $region26: #{layernorm_linear.1} parent=0
    _
  %s6 = ssub.s32 1, %s4
  %s7 = scalar_select 0, %s6, %s4
  $region1: #{layernorm_linear.1} parent=0
    #allocation2 [shape = 'u8[2097152]{0}', space=vmem, size = 0x200000, scoped, tag = 'input window, operand 1, single buffered']
    #allocation3 [shape = 's32[1]{0}', space=sflag, size = 0x4, scoped, tag = 'scoped memory for layernorm_linear.1']
    %8 = vsyncpa [#allocation3], 0
    // Predicated region
    $region2: #{layernorm_linear.1} parent=1 // pred_check
      _
    $region3: #{layernorm_linear.1} parent=1 // pred_check_branch
      %10 = sbr.rel (0) target = $region5
    $region4: #{layernorm_linear.1} parent=1 // pred_region
      _
    $region5: #{layernorm_linear.1} parent=1 // pred_fallthru
      _
    // Predicated region
    $region6: #{layernorm_linear.1} parent=1 // pred_check
      _
    $region7: #{layernorm_linear.1} parent=1 // pred_check_branch
      %12 = sbr.rel (0) target = $region9
    $region8: #{layernorm_linear.1} parent=1 // pred_region
      %s14 = ssub.s32 65536, 65536
      %15 = vsyncadd [#allocation3], %s14
      %s16 = sshll.u32 [#allocation2], 4
      %s17 = int_to_ptr.vmem [resolvable:$true] %s16
      %22 = dma.hbm_to_vmem [thread:$0]  %s1, 65536, %s17, [#allocation3], 1024, 1024, 64
    $region9: #{layernorm_linear.1} parent=1 // pred_fallthru
      _
    // Predicated region
    $region10: #{layernorm_linear.1} parent=1 // pred_check
      _
    $region11: #{layernorm_linear.1} parent=1 // pred_check_branch
      %24 = sbr.rel (0) target = $region13
    $region12: #{layernorm_linear.1} parent=1 // pred_region
      _
    $region13: #{layernorm_linear.1} parent=1 // pred_fallthru
      _
    // Predicated region
    $region14: #{layernorm_linear.1} parent=1 // pred_check
      _
    $region15: #{layernorm_linear.1} parent=1 // pred_check_branch
      %26 = sbr.rel (0) target = $region17
    $region16: #{layernorm_linear.1} parent=1 // pred_region
      %27 = dma.done [#allocation3], 65536
    $region17: #{layernorm_linear.1} parent=1 // pred_fallthru
      _
    %v28 = vld [vmem:[%s0] sm:$0xff]
    %v29 = vld [vmem:[%s0 + $0x8] sm:$0xff]
    %v30 = vld [vmem:[%s0 + $0x10] sm:$0xff]
    %v31 = vld [vmem:[%s0 + $0x18] sm:$0xff]
    %v32 = vld [vmem:[%s0 + $0x20] sm:$0xff]
    %v33 = vld [vmem:[%s0 + $0x28] sm:$0xff]
    %v34 = vld [vmem:[%s0 + $0x30] sm:$0xff]
    %v35 = vld [vmem:[%s0 + $0x38] sm:$0xff]
    %v36 = vld [vmem:[%s0 + $0x40] sm:$0xff]
    %v37 = vld [vmem:[%s0 + $0x48] sm:$0xff]
    %v38 = vld [vmem:[%s0 + $0x50] sm:$0xff]
    %v39 = vld [vmem:[%s0 + $0x58] sm:$0xff]
    %v40 = vld [vmem:[%s0 + $0x60] sm:$0xff]
    %v41 = vld [vmem:[%s0 + $0x68] sm:$0xff]
    %v42 = vld [vmem:[%s0 + $0x70] sm:$0xff]
    %v43 = vld [vmem:[%s0 + $0x78] sm:$0xff]
    %v44 = vld [vmem:[%s0 + $0x80] sm:$0xff]
    %v45 = vld [vmem:[%s0 + $0x88] sm:$0xff]
    %v46 = vld [vmem:[%s0 + $0x90] sm:$0xff]
    %v47 = vld [vmem:[%s0 + $0x98] sm:$0xff]
    %v48 = vld [vmem:[%s0 + $0xa0] sm:$0xff]
    %v49 = vld [vmem:[%s0 + $0xa8] sm:$0xff]
    %v50 = vld [vmem:[%s0 + $0xb0] sm:$0xff]
    %v51 = vld [vmem:[%s0 + $0xb8] sm:$0xff]
    %v52 = vld [vmem:[%s0 + $0xc0] sm:$0xff]
    %v53 = vld [vmem:[%s0 + $0xc8] sm:$0xff]
    %v54 = vld [vmem:[%s0 + $0xd0] sm:$0xff]
    %v55 = vld [vmem:[%s0 + $0xd8] sm:$0xff]
    %v56 = vld [vmem:[%s0 + $0xe0] sm:$0xff]
    %v57 = vld [vmem:[%s0 + $0xe8] sm:$0xff]
    %v58 = vld [vmem:[%s0 + $0xf0] sm:$0xff]
    %v59 = vld [vmem:[%s0 + $0xf8] sm:$0xff]
    %v60 = vld [vmem:[%s0 + $0x100] sm:$0xff]
    %v61 = vld [vmem:[%s0 + $0x108] sm:$0xff]
    %v62 = vld [vmem:[%s0 + $0x110] sm:$0xff]
    %v63 = vld [vmem:[%s0 + $0x118] sm:$0xff]
    %v64 = vld [vmem:[%s0 + $0x120] sm:$0xff]
    %v65 = vld [vmem:[%s0 + $0x128] sm:$0xff]
    %v66 = vld [vmem:[%s0 + $0x130] sm:$0xff]
    %v67 = vld [vmem:[%s0 + $0x138] sm:$0xff]
    %v68 = vld [vmem:[%s0 + $0x140] sm:$0xff]
    %v69 = vld [vmem:[%s0 + $0x148] sm:$0xff]
    %v70 = vld [vmem:[%s0 + $0x150] sm:$0xff]
    %v71 = vld [vmem:[%s0 + $0x158] sm:$0xff]
    %v72 = vld [vmem:[%s0 + $0x160] sm:$0xff]
    %v73 = vld [vmem:[%s0 + $0x168] sm:$0xff]
    %v74 = vld [vmem:[%s0 + $0x170] sm:$0xff]
    %v75 = vld [vmem:[%s0 + $0x178] sm:$0xff]
    %v76 = vld [vmem:[%s0 + $0x180] sm:$0xff]
    %v77 = vld [vmem:[%s0 + $0x188] sm:$0xff]
    %v78 = vld [vmem:[%s0 + $0x190] sm:$0xff]
    %v79 = vld [vmem:[%s0 + $0x198] sm:$0xff]
    %v80 = vld [vmem:[%s0 + $0x1a0] sm:$0xff]
    %v81 = vld [vmem:[%s0 + $0x1a8] sm:$0xff]
    %v82 = vld [vmem:[%s0 + $0x1b0] sm:$0xff]
    %v83 = vld [vmem:[%s0 + $0x1b8] sm:$0xff]
    %v84 = vld [vmem:[%s0 + $0x1c0] sm:$0xff]
    %v85 = vld [vmem:[%s0 + $0x1c8] sm:$0xff]
    %v86 = vld [vmem:[%s0 + $0x1d0] sm:$0xff]
    %v87 = vld [vmem:[%s0 + $0x1d8] sm:$0xff]
    %v88 = vld [vmem:[%s0 + $0x1e0] sm:$0xff]
    %v89 = vld [vmem:[%s0 + $0x1e8] sm:$0xff]
    %v90 = vld [vmem:[%s0 + $0x1f0] sm:$0xff]
    %v91 = vld [vmem:[%s0 + $0x1f8] sm:$0xff]
    %v92 = vld [vmem:[%s0 + $0x200] sm:$0xff]
    %v93 = vld [vmem:[%s0 + $0x208] sm:$0xff]
    %v94 = vld [vmem:[%s0 + $0x210] sm:$0xff]
    %v95 = vld [vmem:[%s0 + $0x218] sm:$0xff]
    %v96 = vld [vmem:[%s0 + $0x220] sm:$0xff]
    %v97 = vld [vmem:[%s0 + $0x228] sm:$0xff]
    %v98 = vld [vmem:[%s0 + $0x230] sm:$0xff]
    %v99 = vld [vmem:[%s0 + $0x238] sm:$0xff]
    %v100 = vld [vmem:[%s0 + $0x240] sm:$0xff]
    %v101 = vld [vmem:[%s0 + $0x248] sm:$0xff]
    %v102 = vld [vmem:[%s0 + $0x250] sm:$0xff]
    %v103 = vld [vmem:[%s0 + $0x258] sm:$0xff]
    %v104 = vld [vmem:[%s0 + $0x260] sm:$0xff]
    %v105 = vld [vmem:[%s0 + $0x268] sm:$0xff]
    %v106 = vld [vmem:[%s0 + $0x270] sm:$0xff]
    %v107 = vld [vmem:[%s0 + $0x278] sm:$0xff]
    %v108 = vld [vmem:[%s0 + $0x280] sm:$0xff]
    %v109 = vld [vmem:[%s0 + $0x288] sm:$0xff]
    %v110 = vld [vmem:[%s0 + $0x290] sm:$0xff]
    %v111 = vld [vmem:[%s0 + $0x298] sm:$0xff]
    %v112 = vld [vmem:[%s0 + $0x2a0] sm:$0xff]
    %v113 = vld [vmem:[%s0 + $0x2a8] sm:$0xff]
    %v114 = vld [vmem:[%s0 + $0x2b0] sm:$0xff]
    %v115 = vld [vmem:[%s0 + $0x2b8] sm:$0xff]
    %v116 = vld [vmem:[%s0 + $0x2c0] sm:$0xff]
    %v117 = vld [vmem:[%s0 + $0x2c8] sm:$0xff]
    %v118 = vld [vmem:[%s0 + $0x2d0] sm:$0xff]
    %v119 = vld [vmem:[%s0 + $0x2d8] sm:$0xff]
    %v120 = vld [vmem:[%s0 + $0x2e0] sm:$0xff]
    %v121 = vld [vmem:[%s0 + $0x2e8] sm:$0xff]
    %v122 = vld [vmem:[%s0 + $0x2f0] sm:$0xff]
    %v123 = vld [vmem:[%s0 + $0x2f8] sm:$0xff]
    %v124 = vld [vmem:[%s0 + $0x300] sm:$0xf]
    %v125 = vld [vmem:[%s0 + $0x308] sm:$0xf]
    %v126 = vld [vmem:[%s0 + $0x310] sm:$0xf]
    %v127 = vld [vmem:[%s0 + $0x318] sm:$0xf]
    %v128 = vadd.f32 %v28, %v29
    %v129 = vadd.f32 %v128, %v30
    %v130 = vadd.f32 %v129, %v31
    %131 = vadd.xlane.f32.xlu0 %v130
    %v132 = vpop.xlane.xlu0 %131
    %v133 = vadd.f32 %v32, %v33
    %v134 = vadd.f32 %v133, %v34
    %v135 = vadd.f32 %v134, %v35
    %136 = vadd.xlane.f32.xlu0 %v135
    %v137 = vpop.xlane.xlu0 %136
    %v138 = vadd.f32 %v36, %v37
    %v139 = vadd.f32 %v138, %v38
    %v140 = vadd.f32 %v139, %v39
    %141 = vadd.xlane.f32.xlu0 %v140
    %v142 = vpop.xlane.xlu0 %141
    %v143 = vadd.f32 %v40, %v41
    %v144 = vadd.f32 %v143, %v42
    %v145 = vadd.f32 %v144, %v43
    %146 = vadd.xlane.f32.xlu0 %v145
    %v147 = vpop.xlane.xlu0 %146
    %v148 = vadd.f32 %v44, %v45
    %v149 = vadd.f32 %v148, %v46
    %v150 = vadd.f32 %v149, %v47
    %151 = vadd.xlane.f32.xlu0 %v150
    %v152 = vpop.xlane.xlu0 %151
    %v153 = vadd.f32 %v48, %v49
    %v154 = vadd.f32 %v153, %v50
    %v155 = vadd.f32 %v154, %v51
    %156 = vadd.xlane.f32.xlu0 %v155
    %v157 = vpop.xlane.xlu0 %156
    %v158 = vadd.f32 %v52, %v53
    %v159 = vadd.f32 %v158, %v54
    %v160 = vadd.f32 %v159, %v55
    %161 = vadd.xlane.f32.xlu0 %v160
    %v162 = vpop.xlane.xlu0 %161
    %v163 = vadd.f32 %v56, %v57
    %v164 = vadd.f32 %v163, %v58
    %v165 = vadd.f32 %v164, %v59
    %166 = vadd.xlane.f32.xlu0 %v165
    %v167 = vpop.xlane.xlu0 %166
    %v168 = vadd.f32 %v60, %v61
    %v169 = vadd.f32 %v168, %v62
    %v170 = vadd.f32 %v169, %v63
    %171 = vadd.xlane.f32.xlu0 %v170
    %v172 = vpop.xlane.xlu0 %171
    %v173 = vadd.f32 %v64, %v65
    %v174 = vadd.f32 %v173, %v66
    %v175 = vadd.f32 %v174, %v67
    %176 = vadd.xlane.f32.xlu0 %v175
    %v177 = vpop.xlane.xlu0 %176
    %v178 = vadd.f32 %v68, %v69
    %v179 = vadd.f32 %v178, %v70
    %v180 = vadd.f32 %v179, %v71
    %181 = vadd.xlane.f32.xlu0 %v180
    %v182 = vpop.xlane.xlu0 %181
    %v183 = vadd.f32 %v72, %v73
    %v184 = vadd.f32 %v183, %v74
    %v185 = vadd.f32 %v184, %v75
    %186 = vadd.xlane.f32.xlu0 %v185
    %v187 = vpop.xlane.xlu0 %186
    %v188 = vadd.f32 %v76, %v77
    %v189 = vadd.f32 %v188, %v78
    %v190 = vadd.f32 %v189, %v79
    %191 = vadd.xlane.f32.xlu0 %v190
    %v192 = vpop.xlane.xlu0 %191
    %v193 = vadd.f32 %v80, %v81
    %v194 = vadd.f32 %v193, %v82
    %v195 = vadd.f32 %v194, %v83
    %196 = vadd.xlane.f32.xlu0 %v195
    %v197 = vpop.xlane.xlu0 %196
    %v198 = vadd.f32 %v84, %v85
    %v199 = vadd.f32 %v198, %v86
    %v200 = vadd.f32 %v199, %v87
    %201 = vadd.xlane.f32.xlu0 %v200
    %v202 = vpop.xlane.xlu0 %201
    %v203 = vadd.f32 %v88, %v89
    %v204 = vadd.f32 %v203, %v90
    %v205 = vadd.f32 %v204, %v91
    %206 = vadd.xlane.f32.xlu0 %v205
    %v207 = vpop.xlane.xlu0 %206
    %v208 = vadd.f32 %v92, %v93
    %v209 = vadd.f32 %v208, %v94
    %v210 = vadd.f32 %v209, %v95
    %211 = vadd.xlane.f32.xlu0 %v210
    %v212 = vpop.xlane.xlu0 %211
    %v213 = vadd.f32 %v96, %v97
    %v214 = vadd.f32 %v213, %v98
    %v215 = vadd.f32 %v214, %v99
    %216 = vadd.xlane.f32.xlu0 %v215
    %v217 = vpop.xlane.xlu0 %216
    %v218 = vadd.f32 %v100, %v101
    %v219 = vadd.f32 %v218, %v102
    %v220 = vadd.f32 %v219, %v103
    %221 = vadd.xlane.f32.xlu0 %v220
    %v222 = vpop.xlane.xlu0 %221
    %v223 = vadd.f32 %v104, %v105
    %v224 = vadd.f32 %v223, %v106
    %v225 = vadd.f32 %v224, %v107
    %226 = vadd.xlane.f32.xlu0 %v225
    %v227 = vpop.xlane.xlu0 %226
    %v228 = vadd.f32 %v108, %v109
    %v229 = vadd.f32 %v228, %v110
    %v230 = vadd.f32 %v229, %v111
    %231 = vadd.xlane.f32.xlu0 %v230
    %v232 = vpop.xlane.xlu0 %231
    %v233 = vadd.f32 %v112, %v113
    %v234 = vadd.f32 %v233, %v114
    %v235 = vadd.f32 %v234, %v115
    %236 = vadd.xlane.f32.xlu0 %v235
    %v237 = vpop.xlane.xlu0 %236
    %v238 = vadd.f32 %v116, %v117
    %v239 = vadd.f32 %v238, %v118
    %v240 = vadd.f32 %v239, %v119
    %241 = vadd.xlane.f32.xlu0 %v240
    %v242 = vpop.xlane.xlu0 %241
    %v243 = vadd.f32 %v120, %v121
    %v244 = vadd.f32 %v243, %v122
    %v245 = vadd.f32 %v244, %v123
    %246 = vadd.xlane.f32.xlu0 %v245
    %v247 = vpop.xlane.xlu0 %246
    %vm248 = vcmask 1043456
    %v249 = vsel %vm248, %v124, 0.0
    %v250 = vsel %vm248, %v125, 0.0
    %v251 = vadd.f32 %v249, %v250
    %v252 = vsel %vm248, %v126, 0.0
    %v253 = vadd.f32 %v251, %v252
    %v254 = vsel %vm248, %v127, 0.0
    %v255 = vadd.f32 %v253, %v254
    %256 = vadd.xlane.f32.xlu0 %v255
    %v257 = vpop.xlane.xlu0 %256
    %v258 = vrcp.pop 512.0
    %v259 = vmul.f32 %v132, %v258
    %v260 = vmul.f32 %v137, %v258
    %v261 = vmul.f32 %v142, %v258
    %v262 = vmul.f32 %v147, %v258
    %v263 = vmul.f32 %v152, %v258
    %v264 = vmul.f32 %v157, %v258
    %v265 = vmul.f32 %v162, %v258
    %v266 = vmul.f32 %v167, %v258
    %v267 = vmul.f32 %v172, %v258
    %v268 = vmul.f32 %v177, %v258
    %v269 = vmul.f32 %v182, %v258
    %v270 = vmul.f32 %v187, %v258
    %v271 = vmul.f32 %v192, %v258
    %v272 = vmul.f32 %v197, %v258
    %v273 = vmul.f32 %v202, %v258
    %v274 = vmul.f32 %v207, %v258
    %v275 = vmul.f32 %v212, %v258
    %v276 = vmul.f32 %v217, %v258
    %v277 = vmul.f32 %v222, %v258
    %v278 = vmul.f32 %v227, %v258
    %v279 = vmul.f32 %v232, %v258
    %v280 = vmul.f32 %v237, %v258
    %v281 = vmul.f32 %v242, %v258
    %v282 = vmul.f32 %v247, %v258
    %v283 = vmul.f32 %v257, %v258
    %v284 = vmul.f32 %v28, %v28
    %v285 = vmul.f32 %v29, %v29
    %v286 = vmul.f32 %v30, %v30
    %v287 = vmul.f32 %v31, %v31
    %v288 = vmul.f32 %v32, %v32
    %v289 = vmul.f32 %v33, %v33
    %v290 = vmul.f32 %v34, %v34
    %v291 = vmul.f32 %v35, %v35
    %v292 = vmul.f32 %v36, %v36
    %v293 = vmul.f32 %v37, %v37
    %v294 = vmul.f32 %v38, %v38
    %v295 = vmul.f32 %v39, %v39
    %v296 = vmul.f32 %v40, %v40
    %v297 = vmul.f32 %v41, %v41
    %v298 = vmul.f32 %v42, %v42
    %v299 = vmul.f32 %v43, %v43
    %v300 = vmul.f32 %v44, %v44
    %v301 = vmul.f32 %v45, %v45
    %v302 = vmul.f32 %v46, %v46
    %v303 = vmul.f32 %v47, %v47
    %v304 = vmul.f32 %v48, %v48
    %v305 = vmul.f32 %v49, %v49
    %v306 = vmul.f32 %v50, %v50
    %v307 = vmul.f32 %v51, %v51
    %v308 = vmul.f32 %v52, %v52
    %v309 = vmul.f32 %v53, %v53
    %v310 = vmul.f32 %v54, %v54
    %v311 = vmul.f32 %v55, %v55
    %v312 = vmul.f32 %v56, %v56
    %v313 = vmul.f32 %v57, %v57
    %v314 = vmul.f32 %v58, %v58
    %v315 = vmul.f32 %v59, %v59
    %v316 = vmul.f32 %v60, %v60
    %v317 = vmul.f32 %v61, %v61
    %v318 = vmul.f32 %v62, %v62
    %v319 = vmul.f32 %v63, %v63
    %v320 = vmul.f32 %v64, %v64
    %v321 = vmul.f32 %v65, %v65
    %v322 = vmul.f32 %v66, %v66
    %v323 = vmul.f32 %v67, %v67
    %v324 = vmul.f32 %v68, %v68
    %v325 = vmul.f32 %v69, %v69
    %v326 = vmul.f32 %v70, %v70
    %v327 = vmul.f32 %v71, %v71
    %v328 = vmul.f32 %v72, %v72
    %v329 = vmul.f32 %v73, %v73
    %v330 = vmul.f32 %v74, %v74
    %v331 = vmul.f32 %v75, %v75
    %v332 = vmul.f32 %v76, %v76
    %v333 = vmul.f32 %v77, %v77
    %v334 = vmul.f32 %v78, %v78
    %v335 = vmul.f32 %v79, %v79
    %v336 = vmul.f32 %v80, %v80
    %v337 = vmul.f32 %v81, %v81
    %v338 = vmul.f32 %v82, %v82
    %v339 = vmul.f32 %v83, %v83
    %v340 = vmul.f32 %v84, %v84
    %v341 = vmul.f32 %v85, %v85
    %v342 = vmul.f32 %v86, %v86
    %v343 = vmul.f32 %v87, %v87
    %v344 = vmul.f32 %v88, %v88
    %v345 = vmul.f32 %v89, %v89
    %v346 = vmul.f32 %v90, %v90
    %v347 = vmul.f32 %v91, %v91
    %v348 = vmul.f32 %v92, %v92
    %v349 = vmul.f32 %v93, %v93
    %v350 = vmul.f32 %v94, %v94
    %v351 = vmul.f32 %v95, %v95
    %v352 = vmul.f32 %v96, %v96
    %v353 = vmul.f32 %v97, %v97
    %v354 = vmul.f32 %v98, %v98
    %v355 = vmul.f32 %v99, %v99
    %v356 = vmul.f32 %v100, %v100
    %v357 = vmul.f32 %v101, %v101
    %v358 = vmul.f32 %v102, %v102
    %v359 = vmul.f32 %v103, %v103
    %v360 = vmul.f32 %v104, %v104
    %v361 = vmul.f32 %v105, %v105
    %v362 = vmul.f32 %v106, %v106
    %v363 = vmul.f32 %v107, %v107
    %v364 = vmul.f32 %v108, %v108
    %v365 = vmul.f32 %v109, %v109
    %v366 = vmul.f32 %v110, %v110
    %v367 = vmul.f32 %v111, %v111
    %v368 = vmul.f32 %v112, %v112
    %v369 = vmul.f32 %v113, %v113
    %v370 = vmul.f32 %v114, %v114
    %v371 = vmul.f32 %v115, %v115
    %v372 = vmul.f32 %v116, %v116
    %v373 = vmul.f32 %v117, %v117
    %v374 = vmul.f32 %v118, %v118
    %v375 = vmul.f32 %v119, %v119
    %v376 = vmul.f32 %v120, %v120
    %v377 = vmul.f32 %v121, %v121
    %v378 = vmul.f32 %v122, %v122
    %v379 = vmul.f32 %v123, %v123
    %v380 = vmul.f32 %v124, %v124
    %v381 = vmul.f32 %v125, %v125
    %v382 = vmul.f32 %v126, %v126
    %v383 = vmul.f32 %v127, %v127
    %v384 = vadd.f32 %v284, %v285
    %v385 = vadd.f32 %v384, %v286
    %v386 = vadd.f32 %v385, %v287
    %387 = vadd.xlane.f32.xlu0 %v386
    %v388 = vpop.xlane.xlu0 %387
    %v389 = vadd.f32 %v288, %v289
    %v390 = vadd.f32 %v389, %v290
    %v391 = vadd.f32 %v390, %v291
    %392 = vadd.xlane.f32.xlu0 %v391
    %v393 = vpop.xlane.xlu0 %392
    %v394 = vadd.f32 %v292, %v293
    %v395 = vadd.f32 %v394, %v294
    %v396 = vadd.f32 %v395, %v295
    %397 = vadd.xlane.f32.xlu0 %v396
    %v398 = vpop.xlane.xlu0 %397
    %v399 = vadd.f32 %v296, %v297
    %v400 = vadd.f32 %v399, %v298
    %v401 = vadd.f32 %v400, %v299
    %402 = vadd.xlane.f32.xlu0 %v401
    %v403 = vpop.xlane.xlu0 %402
    %v404 = vadd.f32 %v300, %v301
    %v405 = vadd.f32 %v404, %v302
    %v406 = vadd.f32 %v405, %v303
    %407 = vadd.xlane.f32.xlu0 %v406
    %v408 = vpop.xlane.xlu0 %407
    %v409 = vadd.f32 %v304, %v305
    %v410 = vadd.f32 %v409, %v306
    %v411 = vadd.f32 %v410, %v307
    %412 = vadd.xlane.f32.xlu0 %v411
    %v413 = vpop.xlane.xlu0 %412
    %v414 = vadd.f32 %v308, %v309
    %v415 = vadd.f32 %v414, %v310
    %v416 = vadd.f32 %v415, %v311
    %417 = vadd.xlane.f32.xlu0 %v416
    %v418 = vpop.xlane.xlu0 %417
    %v419 = vadd.f32 %v312, %v313
    %v420 = vadd.f32 %v419, %v314
    %v421 = vadd.f32 %v420, %v315
    %422 = vadd.xlane.f32.xlu0 %v421
    %v423 = vpop.xlane.xlu0 %422
    %v424 = vadd.f32 %v316, %v317
    %v425 = vadd.f32 %v424, %v318
    %v426 = vadd.f32 %v425, %v319
    %427 = vadd.xlane.f32.xlu0 %v426
    %v428 = vpop.xlane.xlu0 %427
    %v429 = vadd.f32 %v320, %v321
    %v430 = vadd.f32 %v429, %v322
    %v431 = vadd.f32 %v430, %v323
    %432 = vadd.xlane.f32.xlu0 %v431
    %v433 = vpop.xlane.xlu0 %432
    %v434 = vadd.f32 %v324, %v325
    %v435 = vadd.f32 %v434, %v326
    %v436 = vadd.f32 %v435, %v327
    %437 = vadd.xlane.f32.xlu0 %v436
    %v438 = vpop.xlane.xlu0 %437
    %v439 = vadd.f32 %v328, %v329
    %v440 = vadd.f32 %v439, %v330
    %v441 = vadd.f32 %v440, %v331
    %442 = vadd.xlane.f32.xlu0 %v441
    %v443 = vpop.xlane.xlu0 %442
    %v444 = vadd.f32 %v332, %v333
    %v445 = vadd.f32 %v444, %v334
    %v446 = vadd.f32 %v445, %v335
    %447 = vadd.xlane.f32.xlu0 %v446
    %v448 = vpop.xlane.xlu0 %447
    %v449 = vadd.f32 %v336, %v337
    %v450 = vadd.f32 %v449, %v338
    %v451 = vadd.f32 %v450, %v339
    %452 = vadd.xlane.f32.xlu0 %v451
    %v453 = vpop.xlane.xlu0 %452
    %v454 = vadd.f32 %v340, %v341
    %v455 = vadd.f32 %v454, %v342
    %v456 = vadd.f32 %v455, %v343
    %457 = vadd.xlane.f32.xlu0 %v456
    %v458 = vpop.xlane.xlu0 %457
    %v459 = vadd.f32 %v344, %v345
    %v460 = vadd.f32 %v459, %v346
    %v461 = vadd.f32 %v460, %v347
    %462 = vadd.xlane.f32.xlu0 %v461
    %v463 = vpop.xlane.xlu0 %462
    %v464 = vadd.f32 %v348, %v349
    %v465 = vadd.f32 %v464, %v350
    %v466 = vadd.f32 %v465, %v351
    %467 = vadd.xlane.f32.xlu0 %v466
    %v468 = vpop.xlane.xlu0 %467
    %v469 = vadd.f32 %v352, %v353
    %v470 = vadd.f32 %v469, %v354
    %v471 = vadd.f32 %v470, %v355
    %472 = vadd.xlane.f32.xlu0 %v471
    %v473 = vpop.xlane.xlu0 %472
    %v474 = vadd.f32 %v356, %v357
    %v475 = vadd.f32 %v474, %v358
    %v476 = vadd.f32 %v475, %v359
    %477 = vadd.xlane.f32.xlu0 %v476
    %v478 = vpop.xlane.xlu0 %477
    %v479 = vadd.f32 %v360, %v361
    %v480 = vadd.f32 %v479, %v362
    %v481 = vadd.f32 %v480, %v363
    %482 = vadd.xlane.f32.xlu0 %v481
    %v483 = vpop.xlane.xlu0 %482
    %v484 = vadd.f32 %v364, %v365
    %v485 = vadd.f32 %v484, %v366
    %v486 = vadd.f32 %v485, %v367
    %487 = vadd.xlane.f32.xlu0 %v486
    %v488 = vpop.xlane.xlu0 %487
    %v489 = vadd.f32 %v368, %v369
    %v490 = vadd.f32 %v489, %v370
    %v491 = vadd.f32 %v490, %v371
    %492 = vadd.xlane.f32.xlu0 %v491
    %v493 = vpop.xlane.xlu0 %492
    %v494 = vadd.f32 %v372, %v373
    %v495 = vadd.f32 %v494, %v374
    %v496 = vadd.f32 %v495, %v375
    %497 = vadd.xlane.f32.xlu0 %v496
    %v498 = vpop.xlane.xlu0 %497
    %v499 = vadd.f32 %v376, %v377
    %v500 = vadd.f32 %v499, %v378
    %v501 = vadd.f32 %v500, %v379
    %502 = vadd.xlane.f32.xlu0 %v501
    %v503 = vpop.xlane.xlu0 %502
    %v504 = vsel %vm248, %v380, 0.0
    %v505 = vsel %vm248, %v381, 0.0
    %v506 = vadd.f32 %v504, %v505
    %v507 = vsel %vm248, %v382, 0.0
    %v508 = vadd.f32 %v506, %v507
    %v509 = vsel %vm248, %v383, 0.0
    %v510 = vadd.f32 %v508, %v509
    %511 = vadd.xlane.f32.xlu0 %v510
    %v512 = vpop.xlane.xlu0 %511
    %v513 = vmul.f32 %v388, %v258
    %v514 = vmul.f32 %v393, %v258
    %v515 = vmul.f32 %v398, %v258
    %v516 = vmul.f32 %v403, %v258
    %v517 = vmul.f32 %v408, %v258
    %v518 = vmul.f32 %v413, %v258
    %v519 = vmul.f32 %v418, %v258
    %v520 = vmul.f32 %v423, %v258
    %v521 = vmul.f32 %v428, %v258
    %v522 = vmul.f32 %v433, %v258
    %v523 = vmul.f32 %v438, %v258
    %v524 = vmul.f32 %v443, %v258
    %v525 = vmul.f32 %v448, %v258
    %v526 = vmul.f32 %v453, %v258
    %v527 = vmul.f32 %v458, %v258
    %v528 = vmul.f32 %v463, %v258
    %v529 = vmul.f32 %v468, %v258
    %v530 = vmul.f32 %v473, %v258
    %v531 = vmul.f32 %v478, %v258
    %v532 = vmul.f32 %v483, %v258
    %v533 = vmul.f32 %v488, %v258
    %v534 = vmul.f32 %v493, %v258
    %v535 = vmul.f32 %v498, %v258
    %v536 = vmul.f32 %v503, %v258
    %v537 = vmul.f32 %v512, %v258
    %v538 = vmul.f32 %v259, %v259
    %v539 = vmul.f32 %v260, %v260
    %v540 = vmul.f32 %v261, %v261
    %v541 = vmul.f32 %v262, %v262
    %v542 = vmul.f32 %v263, %v263
    %v543 = vmul.f32 %v264, %v264
    %v544 = vmul.f32 %v265, %v265
    %v545 = vmul.f32 %v266, %v266
    %v546 = vmul.f32 %v267, %v267
    %v547 = vmul.f32 %v268, %v268
    %v548 = vmul.f32 %v269, %v269
    %v549 = vmul.f32 %v270, %v270
    %v550 = vmul.f32 %v271, %v271
    %v551 = vmul.f32 %v272, %v272
    %v552 = vmul.f32 %v273, %v273
    %v553 = vmul.f32 %v274, %v274
    %v554 = vmul.f32 %v275, %v275
    %v555 = vmul.f32 %v276, %v276
    %v556 = vmul.f32 %v277, %v277
    %v557 = vmul.f32 %v278, %v278
    %v558 = vmul.f32 %v279, %v279
    %v559 = vmul.f32 %v280, %v280
    %v560 = vmul.f32 %v281, %v281
    %v561 = vmul.f32 %v282, %v282
    %v562 = vmul.f32 %v283, %v283
    %v563 = vsub.f32 %v513, %v538
    %v564 = vsub.f32 %v514, %v539
    %v565 = vsub.f32 %v515, %v540
    %v566 = vsub.f32 %v516, %v541
    %v567 = vsub.f32 %v517, %v542
    %v568 = vsub.f32 %v518, %v543
    %v569 = vsub.f32 %v519, %v544
    %v570 = vsub.f32 %v520, %v545
    %v571 = vsub.f32 %v521, %v546
    %v572 = vsub.f32 %v522, %v547
    %v573 = vsub.f32 %v523, %v548
    %v574 = vsub.f32 %v524, %v549
    %v575 = vsub.f32 %v525, %v550
    %v576 = vsub.f32 %v526, %v551
    %v577 = vsub.f32 %v527, %v552
    %v578 = vsub.f32 %v528, %v553
    %v579 = vsub.f32 %v529, %v554
    %v580 = vsub.f32 %v530, %v555
    %v581 = vsub.f32 %v531, %v556
    %v582 = vsub.f32 %v532, %v557
    %v583 = vsub.f32 %v533, %v558
    %v584 = vsub.f32 %v534, %v559
    %v585 = vsub.f32 %v535, %v560
    %v586 = vsub.f32 %v536, %v561
    %v587 = vsub.f32 %v537, %v562
    %v588 = vsub.f32 %v28, %v259
    %v589 = vsub.f32 %v29, %v259
    %v590 = vsub.f32 %v30, %v259
    %v591 = vsub.f32 %v31, %v259
    %v592 = vsub.f32 %v32, %v260
    %v593 = vsub.f32 %v33, %v260
    %v594 = vsub.f32 %v34, %v260
    %v595 = vsub.f32 %v35, %v260
    %v596 = vsub.f32 %v36, %v261
    %v597 = vsub.f32 %v37, %v261
    %v598 = vsub.f32 %v38, %v261
    %v599 = vsub.f32 %v39, %v261
    %v600 = vsub.f32 %v40, %v262
    %v601 = vsub.f32 %v41, %v262
    %v602 = vsub.f32 %v42, %v262
    %v603 = vsub.f32 %v43, %v262
    %v604 = vsub.f32 %v44, %v263
    %v605 = vsub.f32 %v45, %v263
    %v606 = vsub.f32 %v46, %v263
    %v607 = vsub.f32 %v47, %v263
    %v608 = vsub.f32 %v48, %v264
    %v609 = vsub.f32 %v49, %v264
    %v610 = vsub.f32 %v50, %v264
    %v611 = vsub.f32 %v51, %v264
    %v612 = vsub.f32 %v52, %v265
    %v613 = vsub.f32 %v53, %v265
    %v614 = vsub.f32 %v54, %v265
    %v615 = vsub.f32 %v55, %v265
    %v616 = vsub.f32 %v56, %v266
    %v617 = vsub.f32 %v57, %v266
    %v618 = vsub.f32 %v58, %v266
    %v619 = vsub.f32 %v59, %v266
    %v620 = vsub.f32 %v60, %v267
    %v621 = vsub.f32 %v61, %v267
    %v622 = vsub.f32 %v62, %v267
    %v623 = vsub.f32 %v63, %v267
    %v624 = vsub.f32 %v64, %v268
    %v625 = vsub.f32 %v65, %v268
    %v626 = vsub.f32 %v66, %v268
    %v627 = vsub.f32 %v67, %v268
    %v628 = vsub.f32 %v68, %v269
    %v629 = vsub.f32 %v69, %v269
    %v630 = vsub.f32 %v70, %v269
    %v631 = vsub.f32 %v71, %v269
    %v632 = vsub.f32 %v72, %v270
    %v633 = vsub.f32 %v73, %v270
    %v634 = vsub.f32 %v74, %v270
    %v635 = vsub.f32 %v75, %v270
    %v636 = vsub.f32 %v76, %v271
    %v637 = vsub.f32 %v77, %v271
    %v638 = vsub.f32 %v78, %v271
    %v639 = vsub.f32 %v79, %v271
    %v640 = vsub.f32 %v80, %v272
    %v641 = vsub.f32 %v81, %v272
    %v642 = vsub.f32 %v82, %v272
    %v643 = vsub.f32 %v83, %v272
    %v644 = vsub.f32 %v84, %v273
    %v645 = vsub.f32 %v85, %v273
    %v646 = vsub.f32 %v86, %v273
    %v647 = vsub.f32 %v87, %v273
    %v648 = vsub.f32 %v88, %v274
    %v649 = vsub.f32 %v89, %v274
    %v650 = vsub.f32 %v90, %v274
    %v651 = vsub.f32 %v91, %v274
    %v652 = vsub.f32 %v92, %v275
    %v653 = vsub.f32 %v93, %v275
    %v654 = vsub.f32 %v94, %v275
    %v655 = vsub.f32 %v95, %v275
    %v656 = vsub.f32 %v96, %v276
    %v657 = vsub.f32 %v97, %v276
    %v658 = vsub.f32 %v98, %v276
    %v659 = vsub.f32 %v99, %v276
    %v660 = vsub.f32 %v100, %v277
    %v661 = vsub.f32 %v101, %v277
    %v662 = vsub.f32 %v102, %v277
    %v663 = vsub.f32 %v103, %v277
    %v664 = vsub.f32 %v104, %v278
    %v665 = vsub.f32 %v105, %v278
    %v666 = vsub.f32 %v106, %v278
    %v667 = vsub.f32 %v107, %v278
    %v668 = vsub.f32 %v108, %v279
    %v669 = vsub.f32 %v109, %v279
    %v670 = vsub.f32 %v110, %v279
    %v671 = vsub.f32 %v111, %v279
    %v672 = vsub.f32 %v112, %v280
    %v673 = vsub.f32 %v113, %v280
    %v674 = vsub.f32 %v114, %v280
    %v675 = vsub.f32 %v115, %v280
    %v676 = vsub.f32 %v116, %v281
    %v677 = vsub.f32 %v117, %v281
    %v678 = vsub.f32 %v118, %v281
    %v679 = vsub.f32 %v119, %v281
    %v680 = vsub.f32 %v120, %v282
    %v681 = vsub.f32 %v121, %v282
    %v682 = vsub.f32 %v122, %v282
    %v683 = vsub.f32 %v123, %v282
    %v684 = vsub.f32 %v124, %v283
    %v685 = vsub.f32 %v125, %v283
    %v686 = vsub.f32 %v126, %v283
    %v687 = vsub.f32 %v127, %v283
    %v688 = vadd.f32 %v563, 1e-06
    %v689 = vadd.f32 %v564, 1e-06
    %v690 = vadd.f32 %v565, 1e-06
    %v691 = vadd.f32 %v566, 1e-06
    %v692 = vadd.f32 %v567, 1e-06
    %v693 = vadd.f32 %v568, 1e-06
    %v694 = vadd.f32 %v569, 1e-06
    %v695 = vadd.f32 %v570, 1e-06
    %v696 = vadd.f32 %v571, 1e-06
    %v697 = vadd.f32 %v572, 1e-06
    %v698 = vadd.f32 %v573, 1e-06
    %v699 = vadd.f32 %v574, 1e-06
    %v700 = vadd.f32 %v575, 1e-06
    %v701 = vadd.f32 %v576, 1e-06
    %v702 = vadd.f32 %v577, 1e-06
    %v703 = vadd.f32 %v578, 1e-06
    %v704 = vadd.f32 %v579, 1e-06
    %v705 = vadd.f32 %v580, 1e-06
    %v706 = vadd.f32 %v581, 1e-06
    %v707 = vadd.f32 %v582, 1e-06
    %v708 = vadd.f32 %v583, 1e-06
    %v709 = vadd.f32 %v584, 1e-06
    %v710 = vadd.f32 %v585, 1e-06
    %v711 = vadd.f32 %v586, 1e-06
    %v712 = vadd.f32 %v587, 1e-06
    %v713 = vrsqrt.pop %v688
    %v714 = vrsqrt.pop %v689
    %v715 = vrsqrt.pop %v690
    %v716 = vrsqrt.pop %v691
    %v717 = vrsqrt.pop %v692
    %v718 = vrsqrt.pop %v693
    %v719 = vrsqrt.pop %v694
    %v720 = vrsqrt.pop %v695
    %v721 = vrsqrt.pop %v696
    %v722 = vrsqrt.pop %v697
    %v723 = vrsqrt.pop %v698
    %v724 = vrsqrt.pop %v699
    %v725 = vrsqrt.pop %v700
    %v726 = vrsqrt.pop %v701
    %v727 = vrsqrt.pop %v702
    %v728 = vrsqrt.pop %v703
    %v729 = vrsqrt.pop %v704
    %v730 = vrsqrt.pop %v705
    %v731 = vrsqrt.pop %v706
    %v732 = vrsqrt.pop %v707
    %v733 = vrsqrt.pop %v708
    %v734 = vrsqrt.pop %v709
    %v735 = vrsqrt.pop %v710
    %v736 = vrsqrt.pop %v711
    %v737 = vrsqrt.pop %v712
    %v738 = vmul.f32 %v588, %v713
    %v739 = vmul.f32 %v589, %v713
    %v740 = vmul.f32 %v590, %v713
    %v741 = vmul.f32 %v591, %v713
    %v742 = vmul.f32 %v592, %v714
    %v743 = vmul.f32 %v593, %v714
    %v744 = vmul.f32 %v594, %v714
    %v745 = vmul.f32 %v595, %v714
    %v746 = vmul.f32 %v596, %v715
    %v747 = vmul.f32 %v597, %v715
    %v748 = vmul.f32 %v598, %v715
    %v749 = vmul.f32 %v599, %v715
    %v750 = vmul.f32 %v600, %v716
    %v751 = vmul.f32 %v601, %v716
    %v752 = vmul.f32 %v602, %v716
    %v753 = vmul.f32 %v603, %v716
    %v754 = vmul.f32 %v604, %v717
    %v755 = vmul.f32 %v605, %v717
    %v756 = vmul.f32 %v606, %v717
    %v757 = vmul.f32 %v607, %v717
    %v758 = vmul.f32 %v608, %v718
    %v759 = vmul.f32 %v609, %v718
    %v760 = vmul.f32 %v610, %v718
    %v761 = vmul.f32 %v611, %v718
    %v762 = vmul.f32 %v612, %v719
    %v763 = vmul.f32 %v613, %v719
    %v764 = vmul.f32 %v614, %v719
    %v765 = vmul.f32 %v615, %v719
    %v766 = vmul.f32 %v616, %v720
    %v767 = vmul.f32 %v617, %v720
    %v768 = vmul.f32 %v618, %v720
    %v769 = vmul.f32 %v619, %v720
    %v770 = vmul.f32 %v620, %v721
    %v771 = vmul.f32 %v621, %v721
    %v772 = vmul.f32 %v622, %v721
    %v773 = vmul.f32 %v623, %v721
    %v774 = vmul.f32 %v624, %v722
    %v775 = vmul.f32 %v625, %v722
    %v776 = vmul.f32 %v626, %v722
    %v777 = vmul.f32 %v627, %v722
    %v778 = vmul.f32 %v628, %v723
    %v779 = vmul.f32 %v629, %v723
    %v780 = vmul.f32 %v630, %v723
    %v781 = vmul.f32 %v631, %v723
    %v782 = vmul.f32 %v632, %v724
    %v783 = vmul.f32 %v633, %v724
    %v784 = vmul.f32 %v634, %v724
    %v785 = vmul.f32 %v635, %v724
    %v786 = vmul.f32 %v636, %v725
    %v787 = vmul.f32 %v637, %v725
    %v788 = vmul.f32 %v638, %v725
    %v789 = vmul.f32 %v639, %v725
    %v790 = vmul.f32 %v640, %v726
    %v791 = vmul.f32 %v641, %v726
    %v792 = vmul.f32 %v642, %v726
    %v793 = vmul.f32 %v643, %v726
    %v794 = vmul.f32 %v644, %v727
    %v795 = vmul.f32 %v645, %v727
    %v796 = vmul.f32 %v646, %v727
    %v797 = vmul.f32 %v647, %v727
    %v798 = vmul.f32 %v648, %v728
    %v799 = vmul.f32 %v649, %v728
    %v800 = vmul.f32 %v650, %v728
    %v801 = vmul.f32 %v651, %v728
    %v802 = vmul.f32 %v652, %v729
    %v803 = vmul.f32 %v653, %v729
    %v804 = vmul.f32 %v654, %v729
    %v805 = vmul.f32 %v655, %v729
    %v806 = vmul.f32 %v656, %v730
    %v807 = vmul.f32 %v657, %v730
    %v808 = vmul.f32 %v658, %v730
    %v809 = vmul.f32 %v659, %v730
    %v810 = vmul.f32 %v660, %v731
    %v811 = vmul.f32 %v661, %v731
    %v812 = vmul.f32 %v662, %v731
    %v813 = vmul.f32 %v663, %v731
    %v814 = vmul.f32 %v664, %v732
    %v815 = vmul.f32 %v665, %v732
    %v816 = vmul.f32 %v666, %v732
    %v817 = vmul.f32 %v667, %v732
    %v818 = vmul.f32 %v668, %v733
    %v819 = vmul.f32 %v669, %v733
    %v820 = vmul.f32 %v670, %v733
    %v821 = vmul.f32 %v671, %v733
    %v822 = vmul.f32 %v672, %v734
    %v823 = vmul.f32 %v673, %v734
    %v824 = vmul.f32 %v674, %v734
    %v825 = vmul.f32 %v675, %v734
    %v826 = vmul.f32 %v676, %v735
    %v827 = vmul.f32 %v677, %v735
    %v828 = vmul.f32 %v678, %v735
    %v829 = vmul.f32 %v679, %v735
    %v830 = vmul.f32 %v680, %v736
    %v831 = vmul.f32 %v681, %v736
    %v832 = vmul.f32 %v682, %v736
    %v833 = vmul.f32 %v683, %v736
    %v834 = vmul.f32 %v684, %v737
    %v835 = vmul.f32 %v685, %v737
    %v836 = vmul.f32 %v686, %v737
    %v837 = vmul.f32 %v687, %v737
    %v838 = vpack.c.bf16 %v742, %v738
    %v839 = vpack.c.bf16 %v743, %v739
    %v840 = vpack.c.bf16 %v744, %v740
    %v841 = vpack.c.bf16 %v745, %v741
    %v842 = vpack.c.bf16 %v750, %v746
    %v843 = vpack.c.bf16 %v751, %v747
    %v844 = vpack.c.bf16 %v752, %v748
    %v845 = vpack.c.bf16 %v753, %v749
    %v846 = vpack.c.bf16 %v758, %v754
    %v847 = vpack.c.bf16 %v759, %v755
    %v848 = vpack.c.bf16 %v760, %v756
    %v849 = vpack.c.bf16 %v761, %v757
    %v850 = vpack.c.bf16 %v766, %v762
    %v851 = vpack.c.bf16 %v767, %v763
    %v852 = vpack.c.bf16 %v768, %v764
    %v853 = vpack.c.bf16 %v769, %v765
    %v854 = vpack.c.bf16 %v774, %v770
    %v855 = vpack.c.bf16 %v775, %v771
    %v856 = vpack.c.bf16 %v776, %v772
    %v857 = vpack.c.bf16 %v777, %v773
    %v858 = vpack.c.bf16 %v782, %v778
    %v859 = vpack.c.bf16 %v783, %v779
    %v860 = vpack.c.bf16 %v784, %v780
    %v861 = vpack.c.bf16 %v785, %v781
    %v862 = vpack.c.bf16 %v790, %v786
    %v863 = vpack.c.bf16 %v791, %v787
    %v864 = vpack.c.bf16 %v792, %v788
    %v865 = vpack.c.bf16 %v793, %v789
    %v866 = vpack.c.bf16 %v798, %v794
    %v867 = vpack.c.bf16 %v799, %v795
    %v868 = vpack.c.bf16 %v800, %v796
    %v869 = vpack.c.bf16 %v801, %v797
    %v870 = vpack.c.bf16 %v806, %v802
    %v871 = vpack.c.bf16 %v807, %v803
    %v872 = vpack.c.bf16 %v808, %v804
    %v873 = vpack.c.bf16 %v809, %v805
    %v874 = vpack.c.bf16 %v814, %v810
    %v875 = vpack.c.bf16 %v815, %v811
    %v876 = vpack.c.bf16 %v816, %v812
    %v877 = vpack.c.bf16 %v817, %v813
    %v878 = vpack.c.bf16 %v822, %v818
    %v879 = vpack.c.bf16 %v823, %v819
    %v880 = vpack.c.bf16 %v824, %v820
    %v881 = vpack.c.bf16 %v825, %v821
    %v882 = vpack.c.bf16 %v830, %v826
    %v883 = vpack.c.bf16 %v831, %v827
    %v884 = vpack.c.bf16 %v832, %v828
    %v885 = vpack.c.bf16 %v833, %v829
    %v886 = vpack.c.bf16 %v834, %v834
    %v887 = vpack.c.bf16 %v835, %v835
    %v888 = vpack.c.bf16 %v836, %v836
    %v889 = vpack.c.bf16 %v837, %v837
    %v890 = vld [vmem:[#allocation2] sm:$0xff]
    %v891 = vld [vmem:[#allocation2 + $0x8] sm:$0xff]
    %v892 = vld [vmem:[#allocation2 + $0x10] sm:$0xff]
    %v893 = vld [vmem:[#allocation2 + $0x18] sm:$0xff]
    %v894 = vld [vmem:[#allocation2 + $0x20] sm:$0xff]
    %v895 = vld [vmem:[#allocation2 + $0x28] sm:$0xff]
    %v896 = vld [vmem:[#allocation2 + $0x30] sm:$0xff]
    %v897 = vld [vmem:[#allocation2 + $0x38] sm:$0xff]
    %v898 = vld [vmem:[#allocation2 + $0x40] sm:$0xff]
    %v899 = vld [vmem:[#allocation2 + $0x48] sm:$0xff]
    %v900 = vld [vmem:[#allocation2 + $0x50] sm:$0xff]
    %v901 = vld [vmem:[#allocation2 + $0x58] sm:$0xff]
    %v902 = vld [vmem:[#allocation2 + $0x60] sm:$0xff]
    %v903 = vld [vmem:[#allocation2 + $0x68] sm:$0xff]
    %v904 = vld [vmem:[#allocation2 + $0x70] sm:$0xff]
    %v905 = vld [vmem:[#allocation2 + $0x78] sm:$0xff]
    %v906 = vld [vmem:[#allocation2 + $0x80] sm:$0xff]
    %v907 = vld [vmem:[#allocation2 + $0x88] sm:$0xff]
    %v908 = vld [vmem:[#allocation2 + $0x90] sm:$0xff]
    %v909 = vld [vmem:[#allocation2 + $0x98] sm:$0xff]
    %v910 = vld [vmem:[#allocation2 + $0xa0] sm:$0xff]
    %v911 = vld [vmem:[#allocation2 + $0xa8] sm:$0xff]
    %v912 = vld [vmem:[#allocation2 + $0xb0] sm:$0xff]
    %v913 = vld [vmem:[#allocation2 + $0xb8] sm:$0xff]
    %v914 = vld [vmem:[#allocation2 + $0xc0] sm:$0xff]
    %v915 = vld [vmem:[#allocation2 + $0xc8] sm:$0xff]
    %v916 = vld [vmem:[#allocation2 + $0xd0] sm:$0xff]
    %v917 = vld [vmem:[#allocation2 + $0xd8] sm:$0xff]
    %v918 = vld [vmem:[#allocation2 + $0xe0] sm:$0xff]
    %v919 = vld [vmem:[#allocation2 + $0xe8] sm:$0xff]
    %v920 = vld [vmem:[#allocation2 + $0xf0] sm:$0xff]
    %v921 = vld [vmem:[#allocation2 + $0xf8] sm:$0xff]
    %v922 = vld [vmem:[#allocation2 + $0x100] sm:$0xff]
    %v923 = vld [vmem:[#allocation2 + $0x108] sm:$0xff]
    %v924 = vld [vmem:[#allocation2 + $0x110] sm:$0xff]
    %v925 = vld [vmem:[#allocation2 + $0x118] sm:$0xff]
    %v926 = vld [vmem:[#allocation2 + $0x120] sm:$0xff]
    %v927 = vld [vmem:[#allocation2 + $0x128] sm:$0xff]
    %v928 = vld [vmem:[#allocation2 + $0x130] sm:$0xff]
    %v929 = vld [vmem:[#allocation2 + $0x138] sm:$0xff]
    %v930 = vld [vmem:[#allocation2 + $0x140] sm:$0xff]
    %v931 = vld [vmem:[#allocation2 + $0x148] sm:$0xff]
    %v932 = vld [vmem:[#allocation2 + $0x150] sm:$0xff]
    %v933 = vld [vmem:[#allocation2 + $0x158] sm:$0xff]
    %v934 = vld [vmem:[#allocation2 + $0x160] sm:$0xff]
    %v935 = vld [vmem:[#allocation2 + $0x168] sm:$0xff]
    %v936 = vld [vmem:[#allocation2 + $0x170] sm:$0xff]
    %v937 = vld [vmem:[#allocation2 + $0x178] sm:$0xff]
    %v938 = vld [vmem:[#allocation2 + $0x180] sm:$0xff]
    %v939 = vld [vmem:[#allocation2 + $0x188] sm:$0xff]
    %v940 = vld [vmem:[#allocation2 + $0x190] sm:$0xff]
    %v941 = vld [vmem:[#allocation2 + $0x198] sm:$0xff]
    %v942 = vld [vmem:[#allocation2 + $0x1a0] sm:$0xff]
    %v943 = vld [vmem:[#allocation2 + $0x1a8] sm:$0xff]
    %v944 = vld [vmem:[#allocation2 + $0x1b0] sm:$0xff]
    %v945 = vld [vmem:[#allocation2 + $0x1b8] sm:$0xff]
    %v946 = vld [vmem:[#allocation2 + $0x1c0] sm:$0xff]
    %v947 = vld [vmem:[#allocation2 + $0x1c8] sm:$0xff]
    %v948 = vld [vmem:[#allocation2 + $0x1d0] sm:$0xff]
    %v949 = vld [vmem:[#allocation2 + $0x1d8] sm:$0xff]
    %v950 = vld [vmem:[#allocation2 + $0x1e0] sm:$0xff]
    %v951 = vld [vmem:[#allocation2 + $0x1e8] sm:$0xff]
    %v952 = vld [vmem:[#allocation2 + $0x1f0] sm:$0xff]
    %v953 = vld [vmem:[#allocation2 + $0x1f8] sm:$0xff]
    %v954 = vld [vmem:[#allocation2 + $0x200] sm:$0xff]
    %v955 = vld [vmem:[#allocation2 + $0x208] sm:$0xff]
    %v956 = vld [vmem:[#allocation2 + $0x210] sm:$0xff]
    %v957 = vld [vmem:[#allocation2 + $0x218] sm:$0xff]
    %v958 = vld [vmem:[#allocation2 + $0x220] sm:$0xff]
    %v959 = vld [vmem:[#allocation2 + $0x228] sm:$0xff]
    %v960 = vld [vmem:[#allocation2 + $0x230] sm:$0xff]
    %v961 = vld [vmem:[#allocation2 + $0x238] sm:$0xff]
    %v962 = vld [vmem:[#allocation2 + $0x240] sm:$0xff]
    %v963 = vld [vmem:[#allocation2 + $0x248] sm:$0xff]
    %v964 = vld [vmem:[#allocation2 + $0x250] sm:$0xff]
    %v965 = vld [vmem:[#allocation2 + $0x258] sm:$0xff]
    %v966 = vld [vmem:[#allocation2 + $0x260] sm:$0xff]
    %v967 = vld [vmem:[#allocation2 + $0x268] sm:$0xff]
    %v968 = vld [vmem:[#allocation2 + $0x270] sm:$0xff]
    %v969 = vld [vmem:[#allocation2 + $0x278] sm:$0xff]
    %v970 = vld [vmem:[#allocation2 + $0x280] sm:$0xff]
    %v971 = vld [vmem:[#allocation2 + $0x288] sm:$0xff]
    %v972 = vld [vmem:[#allocation2 + $0x290] sm:$0xff]
    %v973 = vld [vmem:[#allocation2 + $0x298] sm:$0xff]
    %v974 = vld [vmem:[#allocation2 + $0x2a0] sm:$0xff]
    %v975 = vld [vmem:[#allocation2 + $0x2a8] sm:$0xff]
    %v976 = vld [vmem:[#allocation2 + $0x2b0] sm:$0xff]
    %v977 = vld [vmem:[#allocation2 + $0x2b8] sm:$0xff]
    %v978 = vld [vmem:[#allocation2 + $0x2c0] sm:$0xff]
    %v979 = vld [vmem:[#allocation2 + $0x2c8] sm:$0xff]
    %v980 = vld [vmem:[#allocation2 + $0x2d0] sm:$0xff]
    %v981 = vld [vmem:[#allocation2 + $0x2d8] sm:$0xff]
    %v982 = vld [vmem:[#allocation2 + $0x2e0] sm:$0xff]
    %v983 = vld [vmem:[#allocation2 + $0x2e8] sm:$0xff]
    %v984 = vld [vmem:[#allocation2 + $0x2f0] sm:$0xff]
    %v985 = vld [vmem:[#allocation2 + $0x2f8] sm:$0xff]
    %v986 = vld [vmem:[#allocation2 + $0x300] sm:$0xff]
    %v987 = vld [vmem:[#allocation2 + $0x308] sm:$0xff]
    %v988 = vld [vmem:[#allocation2 + $0x310] sm:$0xff]
    %v989 = vld [vmem:[#allocation2 + $0x318] sm:$0xff]
    %v990 = vld [vmem:[#allocation2 + $0x320] sm:$0xff]
    %v991 = vld [vmem:[#allocation2 + $0x328] sm:$0xff]
    %v992 = vld [vmem:[#allocation2 + $0x330] sm:$0xff]
    %v993 = vld [vmem:[#allocation2 + $0x338] sm:$0xff]
    %v994 = vld [vmem:[#allocation2 + $0x340] sm:$0xff]
    %v995 = vld [vmem:[#allocation2 + $0x348] sm:$0xff]
    %v996 = vld [vmem:[#allocation2 + $0x350] sm:$0xff]
    %v997 = vld [vmem:[#allocation2 + $0x358] sm:$0xff]
    %v998 = vld [vmem:[#allocation2 + $0x360] sm:$0xff]
    %v999 = vld [vmem:[#allocation2 + $0x368] sm:$0xff]
    %v1000 = vld [vmem:[#allocation2 + $0x370] sm:$0xff]
    %v1001 = vld [vmem:[#allocation2 + $0x378] sm:$0xff]
    %v1002 = vld [vmem:[#allocation2 + $0x380] sm:$0xff]
    %v1003 = vld [vmem:[#allocation2 + $0x388] sm:$0xff]
    %v1004 = vld [vmem:[#allocation2 + $0x390] sm:$0xff]
    %v1005 = vld [vmem:[#allocation2 + $0x398] sm:$0xff]
    %v1006 = vld [vmem:[#allocation2 + $0x3a0] sm:$0xff]
    %v1007 = vld [vmem:[#allocation2 + $0x3a8] sm:$0xff]
    %v1008 = vld [vmem:[#allocation2 + $0x3b0] sm:$0xff]
    %v1009 = vld [vmem:[#allocation2 + $0x3b8] sm:$0xff]
    %v1010 = vld [vmem:[#allocation2 + $0x3c0] sm:$0xff]
    %v1011 = vld [vmem:[#allocation2 + $0x3c8] sm:$0xff]
    %v1012 = vld [vmem:[#allocation2 + $0x3d0] sm:$0xff]
    %v1013 = vld [vmem:[#allocation2 + $0x3d8] sm:$0xff]
    %v1014 = vld [vmem:[#allocation2 + $0x3e0] sm:$0xff]
    %v1015 = vld [vmem:[#allocation2 + $0x3e8] sm:$0xff]
    %v1016 = vld [vmem:[#allocation2 + $0x3f0] sm:$0xff]
    %v1017 = vld [vmem:[#allocation2 + $0x3f8] sm:$0xff]
    %v1018 = vld [vmem:[#allocation2 + $0x400] sm:$0xff]
    %v1019 = vld [vmem:[#allocation2 + $0x408] sm:$0xff]
    %v1020 = vld [vmem:[#allocation2 + $0x410] sm:$0xff]
    %v1021 = vld [vmem:[#allocation2 + $0x418] sm:$0xff]
    %v1022 = vld [vmem:[#allocation2 + $0x420] sm:$0xff]
    %v1023 = vld [vmem:[#allocation2 + $0x428] sm:$0xff]
    %v1024 = vld [vmem:[#allocation2 + $0x430] sm:$0xff]
    %v1025 = vld [vmem:[#allocation2 + $0x438] sm:$0xff]
    %v1026 = vld [vmem:[#allocation2 + $0x440] sm:$0xff]
    %v1027 = vld [vmem:[#allocation2 + $0x448] sm:$0xff]
    %v1028 = vld [vmem:[#allocation2 + $0x450] sm:$0xff]
    %v1029 = vld [vmem:[#allocation2 + $0x458] sm:$0xff]
    %v1030 = vld [vmem:[#allocation2 + $0x460] sm:$0xff]
    %v1031 = vld [vmem:[#allocation2 + $0x468] sm:$0xff]
    %v1032 = vld [vmem:[#allocation2 + $0x470] sm:$0xff]
    %v1033 = vld [vmem:[#allocation2 + $0x478] sm:$0xff]
    %v1034 = vld [vmem:[#allocation2 + $0x480] sm:$0xff]
    %v1035 = vld [vmem:[#allocation2 + $0x488] sm:$0xff]
    %v1036 = vld [vmem:[#allocation2 + $0x490] sm:$0xff]
    %v1037 = vld [vmem:[#allocation2 + $0x498] sm:$0xff]
    %v1038 = vld [vmem:[#allocation2 + $0x4a0] sm:$0xff]
    %v1039 = vld [vmem:[#allocation2 + $0x4a8] sm:$0xff]
    %v1040 = vld [vmem:[#allocation2 + $0x4b0] sm:$0xff]
    %v1041 = vld [vmem:[#allocation2 + $0x4b8] sm:$0xff]
    %v1042 = vld [vmem:[#allocation2 + $0x4c0] sm:$0xff]
    %v1043 = vld [vmem:[#allocation2 + $0x4c8] sm:$0xff]
    %v1044 = vld [vmem:[#allocation2 + $0x4d0] sm:$0xff]
    %v1045 = vld [vmem:[#allocation2 + $0x4d8] sm:$0xff]
    %v1046 = vld [vmem:[#allocation2 + $0x4e0] sm:$0xff]
    %v1047 = vld [vmem:[#allocation2 + $0x4e8] sm:$0xff]
    %v1048 = vld [vmem:[#allocation2 + $0x4f0] sm:$0xff]
    %v1049 = vld [vmem:[#allocation2 + $0x4f8] sm:$0xff]
    %v1050 = vld [vmem:[#allocation2 + $0x500] sm:$0xff]
    %v1051 = vld [vmem:[#allocation2 + $0x508] sm:$0xff]
    %v1052 = vld [vmem:[#allocation2 + $0x510] sm:$0xff]
    %v1053 = vld [vmem:[#allocation2 + $0x518] sm:$0xff]
    %v1054 = vld [vmem:[#allocation2 + $0x520] sm:$0xff]
    %v1055 = vld [vmem:[#allocation2 + $0x528] sm:$0xff]
    %v1056 = vld [vmem:[#allocation2 + $0x530] sm:$0xff]
    %v1057 = vld [vmem:[#allocation2 + $0x538] sm:$0xff]
    %v1058 = vld [vmem:[#allocation2 + $0x540] sm:$0xff]
    %v1059 = vld [vmem:[#allocation2 + $0x548] sm:$0xff]
    %v1060 = vld [vmem:[#allocation2 + $0x550] sm:$0xff]
    %v1061 = vld [vmem:[#allocation2 + $0x558] sm:$0xff]
    %v1062 = vld [vmem:[#allocation2 + $0x560] sm:$0xff]
    %v1063 = vld [vmem:[#allocation2 + $0x568] sm:$0xff]
    %v1064 = vld [vmem:[#allocation2 + $0x570] sm:$0xff]
    %v1065 = vld [vmem:[#allocation2 + $0x578] sm:$0xff]
    %v1066 = vld [vmem:[#allocation2 + $0x580] sm:$0xff]
    %v1067 = vld [vmem:[#allocation2 + $0x588] sm:$0xff]
    %v1068 = vld [vmem:[#allocation2 + $0x590] sm:$0xff]
    %v1069 = vld [vmem:[#allocation2 + $0x598] sm:$0xff]
    %v1070 = vld [vmem:[#allocation2 + $0x5a0] sm:$0xff]
    %v1071 = vld [vmem:[#allocation2 + $0x5a8] sm:$0xff]
    %v1072 = vld [vmem:[#allocation2 + $0x5b0] sm:$0xff]
    %v1073 = vld [vmem:[#allocation2 + $0x5b8] sm:$0xff]
    %v1074 = vld [vmem:[#allocation2 + $0x5c0] sm:$0xff]
    %v1075 = vld [vmem:[#allocation2 + $0x5c8] sm:$0xff]
    %v1076 = vld [vmem:[#allocation2 + $0x5d0] sm:$0xff]
    %v1077 = vld [vmem:[#allocation2 + $0x5d8] sm:$0xff]
    %v1078 = vld [vmem:[#allocation2 + $0x5e0] sm:$0xff]
    %v1079 = vld [vmem:[#allocation2 + $0x5e8] sm:$0xff]
    %v1080 = vld [vmem:[#allocation2 + $0x5f0] sm:$0xff]
    %v1081 = vld [vmem:[#allocation2 + $0x5f8] sm:$0xff]
    %v1082 = vld [vmem:[#allocation2 + $0x600] sm:$0xff]
    %v1083 = vld [vmem:[#allocation2 + $0x608] sm:$0xff]
    %v1084 = vld [vmem:[#allocation2 + $0x610] sm:$0xff]
    %v1085 = vld [vmem:[#allocation2 + $0x618] sm:$0xff]
    %v1086 = vld [vmem:[#allocation2 + $0x620] sm:$0xff]
    %v1087 = vld [vmem:[#allocation2 + $0x628] sm:$0xff]
    %v1088 = vld [vmem:[#allocation2 + $0x630] sm:$0xff]
    %v1089 = vld [vmem:[#allocation2 + $0x638] sm:$0xff]
    %v1090 = vld [vmem:[#allocation2 + $0x640] sm:$0xff]
    %v1091 = vld [vmem:[#allocation2 + $0x648] sm:$0xff]
    %v1092 = vld [vmem:[#allocation2 + $0x650] sm:$0xff]
    %v1093 = vld [vmem:[#allocation2 + $0x658] sm:$0xff]
    %v1094 = vld [vmem:[#allocation2 + $0x660] sm:$0xff]
    %v1095 = vld [vmem:[#allocation2 + $0x668] sm:$0xff]
    %v1096 = vld [vmem:[#allocation2 + $0x670] sm:$0xff]
    %v1097 = vld [vmem:[#allocation2 + $0x678] sm:$0xff]
    %v1098 = vld [vmem:[#allocation2 + $0x680] sm:$0xff]
    %v1099 = vld [vmem:[#allocation2 + $0x688] sm:$0xff]
    %v1100 = vld [vmem:[#allocation2 + $0x690] sm:$0xff]
    %v1101 = vld [vmem:[#allocation2 + $0x698] sm:$0xff]
    %v1102 = vld [vmem:[#allocation2 + $0x6a0] sm:$0xff]
    %v1103 = vld [vmem:[#allocation2 + $0x6a8] sm:$0xff]
    %v1104 = vld [vmem:[#allocation2 + $0x6b0] sm:$0xff]
    %v1105 = vld [vmem:[#allocation2 + $0x6b8] sm:$0xff]
    %v1106 = vld [vmem:[#allocation2 + $0x6c0] sm:$0xff]
    %v1107 = vld [vmem:[#allocation2 + $0x6c8] sm:$0xff]
    %v1108 = vld [vmem:[#allocation2 + $0x6d0] sm:$0xff]
    %v1109 = vld [vmem:[#allocation2 + $0x6d8] sm:$0xff]
    %v1110 = vld [vmem:[#allocation2 + $0x6e0] sm:$0xff]
    %v1111 = vld [vmem:[#allocation2 + $0x6e8] sm:$0xff]
    %v1112 = vld [vmem:[#allocation2 + $0x6f0] sm:$0xff]
    %v1113 = vld [vmem:[#allocation2 + $0x6f8] sm:$0xff]
    %v1114 = vld [vmem:[#allocation2 + $0x700] sm:$0xff]
    %v1115 = vld [vmem:[#allocation2 + $0x708] sm:$0xff]
    %v1116 = vld [vmem:[#allocation2 + $0x710] sm:$0xff]
    %v1117 = vld [vmem:[#allocation2 + $0x718] sm:$0xff]
    %v1118 = vld [vmem:[#allocation2 + $0x720] sm:$0xff]
    %v1119 = vld [vmem:[#allocation2 + $0x728] sm:$0xff]
    %v1120 = vld [vmem:[#allocation2 + $0x730] sm:$0xff]
    %v1121 = vld [vmem:[#allocation2 + $0x738] sm:$0xff]
    %v1122 = vld [vmem:[#allocation2 + $0x740] sm:$0xff]
    %v1123 = vld [vmem:[#allocation2 + $0x748] sm:$0xff]
    %v1124 = vld [vmem:[#allocation2 + $0x750] sm:$0xff]
    %v1125 = vld [vmem:[#allocation2 + $0x758] sm:$0xff]
    %v1126 = vld [vmem:[#allocation2 + $0x760] sm:$0xff]
    %v1127 = vld [vmem:[#allocation2 + $0x768] sm:$0xff]
    %v1128 = vld [vmem:[#allocation2 + $0x770] sm:$0xff]
    %v1129 = vld [vmem:[#allocation2 + $0x778] sm:$0xff]
    %v1130 = vld [vmem:[#allocation2 + $0x780] sm:$0xff]
    %v1131 = vld [vmem:[#allocation2 + $0x788] sm:$0xff]
    %v1132 = vld [vmem:[#allocation2 + $0x790] sm:$0xff]
    %v1133 = vld [vmem:[#allocation2 + $0x798] sm:$0xff]
    %v1134 = vld [vmem:[#allocation2 + $0x7a0] sm:$0xff]
    %v1135 = vld [vmem:[#allocation2 + $0x7a8] sm:$0xff]
    %v1136 = vld [vmem:[#allocation2 + $0x7b0] sm:$0xff]
    %v1137 = vld [vmem:[#allocation2 + $0x7b8] sm:$0xff]
    %v1138 = vld [vmem:[#allocation2 + $0x7c0] sm:$0xff]
    %v1139 = vld [vmem:[#allocation2 + $0x7c8] sm:$0xff]
    %v1140 = vld [vmem:[#allocation2 + $0x7d0] sm:$0xff]
    %v1141 = vld [vmem:[#allocation2 + $0x7d8] sm:$0xff]
    %v1142 = vld [vmem:[#allocation2 + $0x7e0] sm:$0xff]
    %v1143 = vld [vmem:[#allocation2 + $0x7e8] sm:$0xff]
    %v1144 = vld [vmem:[#allocation2 + $0x7f0] sm:$0xff]
    %v1145 = vld [vmem:[#allocation2 + $0x7f8] sm:$0xff]
    %v1146 = vld [vmem:[#allocation2 + $0x800] sm:$0xff]
    %v1147 = vld [vmem:[#allocation2 + $0x808] sm:$0xff]
    %v1148 = vld [vmem:[#allocation2 + $0x810] sm:$0xff]
    %v1149 = vld [vmem:[#allocation2 + $0x818] sm:$0xff]
    %v1150 = vld [vmem:[#allocation2 + $0x820] sm:$0xff]
    %v1151 = vld [vmem:[#allocation2 + $0x828] sm:$0xff]
    %v1152 = vld [vmem:[#allocation2 + $0x830] sm:$0xff]
    %v1153 = vld [vmem:[#allocation2 + $0x838] sm:$0xff]
    %v1154 = vld [vmem:[#allocation2 + $0x840] sm:$0xff]
    %v1155 = vld [vmem:[#allocation2 + $0x848] sm:$0xff]
    %v1156 = vld [vmem:[#allocation2 + $0x850] sm:$0xff]
    %v1157 = vld [vmem:[#allocation2 + $0x858] sm:$0xff]
    %v1158 = vld [vmem:[#allocation2 + $0x860] sm:$0xff]
    %v1159 = vld [vmem:[#allocation2 + $0x868] sm:$0xff]
    %v1160 = vld [vmem:[#allocation2 + $0x870] sm:$0xff]
    %v1161 = vld [vmem:[#allocation2 + $0x878] sm:$0xff]
    %v1162 = vld [vmem:[#allocation2 + $0x880] sm:$0xff]
    %v1163 = vld [vmem:[#allocation2 + $0x888] sm:$0xff]
    %v1164 = vld [vmem:[#allocation2 + $0x890] sm:$0xff]
    %v1165 = vld [vmem:[#allocation2 + $0x898] sm:$0xff]
    %v1166 = vld [vmem:[#allocation2 + $0x8a0] sm:$0xff]
    %v1167 = vld [vmem:[#allocation2 + $0x8a8] sm:$0xff]
    %v1168 = vld [vmem:[#allocation2 + $0x8b0] sm:$0xff]
    %v1169 = vld [vmem:[#allocation2 + $0x8b8] sm:$0xff]
    %v1170 = vld [vmem:[#allocation2 + $0x8c0] sm:$0xff]
    %v1171 = vld [vmem:[#allocation2 + $0x8c8] sm:$0xff]
    %v1172 = vld [vmem:[#allocation2 + $0x8d0] sm:$0xff]
    %v1173 = vld [vmem:[#allocation2 + $0x8d8] sm:$0xff]
    %v1174 = vld [vmem:[#allocation2 + $0x8e0] sm:$0xff]
    %v1175 = vld [vmem:[#allocation2 + $0x8e8] sm:$0xff]
    %v1176 = vld [vmem:[#allocation2 + $0x8f0] sm:$0xff]
    %v1177 = vld [vmem:[#allocation2 + $0x8f8] sm:$0xff]
    %v1178 = vld [vmem:[#allocation2 + $0x900] sm:$0xff]
    %v1179 = vld [vmem:[#allocation2 + $0x908] sm:$0xff]
    %v1180 = vld [vmem:[#allocation2 + $0x910] sm:$0xff]
    %v1181 = vld [vmem:[#allocation2 + $0x918] sm:$0xff]
    %v1182 = vld [vmem:[#allocation2 + $0x920] sm:$0xff]
    %v1183 = vld [vmem:[#allocation2 + $0x928] sm:$0xff]
    %v1184 = vld [vmem:[#allocation2 + $0x930] sm:$0xff]
    %v1185 = vld [vmem:[#allocation2 + $0x938] sm:$0xff]
    %v1186 = vld [vmem:[#allocation2 + $0x940] sm:$0xff]
    %v1187 = vld [vmem:[#allocation2 + $0x948] sm:$0xff]
    %v1188 = vld [vmem:[#allocation2 + $0x950] sm:$0xff]
    %v1189 = vld [vmem:[#allocation2 + $0x958] sm:$0xff]
    %v1190 = vld [vmem:[#allocation2 + $0x960] sm:$0xff]
    %v1191 = vld [vmem:[#allocation2 + $0x968] sm:$0xff]
    %v1192 = vld [vmem:[#allocation2 + $0x970] sm:$0xff]
    %v1193 = vld [vmem:[#allocation2 + $0x978] sm:$0xff]
    %v1194 = vld [vmem:[#allocation2 + $0x980] sm:$0xff]
    %v1195 = vld [vmem:[#allocation2 + $0x988] sm:$0xff]
    %v1196 = vld [vmem:[#allocation2 + $0x990] sm:$0xff]
    %v1197 = vld [vmem:[#allocation2 + $0x998] sm:$0xff]
    %v1198 = vld [vmem:[#allocation2 + $0x9a0] sm:$0xff]
    %v1199 = vld [vmem:[#allocation2 + $0x9a8] sm:$0xff]
    %v1200 = vld [vmem:[#allocation2 + $0x9b0] sm:$0xff]
    %v1201 = vld [vmem:[#allocation2 + $0x9b8] sm:$0xff]
    %v1202 = vld [vmem:[#allocation2 + $0x9c0] sm:$0xff]
    %v1203 = vld [vmem:[#allocation2 + $0x9c8] sm:$0xff]
    %v1204 = vld [vmem:[#allocation2 + $0x9d0] sm:$0xff]
    %v1205 = vld [vmem:[#allocation2 + $0x9d8] sm:$0xff]
    %v1206 = vld [vmem:[#allocation2 + $0x9e0] sm:$0xff]
    %v1207 = vld [vmem:[#allocation2 + $0x9e8] sm:$0xff]
    %v1208 = vld [vmem:[#allocation2 + $0x9f0] sm:$0xff]
    %v1209 = vld [vmem:[#allocation2 + $0x9f8] sm:$0xff]
    %v1210 = vld [vmem:[#allocation2 + $0xa00] sm:$0xff]
    %v1211 = vld [vmem:[#allocation2 + $0xa08] sm:$0xff]
    %v1212 = vld [vmem:[#allocation2 + $0xa10] sm:$0xff]
    %v1213 = vld [vmem:[#allocation2 + $0xa18] sm:$0xff]
    %v1214 = vld [vmem:[#allocation2 + $0xa20] sm:$0xff]
    %v1215 = vld [vmem:[#allocation2 + $0xa28] sm:$0xff]
    %v1216 = vld [vmem:[#allocation2 + $0xa30] sm:$0xff]
    %v1217 = vld [vmem:[#allocation2 + $0xa38] sm:$0xff]
    %v1218 = vld [vmem:[#allocation2 + $0xa40] sm:$0xff]
    %v1219 = vld [vmem:[#allocation2 + $0xa48] sm:$0xff]
    %v1220 = vld [vmem:[#allocation2 + $0xa50] sm:$0xff]
    %v1221 = vld [vmem:[#allocation2 + $0xa58] sm:$0xff]
    %v1222 = vld [vmem:[#allocation2 + $0xa60] sm:$0xff]
    %v1223 = vld [vmem:[#allocation2 + $0xa68] sm:$0xff]
    %v1224 = vld [vmem:[#allocation2 + $0xa70] sm:$0xff]
    %v1225 = vld [vmem:[#allocation2 + $0xa78] sm:$0xff]
    %v1226 = vld [vmem:[#allocation2 + $0xa80] sm:$0xff]
    %v1227 = vld [vmem:[#allocation2 + $0xa88] sm:$0xff]
    %v1228 = vld [vmem:[#allocation2 + $0xa90] sm:$0xff]
    %v1229 = vld [vmem:[#allocation2 + $0xa98] sm:$0xff]
    %v1230 = vld [vmem:[#allocation2 + $0xaa0] sm:$0xff]
    %v1231 = vld [vmem:[#allocation2 + $0xaa8] sm:$0xff]
    %v1232 = vld [vmem:[#allocation2 + $0xab0] sm:$0xff]
    %v1233 = vld [vmem:[#allocation2 + $0xab8] sm:$0xff]
    %v1234 = vld [vmem:[#allocation2 + $0xac0] sm:$0xff]
    %v1235 = vld [vmem:[#allocation2 + $0xac8] sm:$0xff]
    %v1236 = vld [vmem:[#allocation2 + $0xad0] sm:$0xff]
    %v1237 = vld [vmem:[#allocation2 + $0xad8] sm:$0xff]
    %v1238 = vld [vmem:[#allocation2 + $0xae0] sm:$0xff]
    %v1239 = vld [vmem:[#allocation2 + $0xae8] sm:$0xff]
    %v1240 = vld [vmem:[#allocation2 + $0xaf0] sm:$0xff]
    %v1241 = vld [vmem:[#allocation2 + $0xaf8] sm:$0xff]
    %v1242 = vld [vmem:[#allocation2 + $0xb00] sm:$0xff]
    %v1243 = vld [vmem:[#allocation2 + $0xb08] sm:$0xff]
    %v1244 = vld [vmem:[#allocation2 + $0xb10] sm:$0xff]
    %v1245 = vld [vmem:[#allocation2 + $0xb18] sm:$0xff]
    %v1246 = vld [vmem:[#allocation2 + $0xb20] sm:$0xff]
    %v1247 = vld [vmem:[#allocation2 + $0xb28] sm:$0xff]
    %v1248 = vld [vmem:[#allocation2 + $0xb30] sm:$0xff]
    %v1249 = vld [vmem:[#allocation2 + $0xb38] sm:$0xff]
    %v1250 = vld [vmem:[#allocation2 + $0xb40] sm:$0xff]
    %v1251 = vld [vmem:[#allocation2 + $0xb48] sm:$0xff]
    %v1252 = vld [vmem:[#allocation2 + $0xb50] sm:$0xff]
    %v1253 = vld [vmem:[#allocation2 + $0xb58] sm:$0xff]
    %v1254 = vld [vmem:[#allocation2 + $0xb60] sm:$0xff]
    %v1255 = vld [vmem:[#allocation2 + $0xb68] sm:$0xff]
    %v1256 = vld [vmem:[#allocation2 + $0xb70] sm:$0xff]
    %v1257 = vld [vmem:[#allocation2 + $0xb78] sm:$0xff]
    %v1258 = vld [vmem:[#allocation2 + $0xb80] sm:$0xff]
    %v1259 = vld [vmem:[#allocation2 + $0xb88] sm:$0xff]
    %v1260 = vld [vmem:[#allocation2 + $0xb90] sm:$0xff]
    %v1261 = vld [vmem:[#allocation2 + $0xb98] sm:$0xff]
    %v1262 = vld [vmem:[#allocation2 + $0xba0] sm:$0xff]
    %v1263 = vld [vmem:[#allocation2 + $0xba8] sm:$0xff]
    %v1264 = vld [vmem:[#allocation2 + $0xbb0] sm:$0xff]
    %v1265 = vld [vmem:[#allocation2 + $0xbb8] sm:$0xff]
    %v1266 = vld [vmem:[#allocation2 + $0xbc0] sm:$0xff]
    %v1267 = vld [vmem:[#allocation2 + $0xbc8] sm:$0xff]
    %v1268 = vld [vmem:[#allocation2 + $0xbd0] sm:$0xff]
    %v1269 = vld [vmem:[#allocation2 + $0xbd8] sm:$0xff]
    %v1270 = vld [vmem:[#allocation2 + $0xbe0] sm:$0xff]
    %v1271 = vld [vmem:[#allocation2 + $0xbe8] sm:$0xff]
    %v1272 = vld [vmem:[#allocation2 + $0xbf0] sm:$0xff]
    %v1273 = vld [vmem:[#allocation2 + $0xbf8] sm:$0xff]
    %v1274 = vld [vmem:[#allocation2 + $0xc00] sm:$0xff]
    %v1275 = vld [vmem:[#allocation2 + $0xc08] sm:$0xff]
    %v1276 = vld [vmem:[#allocation2 + $0xc10] sm:$0xff]
    %v1277 = vld [vmem:[#allocation2 + $0xc18] sm:$0xff]
    %v1278 = vld [vmem:[#allocation2 + $0xc20] sm:$0xff]
    %v1279 = vld [vmem:[#allocation2 + $0xc28] sm:$0xff]
    %v1280 = vld [vmem:[#allocation2 + $0xc30] sm:$0xff]
    %v1281 = vld [vmem:[#allocation2 + $0xc38] sm:$0xff]
    %v1282 = vld [vmem:[#allocation2 + $0xc40] sm:$0xff]
    %v1283 = vld [vmem:[#allocation2 + $0xc48] sm:$0xff]
    %v1284 = vld [vmem:[#allocation2 + $0xc50] sm:$0xff]
    %v1285 = vld [vmem:[#allocation2 + $0xc58] sm:$0xff]
    %v1286 = vld [vmem:[#allocation2 + $0xc60] sm:$0xff]
    %v1287 = vld [vmem:[#allocation2 + $0xc68] sm:$0xff]
    %v1288 = vld [vmem:[#allocation2 + $0xc70] sm:$0xff]
    %v1289 = vld [vmem:[#allocation2 + $0xc78] sm:$0xff]
    %v1290 = vld [vmem:[#allocation2 + $0xc80] sm:$0xff]
    %v1291 = vld [vmem:[#allocation2 + $0xc88] sm:$0xff]
    %v1292 = vld [vmem:[#allocation2 + $0xc90] sm:$0xff]
    %v1293 = vld [vmem:[#allocation2 + $0xc98] sm:$0xff]
    %v1294 = vld [vmem:[#allocation2 + $0xca0] sm:$0xff]
    %v1295 = vld [vmem:[#allocation2 + $0xca8] sm:$0xff]
    %v1296 = vld [vmem:[#allocation2 + $0xcb0] sm:$0xff]
    %v1297 = vld [vmem:[#allocation2 + $0xcb8] sm:$0xff]
    %v1298 = vld [vmem:[#allocation2 + $0xcc0] sm:$0xff]
    %v1299 = vld [vmem:[#allocation2 + $0xcc8] sm:$0xff]
    %v1300 = vld [vmem:[#allocation2 + $0xcd0] sm:$0xff]
    %v1301 = vld [vmem:[#allocation2 + $0xcd8] sm:$0xff]
    %v1302 = vld [vmem:[#allocation2 + $0xce0] sm:$0xff]
    %v1303 = vld [vmem:[#allocation2 + $0xce8] sm:$0xff]
    %v1304 = vld [vmem:[#allocation2 + $0xcf0] sm:$0xff]
    %v1305 = vld [vmem:[#allocation2 + $0xcf8] sm:$0xff]
    %v1306 = vld [vmem:[#allocation2 + $0xd00] sm:$0xff]
    %v1307 = vld [vmem:[#allocation2 + $0xd08] sm:$0xff]
    %v1308 = vld [vmem:[#allocation2 + $0xd10] sm:$0xff]
    %v1309 = vld [vmem:[#allocation2 + $0xd18] sm:$0xff]
    %v1310 = vld [vmem:[#allocation2 + $0xd20] sm:$0xff]
    %v1311 = vld [vmem:[#allocation2 + $0xd28] sm:$0xff]
    %v1312 = vld [vmem:[#allocation2 + $0xd30] sm:$0xff]
    %v1313 = vld [vmem:[#allocation2 + $0xd38] sm:$0xff]
    %v1314 = vld [vmem:[#allocation2 + $0xd40] sm:$0xff]
    %v1315 = vld [vmem:[#allocation2 + $0xd48] sm:$0xff]
    %v1316 = vld [vmem:[#allocation2 + $0xd50] sm:$0xff]
    %v1317 = vld [vmem:[#allocation2 + $0xd58] sm:$0xff]
    %v1318 = vld [vmem:[#allocation2 + $0xd60] sm:$0xff]
    %v1319 = vld [vmem:[#allocation2 + $0xd68] sm:$0xff]
    %v1320 = vld [vmem:[#allocation2 + $0xd70] sm:$0xff]
    %v1321 = vld [vmem:[#allocation2 + $0xd78] sm:$0xff]
    %v1322 = vld [vmem:[#allocation2 + $0xd80] sm:$0xff]
    %v1323 = vld [vmem:[#allocation2 + $0xd88] sm:$0xff]
    %v1324 = vld [vmem:[#allocation2 + $0xd90] sm:$0xff]
    %v1325 = vld [vmem:[#allocation2 + $0xd98] sm:$0xff]
    %v1326 = vld [vmem:[#allocation2 + $0xda0] sm:$0xff]
    %v1327 = vld [vmem:[#allocation2 + $0xda8] sm:$0xff]
    %v1328 = vld [vmem:[#allocation2 + $0xdb0] sm:$0xff]
    %v1329 = vld [vmem:[#allocation2 + $0xdb8] sm:$0xff]
    %v1330 = vld [vmem:[#allocation2 + $0xdc0] sm:$0xff]
    %v1331 = vld [vmem:[#allocation2 + $0xdc8] sm:$0xff]
    %v1332 = vld [vmem:[#allocation2 + $0xdd0] sm:$0xff]
    %v1333 = vld [vmem:[#allocation2 + $0xdd8] sm:$0xff]
    %v1334 = vld [vmem:[#allocation2 + $0xde0] sm:$0xff]
    %v1335 = vld [vmem:[#allocation2 + $0xde8] sm:$0xff]
    %v1336 = vld [vmem:[#allocation2 + $0xdf0] sm:$0xff]
    %v1337 = vld [vmem:[#allocation2 + $0xdf8] sm:$0xff]
    %v1338 = vld [vmem:[#allocation2 + $0xe00] sm:$0xff]
    %v1339 = vld [vmem:[#allocation2 + $0xe08] sm:$0xff]
    %v1340 = vld [vmem:[#allocation2 + $0xe10] sm:$0xff]
    %v1341 = vld [vmem:[#allocation2 + $0xe18] sm:$0xff]
    %v1342 = vld [vmem:[#allocation2 + $0xe20] sm:$0xff]
    %v1343 = vld [vmem:[#allocation2 + $0xe28] sm:$0xff]
    %v1344 = vld [vmem:[#allocation2 + $0xe30] sm:$0xff]
    %v1345 = vld [vmem:[#allocation2 + $0xe38] sm:$0xff]
    %v1346 = vld [vmem:[#allocation2 + $0xe40] sm:$0xff]
    %v1347 = vld [vmem:[#allocation2 + $0xe48] sm:$0xff]
    %v1348 = vld [vmem:[#allocation2 + $0xe50] sm:$0xff]
    %v1349 = vld [vmem:[#allocation2 + $0xe58] sm:$0xff]
    %v1350 = vld [vmem:[#allocation2 + $0xe60] sm:$0xff]
    %v1351 = vld [vmem:[#allocation2 + $0xe68] sm:$0xff]
    %v1352 = vld [vmem:[#allocation2 + $0xe70] sm:$0xff]
    %v1353 = vld [vmem:[#allocation2 + $0xe78] sm:$0xff]
    %v1354 = vld [vmem:[#allocation2 + $0xe80] sm:$0xff]
    %v1355 = vld [vmem:[#allocation2 + $0xe88] sm:$0xff]
    %v1356 = vld [vmem:[#allocation2 + $0xe90] sm:$0xff]
    %v1357 = vld [vmem:[#allocation2 + $0xe98] sm:$0xff]
    %v1358 = vld [vmem:[#allocation2 + $0xea0] sm:$0xff]
    %v1359 = vld [vmem:[#allocation2 + $0xea8] sm:$0xff]
    %v1360 = vld [vmem:[#allocation2 + $0xeb0] sm:$0xff]
    %v1361 = vld [vmem:[#allocation2 + $0xeb8] sm:$0xff]
    %v1362 = vld [vmem:[#allocation2 + $0xec0] sm:$0xff]
    %v1363 = vld [vmem:[#allocation2 + $0xec8] sm:$0xff]
    %v1364 = vld [vmem:[#allocation2 + $0xed0] sm:$0xff]
    %v1365 = vld [vmem:[#allocation2 + $0xed8] sm:$0xff]
    %v1366 = vld [vmem:[#allocation2 + $0xee0] sm:$0xff]
    %v1367 = vld [vmem:[#allocation2 + $0xee8] sm:$0xff]
    %v1368 = vld [vmem:[#allocation2 + $0xef0] sm:$0xff]
    %v1369 = vld [vmem:[#allocation2 + $0xef8] sm:$0xff]
    %v1370 = vld [vmem:[#allocation2 + $0xf00] sm:$0xff]
    %v1371 = vld [vmem:[#allocation2 + $0xf08] sm:$0xff]
    %v1372 = vld [vmem:[#allocation2 + $0xf10] sm:$0xff]
    %v1373 = vld [vmem:[#allocation2 + $0xf18] sm:$0xff]
    %v1374 = vld [vmem:[#allocation2 + $0xf20] sm:$0xff]
    %v1375 = vld [vmem:[#allocation2 + $0xf28] sm:$0xff]
    %v1376 = vld [vmem:[#allocation2 + $0xf30] sm:$0xff]
    %v1377 = vld [vmem:[#allocation2 + $0xf38] sm:$0xff]
    %v1378 = vld [vmem:[#allocation2 + $0xf40] sm:$0xff]
    %v1379 = vld [vmem:[#allocation2 + $0xf48] sm:$0xff]
    %v1380 = vld [vmem:[#allocation2 + $0xf50] sm:$0xff]
    %v1381 = vld [vmem:[#allocation2 + $0xf58] sm:$0xff]
    %v1382 = vld [vmem:[#allocation2 + $0xf60] sm:$0xff]
    %v1383 = vld [vmem:[#allocation2 + $0xf68] sm:$0xff]
    %v1384 = vld [vmem:[#allocation2 + $0xf70] sm:$0xff]
    %v1385 = vld [vmem:[#allocation2 + $0xf78] sm:$0xff]
    %v1386 = vld [vmem:[#allocation2 + $0xf80] sm:$0xff]
    %v1387 = vld [vmem:[#allocation2 + $0xf88] sm:$0xff]
    %v1388 = vld [vmem:[#allocation2 + $0xf90] sm:$0xff]
    %v1389 = vld [vmem:[#allocation2 + $0xf98] sm:$0xff]
    %v1390 = vld [vmem:[#allocation2 + $0xfa0] sm:$0xff]
    %v1391 = vld [vmem:[#allocation2 + $0xfa8] sm:$0xff]
    %v1392 = vld [vmem:[#allocation2 + $0xfb0] sm:$0xff]
    %v1393 = vld [vmem:[#allocation2 + $0xfb8] sm:$0xff]
    %v1394 = vld [vmem:[#allocation2 + $0xfc0] sm:$0xff]
    %v1395 = vld [vmem:[#allocation2 + $0xfc8] sm:$0xff]
    %v1396 = vld [vmem:[#allocation2 + $0xfd0] sm:$0xff]
    %v1397 = vld [vmem:[#allocation2 + $0xfd8] sm:$0xff]
    %v1398 = vld [vmem:[#allocation2 + $0xfe0] sm:$0xff]
    %v1399 = vld [vmem:[#allocation2 + $0xfe8] sm:$0xff]
    %v1400 = vld [vmem:[#allocation2 + $0xff0] sm:$0xff]
    %v1401 = vld [vmem:[#allocation2 + $0xff8] sm:$0xff]
    %v1402 = vld [vmem:[%s2] sm:$0xff]
    %v1403 = vld [vmem:[%s2 + $0x8] sm:$0xff]
    %v1406 = vlaneseq
    %v1407 = vshrl.u32 %v1406, 7
    %v1408 = vsub.s32 0, %v1407
    %v1409 = vrot.slane %v1402, %v1408
    %v1410 = vlaneseq
    %v1411 = vshrl.u32 %v1410, 7
    %v1412 = vsub.s32 1, %v1411
    %v1413 = vrot.slane %v1402, %v1412
    %v1414 = vlaneseq
    %v1415 = vshrl.u32 %v1414, 7
    %v1416 = vsub.s32 2, %v1415
    %v1417 = vrot.slane %v1402, %v1416
    %v1418 = vlaneseq
    %v1419 = vshrl.u32 %v1418, 7
    %v1420 = vsub.s32 3, %v1419
    %v1421 = vrot.slane %v1402, %v1420
    %v1422 = vlaneseq
    %v1423 = vshrl.u32 %v1422, 7
    %v1424 = vsub.s32 4, %v1423
    %v1425 = vrot.slane %v1402, %v1424
    %v1426 = vlaneseq
    %v1427 = vshrl.u32 %v1426, 7
    %v1428 = vsub.s32 5, %v1427
    %v1429 = vrot.slane %v1402, %v1428
    %v1430 = vlaneseq
    %v1431 = vshrl.u32 %v1430, 7
    %v1432 = vsub.s32 6, %v1431
    %v1433 = vrot.slane %v1402, %v1432
    %v1434 = vlaneseq
    %v1435 = vshrl.u32 %v1434, 7
    %v1436 = vsub.s32 7, %v1435
    %v1437 = vrot.slane %v1402, %v1436
    %v1438 = vlaneseq
    %v1439 = vshrl.u32 %v1438, 7
    %v1440 = vsub.s32 0, %v1439
    %v1441 = vrot.slane %v1403, %v1440
    %v1442 = vlaneseq
    %v1443 = vshrl.u32 %v1442, 7
    %v1444 = vsub.s32 1, %v1443
    %v1445 = vrot.slane %v1403, %v1444
    %v1446 = vlaneseq
    %v1447 = vshrl.u32 %v1446, 7
    %v1448 = vsub.s32 2, %v1447
    %v1449 = vrot.slane %v1403, %v1448
    %v1450 = vlaneseq
    %v1451 = vshrl.u32 %v1450, 7
    %v1452 = vsub.s32 3, %v1451
    %v1453 = vrot.slane %v1403, %v1452
    %v1454 = vlaneseq
    %v1455 = vshrl.u32 %v1454, 7
    %v1456 = vsub.s32 4, %v1455
    %v1457 = vrot.slane %v1403, %v1456
    %v1458 = vlaneseq
    %v1459 = vshrl.u32 %v1458, 7
    %v1460 = vsub.s32 5, %v1459
    %v1461 = vrot.slane %v1403, %v1460
    %v1462 = vlaneseq
    %v1463 = vshrl.u32 %v1462, 7
    %v1464 = vsub.s32 6, %v1463
    %v1465 = vrot.slane %v1403, %v1464
    %v1466 = vlaneseq
    %v1467 = vshrl.u32 %v1466, 7
    %v1468 = vsub.s32 7, %v1467
    %v1469 = vrot.slane %v1403, %v1468
    %v1998 = vunpack.c.l.b16 %v890
    %v1999 = vunpack.c.h.b16 %v890
    %v2000 = vunpack.c.l.b16 %v891
    %v2001 = vunpack.c.h.b16 %v891
    %v2002 = vunpack.c.l.b16 %v892
    %v2003 = vunpack.c.h.b16 %v892
    %v2004 = vunpack.c.l.b16 %v893
    %v2005 = vunpack.c.h.b16 %v893
    %v2006 = vunpack.c.l.b16 %v894
    %v2007 = vunpack.c.h.b16 %v894
    %v2008 = vunpack.c.l.b16 %v895
    %v2009 = vunpack.c.h.b16 %v895
    %v2010 = vunpack.c.l.b16 %v896
    %v2011 = vunpack.c.h.b16 %v896
    %v2012 = vunpack.c.l.b16 %v897
    %v2013 = vunpack.c.h.b16 %v897
    %v2014 = vunpack.c.l.b16 %v898
    %v2015 = vunpack.c.h.b16 %v898
    %v2016 = vunpack.c.l.b16 %v899
    %v2017 = vunpack.c.h.b16 %v899
    %v2018 = vunpack.c.l.b16 %v900
    %v2019 = vunpack.c.h.b16 %v900
    %v2020 = vunpack.c.l.b16 %v901
    %v2021 = vunpack.c.h.b16 %v901
    %v2022 = vunpack.c.l.b16 %v902
    %v2023 = vunpack.c.h.b16 %v902
    %v2024 = vunpack.c.l.b16 %v903
    %v2025 = vunpack.c.h.b16 %v903
    %v2026 = vunpack.c.l.b16 %v904
    %v2027 = vunpack.c.h.b16 %v904
    %v2028 = vunpack.c.l.b16 %v905
    %v2029 = vunpack.c.h.b16 %v905
    %v2030 = vunpack.c.l.b16 %v906
    %v2031 = vunpack.c.h.b16 %v906
    %v2032 = vunpack.c.l.b16 %v907
    %v2033 = vunpack.c.h.b16 %v907
    %v2034 = vunpack.c.l.b16 %v908
    %v2035 = vunpack.c.h.b16 %v908
    %v2036 = vunpack.c.l.b16 %v909
    %v2037 = vunpack.c.h.b16 %v909
    %v2038 = vunpack.c.l.b16 %v910
    %v2039 = vunpack.c.h.b16 %v910
    %v2040 = vunpack.c.l.b16 %v911
    %v2041 = vunpack.c.h.b16 %v911
    %v2042 = vunpack.c.l.b16 %v912
    %v2043 = vunpack.c.h.b16 %v912
    %v2044 = vunpack.c.l.b16 %v913
    %v2045 = vunpack.c.h.b16 %v913
    %v2046 = vunpack.c.l.b16 %v914
    %v2047 = vunpack.c.h.b16 %v914
    %v2048 = vunpack.c.l.b16 %v915
    %v2049 = vunpack.c.h.b16 %v915
    %v2050 = vunpack.c.l.b16 %v916
    %v2051 = vunpack.c.h.b16 %v916
    %v2052 = vunpack.c.l.b16 %v917
    %v2053 = vunpack.c.h.b16 %v917
    %v2054 = vunpack.c.l.b16 %v918
    %v2055 = vunpack.c.h.b16 %v918
    %v2056 = vunpack.c.l.b16 %v919
    %v2057 = vunpack.c.h.b16 %v919
    %v2058 = vunpack.c.l.b16 %v920
    %v2059 = vunpack.c.h.b16 %v920
    %v2060 = vunpack.c.l.b16 %v921
    %v2061 = vunpack.c.h.b16 %v921
    %v2062 = vunpack.c.l.b16 %v922
    %v2063 = vunpack.c.h.b16 %v922
    %v2064 = vunpack.c.l.b16 %v923
    %v2065 = vunpack.c.h.b16 %v923
    %v2066 = vunpack.c.l.b16 %v924
    %v2067 = vunpack.c.h.b16 %v924
    %v2068 = vunpack.c.l.b16 %v925
    %v2069 = vunpack.c.h.b16 %v925
    %v2070 = vunpack.c.l.b16 %v926
    %v2071 = vunpack.c.h.b16 %v926
    %v2072 = vunpack.c.l.b16 %v927
    %v2073 = vunpack.c.h.b16 %v927
    %v2074 = vunpack.c.l.b16 %v928
    %v2075 = vunpack.c.h.b16 %v928
    %v2076 = vunpack.c.l.b16 %v929
    %v2077 = vunpack.c.h.b16 %v929
    %v2078 = vunpack.c.l.b16 %v930
    %v2079 = vunpack.c.h.b16 %v930
    %v2080 = vunpack.c.l.b16 %v931
    %v2081 = vunpack.c.h.b16 %v931
    %v2082 = vunpack.c.l.b16 %v932
    %v2083 = vunpack.c.h.b16 %v932
    %v2084 = vunpack.c.l.b16 %v933
    %v2085 = vunpack.c.h.b16 %v933
    %v2086 = vunpack.c.l.b16 %v934
    %v2087 = vunpack.c.h.b16 %v934
    %v2088 = vunpack.c.l.b16 %v935
    %v2089 = vunpack.c.h.b16 %v935
    %v2090 = vunpack.c.l.b16 %v936
    %v2091 = vunpack.c.h.b16 %v936
    %v2092 = vunpack.c.l.b16 %v937
    %v2093 = vunpack.c.h.b16 %v937
    %v2094 = vunpack.c.l.b16 %v938
    %v2095 = vunpack.c.h.b16 %v938
    %v2096 = vunpack.c.l.b16 %v939
    %v2097 = vunpack.c.h.b16 %v939
    %v2098 = vunpack.c.l.b16 %v940
    %v2099 = vunpack.c.h.b16 %v940
    %v2100 = vunpack.c.l.b16 %v941
    %v2101 = vunpack.c.h.b16 %v941
    %v2102 = vunpack.c.l.b16 %v942
    %v2103 = vunpack.c.h.b16 %v942
    %v2104 = vunpack.c.l.b16 %v943
    %v2105 = vunpack.c.h.b16 %v943
    %v2106 = vunpack.c.l.b16 %v944
    %v2107 = vunpack.c.h.b16 %v944
    %v2108 = vunpack.c.l.b16 %v945
    %v2109 = vunpack.c.h.b16 %v945
    %v2110 = vunpack.c.l.b16 %v946
    %v2111 = vunpack.c.h.b16 %v946
    %v2112 = vunpack.c.l.b16 %v947
    %v2113 = vunpack.c.h.b16 %v947
    %v2114 = vunpack.c.l.b16 %v948
    %v2115 = vunpack.c.h.b16 %v948
    %v2116 = vunpack.c.l.b16 %v949
    %v2117 = vunpack.c.h.b16 %v949
    %v2118 = vunpack.c.l.b16 %v950
    %v2119 = vunpack.c.h.b16 %v950
    %v2120 = vunpack.c.l.b16 %v951
    %v2121 = vunpack.c.h.b16 %v951
    %v2122 = vunpack.c.l.b16 %v952
    %v2123 = vunpack.c.h.b16 %v952
    %v2124 = vunpack.c.l.b16 %v953
    %v2125 = vunpack.c.h.b16 %v953
    %v2126 = vunpack.c.l.b16 %v954
    %v2127 = vunpack.c.h.b16 %v954
    %v2128 = vunpack.c.l.b16 %v955
    %v2129 = vunpack.c.h.b16 %v955
    %v2130 = vunpack.c.l.b16 %v956
    %v2131 = vunpack.c.h.b16 %v956
    %v2132 = vunpack.c.l.b16 %v957
    %v2133 = vunpack.c.h.b16 %v957
    %v2134 = vunpack.c.l.b16 %v958
    %v2135 = vunpack.c.h.b16 %v958
    %v2136 = vunpack.c.l.b16 %v959
    %v2137 = vunpack.c.h.b16 %v959
    %v2138 = vunpack.c.l.b16 %v960
    %v2139 = vunpack.c.h.b16 %v960
    %v2140 = vunpack.c.l.b16 %v961
    %v2141 = vunpack.c.h.b16 %v961
    %v2142 = vunpack.c.l.b16 %v962
    %v2143 = vunpack.c.h.b16 %v962
    %v2144 = vunpack.c.l.b16 %v963
    %v2145 = vunpack.c.h.b16 %v963
    %v2146 = vunpack.c.l.b16 %v964
    %v2147 = vunpack.c.h.b16 %v964
    %v2148 = vunpack.c.l.b16 %v965
    %v2149 = vunpack.c.h.b16 %v965
    %v2150 = vunpack.c.l.b16 %v966
    %v2151 = vunpack.c.h.b16 %v966
    %v2152 = vunpack.c.l.b16 %v967
    %v2153 = vunpack.c.h.b16 %v967
    %v2154 = vunpack.c.l.b16 %v968
    %v2155 = vunpack.c.h.b16 %v968
    %v2156 = vunpack.c.l.b16 %v969
    %v2157 = vunpack.c.h.b16 %v969
    %v2158 = vunpack.c.l.b16 %v970
    %v2159 = vunpack.c.h.b16 %v970
    %v2160 = vunpack.c.l.b16 %v971
    %v2161 = vunpack.c.h.b16 %v971
    %v2162 = vunpack.c.l.b16 %v972
    %v2163 = vunpack.c.h.b16 %v972
    %v2164 = vunpack.c.l.b16 %v973
    %v2165 = vunpack.c.h.b16 %v973
    %v2166 = vunpack.c.l.b16 %v974
    %v2167 = vunpack.c.h.b16 %v974
    %v2168 = vunpack.c.l.b16 %v975
    %v2169 = vunpack.c.h.b16 %v975
    %v2170 = vunpack.c.l.b16 %v976
    %v2171 = vunpack.c.h.b16 %v976
    %v2172 = vunpack.c.l.b16 %v977
    %v2173 = vunpack.c.h.b16 %v977
    %v2174 = vunpack.c.l.b16 %v978
    %v2175 = vunpack.c.h.b16 %v978
    %v2176 = vunpack.c.l.b16 %v979
    %v2177 = vunpack.c.h.b16 %v979
    %v2178 = vunpack.c.l.b16 %v980
    %v2179 = vunpack.c.h.b16 %v980
    %v2180 = vunpack.c.l.b16 %v981
    %v2181 = vunpack.c.h.b16 %v981
    %v2182 = vunpack.c.l.b16 %v982
    %v2183 = vunpack.c.h.b16 %v982
    %v2184 = vunpack.c.l.b16 %v983
    %v2185 = vunpack.c.h.b16 %v983
    %v2186 = vunpack.c.l.b16 %v984
    %v2187 = vunpack.c.h.b16 %v984
    %v2188 = vunpack.c.l.b16 %v985
    %v2189 = vunpack.c.h.b16 %v985
    %v2190 = vunpack.c.l.b16 %v986
    %v2191 = vunpack.c.h.b16 %v986
    %v2192 = vunpack.c.l.b16 %v987
    %v2193 = vunpack.c.h.b16 %v987
    %v2194 = vunpack.c.l.b16 %v988
    %v2195 = vunpack.c.h.b16 %v988
    %v2196 = vunpack.c.l.b16 %v989
    %v2197 = vunpack.c.h.b16 %v989
    %v2198 = vunpack.c.l.b16 %v990
    %v2199 = vunpack.c.h.b16 %v990
    %v2200 = vunpack.c.l.b16 %v991
    %v2201 = vunpack.c.h.b16 %v991
    %v2202 = vunpack.c.l.b16 %v992
    %v2203 = vunpack.c.h.b16 %v992
    %v2204 = vunpack.c.l.b16 %v993
    %v2205 = vunpack.c.h.b16 %v993
    %v2206 = vunpack.c.l.b16 %v994
    %v2207 = vunpack.c.h.b16 %v994
    %v2208 = vunpack.c.l.b16 %v995
    %v2209 = vunpack.c.h.b16 %v995
    %v2210 = vunpack.c.l.b16 %v996
    %v2211 = vunpack.c.h.b16 %v996
    %v2212 = vunpack.c.l.b16 %v997
    %v2213 = vunpack.c.h.b16 %v997
    %v2214 = vunpack.c.l.b16 %v998
    %v2215 = vunpack.c.h.b16 %v998
    %v2216 = vunpack.c.l.b16 %v999
    %v2217 = vunpack.c.h.b16 %v999
    %v2218 = vunpack.c.l.b16 %v1000
    %v2219 = vunpack.c.h.b16 %v1000
    %v2220 = vunpack.c.l.b16 %v1001
    %v2221 = vunpack.c.h.b16 %v1001
    %v2222 = vunpack.c.l.b16 %v1002
    %v2223 = vunpack.c.h.b16 %v1002
    %v2224 = vunpack.c.l.b16 %v1003
    %v2225 = vunpack.c.h.b16 %v1003
    %v2226 = vunpack.c.l.b16 %v1004
    %v2227 = vunpack.c.h.b16 %v1004
    %v2228 = vunpack.c.l.b16 %v1005
    %v2229 = vunpack.c.h.b16 %v1005
    %v2230 = vunpack.c.l.b16 %v1006
    %v2231 = vunpack.c.h.b16 %v1006
    %v2232 = vunpack.c.l.b16 %v1007
    %v2233 = vunpack.c.h.b16 %v1007
    %v2234 = vunpack.c.l.b16 %v1008
    %v2235 = vunpack.c.h.b16 %v1008
    %v2236 = vunpack.c.l.b16 %v1009
    %v2237 = vunpack.c.h.b16 %v1009
    %v2238 = vunpack.c.l.b16 %v1010
    %v2239 = vunpack.c.h.b16 %v1010
    %v2240 = vunpack.c.l.b16 %v1011
    %v2241 = vunpack.c.h.b16 %v1011
    %v2242 = vunpack.c.l.b16 %v1012
    %v2243 = vunpack.c.h.b16 %v1012
    %v2244 = vunpack.c.l.b16 %v1013
    %v2245 = vunpack.c.h.b16 %v1013
    %v2246 = vunpack.c.l.b16 %v1014
    %v2247 = vunpack.c.h.b16 %v1014
    %v2248 = vunpack.c.l.b16 %v1015
    %v2249 = vunpack.c.h.b16 %v1015
    %v2250 = vunpack.c.l.b16 %v1016
    %v2251 = vunpack.c.h.b16 %v1016
    %v2252 = vunpack.c.l.b16 %v1017
    %v2253 = vunpack.c.h.b16 %v1017
    %v2254 = vunpack.c.l.b16 %v1018
    %v2255 = vunpack.c.h.b16 %v1018
    %v2256 = vunpack.c.l.b16 %v1019
    %v2257 = vunpack.c.h.b16 %v1019
    %v2258 = vunpack.c.l.b16 %v1020
    %v2259 = vunpack.c.h.b16 %v1020
    %v2260 = vunpack.c.l.b16 %v1021
    %v2261 = vunpack.c.h.b16 %v1021
    %v2262 = vunpack.c.l.b16 %v1022
    %v2263 = vunpack.c.h.b16 %v1022
    %v2264 = vunpack.c.l.b16 %v1023
    %v2265 = vunpack.c.h.b16 %v1023
    %v2266 = vunpack.c.l.b16 %v1024
    %v2267 = vunpack.c.h.b16 %v1024
    %v2268 = vunpack.c.l.b16 %v1025
    %v2269 = vunpack.c.h.b16 %v1025
    %v2270 = vunpack.c.l.b16 %v1026
    %v2271 = vunpack.c.h.b16 %v1026
    %v2272 = vunpack.c.l.b16 %v1027
    %v2273 = vunpack.c.h.b16 %v1027
    %v2274 = vunpack.c.l.b16 %v1028
    %v2275 = vunpack.c.h.b16 %v1028
    %v2276 = vunpack.c.l.b16 %v1029
    %v2277 = vunpack.c.h.b16 %v1029
    %v2278 = vunpack.c.l.b16 %v1030
    %v2279 = vunpack.c.h.b16 %v1030
    %v2280 = vunpack.c.l.b16 %v1031
    %v2281 = vunpack.c.h.b16 %v1031
    %v2282 = vunpack.c.l.b16 %v1032
    %v2283 = vunpack.c.h.b16 %v1032
    %v2284 = vunpack.c.l.b16 %v1033
    %v2285 = vunpack.c.h.b16 %v1033
    %v2286 = vunpack.c.l.b16 %v1034
    %v2287 = vunpack.c.h.b16 %v1034
    %v2288 = vunpack.c.l.b16 %v1035
    %v2289 = vunpack.c.h.b16 %v1035
    %v2290 = vunpack.c.l.b16 %v1036
    %v2291 = vunpack.c.h.b16 %v1036
    %v2292 = vunpack.c.l.b16 %v1037
    %v2293 = vunpack.c.h.b16 %v1037
    %v2294 = vunpack.c.l.b16 %v1038
    %v2295 = vunpack.c.h.b16 %v1038
    %v2296 = vunpack.c.l.b16 %v1039
    %v2297 = vunpack.c.h.b16 %v1039
    %v2298 = vunpack.c.l.b16 %v1040
    %v2299 = vunpack.c.h.b16 %v1040
    %v2300 = vunpack.c.l.b16 %v1041
    %v2301 = vunpack.c.h.b16 %v1041
    %v2302 = vunpack.c.l.b16 %v1042
    %v2303 = vunpack.c.h.b16 %v1042
    %v2304 = vunpack.c.l.b16 %v1043
    %v2305 = vunpack.c.h.b16 %v1043
    %v2306 = vunpack.c.l.b16 %v1044
    %v2307 = vunpack.c.h.b16 %v1044
    %v2308 = vunpack.c.l.b16 %v1045
    %v2309 = vunpack.c.h.b16 %v1045
    %v2310 = vunpack.c.l.b16 %v1046
    %v2311 = vunpack.c.h.b16 %v1046
    %v2312 = vunpack.c.l.b16 %v1047
    %v2313 = vunpack.c.h.b16 %v1047
    %v2314 = vunpack.c.l.b16 %v1048
    %v2315 = vunpack.c.h.b16 %v1048
    %v2316 = vunpack.c.l.b16 %v1049
    %v2317 = vunpack.c.h.b16 %v1049
    %v2318 = vunpack.c.l.b16 %v1050
    %v2319 = vunpack.c.h.b16 %v1050
    %v2320 = vunpack.c.l.b16 %v1051
    %v2321 = vunpack.c.h.b16 %v1051
    %v2322 = vunpack.c.l.b16 %v1052
    %v2323 = vunpack.c.h.b16 %v1052
    %v2324 = vunpack.c.l.b16 %v1053
    %v2325 = vunpack.c.h.b16 %v1053
    %v2326 = vunpack.c.l.b16 %v1054
    %v2327 = vunpack.c.h.b16 %v1054
    %v2328 = vunpack.c.l.b16 %v1055
    %v2329 = vunpack.c.h.b16 %v1055
    %v2330 = vunpack.c.l.b16 %v1056
    %v2331 = vunpack.c.h.b16 %v1056
    %v2332 = vunpack.c.l.b16 %v1057
    %v2333 = vunpack.c.h.b16 %v1057
    %v2334 = vunpack.c.l.b16 %v1058
    %v2335 = vunpack.c.h.b16 %v1058
    %v2336 = vunpack.c.l.b16 %v1059
    %v2337 = vunpack.c.h.b16 %v1059
    %v2338 = vunpack.c.l.b16 %v1060
    %v2339 = vunpack.c.h.b16 %v1060
    %v2340 = vunpack.c.l.b16 %v1061
    %v2341 = vunpack.c.h.b16 %v1061
    %v2342 = vunpack.c.l.b16 %v1062
    %v2343 = vunpack.c.h.b16 %v1062
    %v2344 = vunpack.c.l.b16 %v1063
    %v2345 = vunpack.c.h.b16 %v1063
    %v2346 = vunpack.c.l.b16 %v1064
    %v2347 = vunpack.c.h.b16 %v1064
    %v2348 = vunpack.c.l.b16 %v1065
    %v2349 = vunpack.c.h.b16 %v1065
    %v2350 = vunpack.c.l.b16 %v1066
    %v2351 = vunpack.c.h.b16 %v1066
    %v2352 = vunpack.c.l.b16 %v1067
    %v2353 = vunpack.c.h.b16 %v1067
    %v2354 = vunpack.c.l.b16 %v1068
    %v2355 = vunpack.c.h.b16 %v1068
    %v2356 = vunpack.c.l.b16 %v1069
    %v2357 = vunpack.c.h.b16 %v1069
    %v2358 = vunpack.c.l.b16 %v1070
    %v2359 = vunpack.c.h.b16 %v1070
    %v2360 = vunpack.c.l.b16 %v1071
    %v2361 = vunpack.c.h.b16 %v1071
    %v2362 = vunpack.c.l.b16 %v1072
    %v2363 = vunpack.c.h.b16 %v1072
    %v2364 = vunpack.c.l.b16 %v1073
    %v2365 = vunpack.c.h.b16 %v1073
    %v2366 = vunpack.c.l.b16 %v1074
    %v2367 = vunpack.c.h.b16 %v1074
    %v2368 = vunpack.c.l.b16 %v1075
    %v2369 = vunpack.c.h.b16 %v1075
    %v2370 = vunpack.c.l.b16 %v1076
    %v2371 = vunpack.c.h.b16 %v1076
    %v2372 = vunpack.c.l.b16 %v1077
    %v2373 = vunpack.c.h.b16 %v1077
    %v2374 = vunpack.c.l.b16 %v1078
    %v2375 = vunpack.c.h.b16 %v1078
    %v2376 = vunpack.c.l.b16 %v1079
    %v2377 = vunpack.c.h.b16 %v1079
    %v2378 = vunpack.c.l.b16 %v1080
    %v2379 = vunpack.c.h.b16 %v1080
    %v2380 = vunpack.c.l.b16 %v1081
    %v2381 = vunpack.c.h.b16 %v1081
    %v2382 = vunpack.c.l.b16 %v1082
    %v2383 = vunpack.c.h.b16 %v1082
    %v2384 = vunpack.c.l.b16 %v1083
    %v2385 = vunpack.c.h.b16 %v1083
    %v2386 = vunpack.c.l.b16 %v1084
    %v2387 = vunpack.c.h.b16 %v1084
    %v2388 = vunpack.c.l.b16 %v1085
    %v2389 = vunpack.c.h.b16 %v1085
    %v2390 = vunpack.c.l.b16 %v1086
    %v2391 = vunpack.c.h.b16 %v1086
    %v2392 = vunpack.c.l.b16 %v1087
    %v2393 = vunpack.c.h.b16 %v1087
    %v2394 = vunpack.c.l.b16 %v1088
    %v2395 = vunpack.c.h.b16 %v1088
    %v2396 = vunpack.c.l.b16 %v1089
    %v2397 = vunpack.c.h.b16 %v1089
    %v2398 = vunpack.c.l.b16 %v1090
    %v2399 = vunpack.c.h.b16 %v1090
    %v2400 = vunpack.c.l.b16 %v1091
    %v2401 = vunpack.c.h.b16 %v1091
    %v2402 = vunpack.c.l.b16 %v1092
    %v2403 = vunpack.c.h.b16 %v1092
    %v2404 = vunpack.c.l.b16 %v1093
    %v2405 = vunpack.c.h.b16 %v1093
    %v2406 = vunpack.c.l.b16 %v1094
    %v2407 = vunpack.c.h.b16 %v1094
    %v2408 = vunpack.c.l.b16 %v1095
    %v2409 = vunpack.c.h.b16 %v1095
    %v2410 = vunpack.c.l.b16 %v1096
    %v2411 = vunpack.c.h.b16 %v1096
    %v2412 = vunpack.c.l.b16 %v1097
    %v2413 = vunpack.c.h.b16 %v1097
    %v2414 = vunpack.c.l.b16 %v1098
    %v2415 = vunpack.c.h.b16 %v1098
    %v2416 = vunpack.c.l.b16 %v1099
    %v2417 = vunpack.c.h.b16 %v1099
    %v2418 = vunpack.c.l.b16 %v1100
    %v2419 = vunpack.c.h.b16 %v1100
    %v2420 = vunpack.c.l.b16 %v1101
    %v2421 = vunpack.c.h.b16 %v1101
    %v2422 = vunpack.c.l.b16 %v1102
    %v2423 = vunpack.c.h.b16 %v1102
    %v2424 = vunpack.c.l.b16 %v1103
    %v2425 = vunpack.c.h.b16 %v1103
    %v2426 = vunpack.c.l.b16 %v1104
    %v2427 = vunpack.c.h.b16 %v1104
    %v2428 = vunpack.c.l.b16 %v1105
    %v2429 = vunpack.c.h.b16 %v1105
    %v2430 = vunpack.c.l.b16 %v1106
    %v2431 = vunpack.c.h.b16 %v1106
    %v2432 = vunpack.c.l.b16 %v1107
    %v2433 = vunpack.c.h.b16 %v1107
    %v2434 = vunpack.c.l.b16 %v1108
    %v2435 = vunpack.c.h.b16 %v1108
    %v2436 = vunpack.c.l.b16 %v1109
    %v2437 = vunpack.c.h.b16 %v1109
    %v2438 = vunpack.c.l.b16 %v1110
    %v2439 = vunpack.c.h.b16 %v1110
    %v2440 = vunpack.c.l.b16 %v1111
    %v2441 = vunpack.c.h.b16 %v1111
    %v2442 = vunpack.c.l.b16 %v1112
    %v2443 = vunpack.c.h.b16 %v1112
    %v2444 = vunpack.c.l.b16 %v1113
    %v2445 = vunpack.c.h.b16 %v1113
    %v2446 = vunpack.c.l.b16 %v1114
    %v2447 = vunpack.c.h.b16 %v1114
    %v2448 = vunpack.c.l.b16 %v1115
    %v2449 = vunpack.c.h.b16 %v1115
    %v2450 = vunpack.c.l.b16 %v1116
    %v2451 = vunpack.c.h.b16 %v1116
    %v2452 = vunpack.c.l.b16 %v1117
    %v2453 = vunpack.c.h.b16 %v1117
    %v2454 = vunpack.c.l.b16 %v1118
    %v2455 = vunpack.c.h.b16 %v1118
    %v2456 = vunpack.c.l.b16 %v1119
    %v2457 = vunpack.c.h.b16 %v1119
    %v2458 = vunpack.c.l.b16 %v1120
    %v2459 = vunpack.c.h.b16 %v1120
    %v2460 = vunpack.c.l.b16 %v1121
    %v2461 = vunpack.c.h.b16 %v1121
    %v2462 = vunpack.c.l.b16 %v1122
    %v2463 = vunpack.c.h.b16 %v1122
    %v2464 = vunpack.c.l.b16 %v1123
    %v2465 = vunpack.c.h.b16 %v1123
    %v2466 = vunpack.c.l.b16 %v1124
    %v2467 = vunpack.c.h.b16 %v1124
    %v2468 = vunpack.c.l.b16 %v1125
    %v2469 = vunpack.c.h.b16 %v1125
    %v2470 = vunpack.c.l.b16 %v1126
    %v2471 = vunpack.c.h.b16 %v1126
    %v2472 = vunpack.c.l.b16 %v1127
    %v2473 = vunpack.c.h.b16 %v1127
    %v2474 = vunpack.c.l.b16 %v1128
    %v2475 = vunpack.c.h.b16 %v1128
    %v2476 = vunpack.c.l.b16 %v1129
    %v2477 = vunpack.c.h.b16 %v1129
    %v2478 = vunpack.c.l.b16 %v1130
    %v2479 = vunpack.c.h.b16 %v1130
    %v2480 = vunpack.c.l.b16 %v1131
    %v2481 = vunpack.c.h.b16 %v1131
    %v2482 = vunpack.c.l.b16 %v1132
    %v2483 = vunpack.c.h.b16 %v1132
    %v2484 = vunpack.c.l.b16 %v1133
    %v2485 = vunpack.c.h.b16 %v1133
    %v2486 = vunpack.c.l.b16 %v1134
    %v2487 = vunpack.c.h.b16 %v1134
    %v2488 = vunpack.c.l.b16 %v1135
    %v2489 = vunpack.c.h.b16 %v1135
    %v2490 = vunpack.c.l.b16 %v1136
    %v2491 = vunpack.c.h.b16 %v1136
    %v2492 = vunpack.c.l.b16 %v1137
    %v2493 = vunpack.c.h.b16 %v1137
    %v2494 = vunpack.c.l.b16 %v1138
    %v2495 = vunpack.c.h.b16 %v1138
    %v2496 = vunpack.c.l.b16 %v1139
    %v2497 = vunpack.c.h.b16 %v1139
    %v2498 = vunpack.c.l.b16 %v1140
    %v2499 = vunpack.c.h.b16 %v1140
    %v2500 = vunpack.c.l.b16 %v1141
    %v2501 = vunpack.c.h.b16 %v1141
    %v2502 = vunpack.c.l.b16 %v1142
    %v2503 = vunpack.c.h.b16 %v1142
    %v2504 = vunpack.c.l.b16 %v1143
    %v2505 = vunpack.c.h.b16 %v1143
    %v2506 = vunpack.c.l.b16 %v1144
    %v2507 = vunpack.c.h.b16 %v1144
    %v2508 = vunpack.c.l.b16 %v1145
    %v2509 = vunpack.c.h.b16 %v1145
    %v2510 = vunpack.c.l.b16 %v1146
    %v2511 = vunpack.c.h.b16 %v1146
    %v2512 = vunpack.c.l.b16 %v1147
    %v2513 = vunpack.c.h.b16 %v1147
    %v2514 = vunpack.c.l.b16 %v1148
    %v2515 = vunpack.c.h.b16 %v1148
    %v2516 = vunpack.c.l.b16 %v1149
    %v2517 = vunpack.c.h.b16 %v1149
    %v2518 = vunpack.c.l.b16 %v1150
    %v2519 = vunpack.c.h.b16 %v1150
    %v2520 = vunpack.c.l.b16 %v1151
    %v2521 = vunpack.c.h.b16 %v1151
    %v2522 = vunpack.c.l.b16 %v1152
    %v2523 = vunpack.c.h.b16 %v1152
    %v2524 = vunpack.c.l.b16 %v1153
    %v2525 = vunpack.c.h.b16 %v1153
    %v2526 = vunpack.c.l.b16 %v1154
    %v2527 = vunpack.c.h.b16 %v1154
    %v2528 = vunpack.c.l.b16 %v1155
    %v2529 = vunpack.c.h.b16 %v1155
    %v2530 = vunpack.c.l.b16 %v1156
    %v2531 = vunpack.c.h.b16 %v1156
    %v2532 = vunpack.c.l.b16 %v1157
    %v2533 = vunpack.c.h.b16 %v1157
    %v2534 = vunpack.c.l.b16 %v1158
    %v2535 = vunpack.c.h.b16 %v1158
    %v2536 = vunpack.c.l.b16 %v1159
    %v2537 = vunpack.c.h.b16 %v1159
    %v2538 = vunpack.c.l.b16 %v1160
    %v2539 = vunpack.c.h.b16 %v1160
    %v2540 = vunpack.c.l.b16 %v1161
    %v2541 = vunpack.c.h.b16 %v1161
    %v2542 = vunpack.c.l.b16 %v1162
    %v2543 = vunpack.c.h.b16 %v1162
    %v2544 = vunpack.c.l.b16 %v1163
    %v2545 = vunpack.c.h.b16 %v1163
    %v2546 = vunpack.c.l.b16 %v1164
    %v2547 = vunpack.c.h.b16 %v1164
    %v2548 = vunpack.c.l.b16 %v1165
    %v2549 = vunpack.c.h.b16 %v1165
    %v2550 = vunpack.c.l.b16 %v1166
    %v2551 = vunpack.c.h.b16 %v1166
    %v2552 = vunpack.c.l.b16 %v1167
    %v2553 = vunpack.c.h.b16 %v1167
    %v2554 = vunpack.c.l.b16 %v1168
    %v2555 = vunpack.c.h.b16 %v1168
    %v2556 = vunpack.c.l.b16 %v1169
    %v2557 = vunpack.c.h.b16 %v1169
    %v2558 = vunpack.c.l.b16 %v1170
    %v2559 = vunpack.c.h.b16 %v1170
    %v2560 = vunpack.c.l.b16 %v1171
    %v2561 = vunpack.c.h.b16 %v1171
    %v2562 = vunpack.c.l.b16 %v1172
    %v2563 = vunpack.c.h.b16 %v1172
    %v2564 = vunpack.c.l.b16 %v1173
    %v2565 = vunpack.c.h.b16 %v1173
    %v2566 = vunpack.c.l.b16 %v1174
    %v2567 = vunpack.c.h.b16 %v1174
    %v2568 = vunpack.c.l.b16 %v1175
    %v2569 = vunpack.c.h.b16 %v1175
    %v2570 = vunpack.c.l.b16 %v1176
    %v2571 = vunpack.c.h.b16 %v1176
    %v2572 = vunpack.c.l.b16 %v1177
    %v2573 = vunpack.c.h.b16 %v1177
    %v2574 = vunpack.c.l.b16 %v1178
    %v2575 = vunpack.c.h.b16 %v1178
    %v2576 = vunpack.c.l.b16 %v1179
    %v2577 = vunpack.c.h.b16 %v1179
    %v2578 = vunpack.c.l.b16 %v1180
    %v2579 = vunpack.c.h.b16 %v1180
    %v2580 = vunpack.c.l.b16 %v1181
    %v2581 = vunpack.c.h.b16 %v1181
    %v2582 = vunpack.c.l.b16 %v1182
    %v2583 = vunpack.c.h.b16 %v1182
    %v2584 = vunpack.c.l.b16 %v1183
    %v2585 = vunpack.c.h.b16 %v1183
    %v2586 = vunpack.c.l.b16 %v1184
    %v2587 = vunpack.c.h.b16 %v1184
    %v2588 = vunpack.c.l.b16 %v1185
    %v2589 = vunpack.c.h.b16 %v1185
    %v2590 = vunpack.c.l.b16 %v1186
    %v2591 = vunpack.c.h.b16 %v1186
    %v2592 = vunpack.c.l.b16 %v1187
    %v2593 = vunpack.c.h.b16 %v1187
    %v2594 = vunpack.c.l.b16 %v1188
    %v2595 = vunpack.c.h.b16 %v1188
    %v2596 = vunpack.c.l.b16 %v1189
    %v2597 = vunpack.c.h.b16 %v1189
    %v2598 = vunpack.c.l.b16 %v1190
    %v2599 = vunpack.c.h.b16 %v1190
    %v2600 = vunpack.c.l.b16 %v1191
    %v2601 = vunpack.c.h.b16 %v1191
    %v2602 = vunpack.c.l.b16 %v1192
    %v2603 = vunpack.c.h.b16 %v1192
    %v2604 = vunpack.c.l.b16 %v1193
    %v2605 = vunpack.c.h.b16 %v1193
    %v2606 = vunpack.c.l.b16 %v1194
    %v2607 = vunpack.c.h.b16 %v1194
    %v2608 = vunpack.c.l.b16 %v1195
    %v2609 = vunpack.c.h.b16 %v1195
    %v2610 = vunpack.c.l.b16 %v1196
    %v2611 = vunpack.c.h.b16 %v1196
    %v2612 = vunpack.c.l.b16 %v1197
    %v2613 = vunpack.c.h.b16 %v1197
    %v2614 = vunpack.c.l.b16 %v1198
    %v2615 = vunpack.c.h.b16 %v1198
    %v2616 = vunpack.c.l.b16 %v1199
    %v2617 = vunpack.c.h.b16 %v1199
    %v2618 = vunpack.c.l.b16 %v1200
    %v2619 = vunpack.c.h.b16 %v1200
    %v2620 = vunpack.c.l.b16 %v1201
    %v2621 = vunpack.c.h.b16 %v1201
    %v2622 = vunpack.c.l.b16 %v1202
    %v2623 = vunpack.c.h.b16 %v1202
    %v2624 = vunpack.c.l.b16 %v1203
    %v2625 = vunpack.c.h.b16 %v1203
    %v2626 = vunpack.c.l.b16 %v1204
    %v2627 = vunpack.c.h.b16 %v1204
    %v2628 = vunpack.c.l.b16 %v1205
    %v2629 = vunpack.c.h.b16 %v1205
    %v2630 = vunpack.c.l.b16 %v1206
    %v2631 = vunpack.c.h.b16 %v1206
    %v2632 = vunpack.c.l.b16 %v1207
    %v2633 = vunpack.c.h.b16 %v1207
    %v2634 = vunpack.c.l.b16 %v1208
    %v2635 = vunpack.c.h.b16 %v1208
    %v2636 = vunpack.c.l.b16 %v1209
    %v2637 = vunpack.c.h.b16 %v1209
    %v2638 = vunpack.c.l.b16 %v1210
    %v2639 = vunpack.c.h.b16 %v1210
    %v2640 = vunpack.c.l.b16 %v1211
    %v2641 = vunpack.c.h.b16 %v1211
    %v2642 = vunpack.c.l.b16 %v1212
    %v2643 = vunpack.c.h.b16 %v1212
    %v2644 = vunpack.c.l.b16 %v1213
    %v2645 = vunpack.c.h.b16 %v1213
    %v2646 = vunpack.c.l.b16 %v1214
    %v2647 = vunpack.c.h.b16 %v1214
    %v2648 = vunpack.c.l.b16 %v1215
    %v2649 = vunpack.c.h.b16 %v1215
    %v2650 = vunpack.c.l.b16 %v1216
    %v2651 = vunpack.c.h.b16 %v1216
    %v2652 = vunpack.c.l.b16 %v1217
    %v2653 = vunpack.c.h.b16 %v1217
    %v2654 = vunpack.c.l.b16 %v1218
    %v2655 = vunpack.c.h.b16 %v1218
    %v2656 = vunpack.c.l.b16 %v1219
    %v2657 = vunpack.c.h.b16 %v1219
    %v2658 = vunpack.c.l.b16 %v1220
    %v2659 = vunpack.c.h.b16 %v1220
    %v2660 = vunpack.c.l.b16 %v1221
    %v2661 = vunpack.c.h.b16 %v1221
    %v2662 = vunpack.c.l.b16 %v1222
    %v2663 = vunpack.c.h.b16 %v1222
    %v2664 = vunpack.c.l.b16 %v1223
    %v2665 = vunpack.c.h.b16 %v1223
    %v2666 = vunpack.c.l.b16 %v1224
    %v2667 = vunpack.c.h.b16 %v1224
    %v2668 = vunpack.c.l.b16 %v1225
    %v2669 = vunpack.c.h.b16 %v1225
    %v2670 = vunpack.c.l.b16 %v1226
    %v2671 = vunpack.c.h.b16 %v1226
    %v2672 = vunpack.c.l.b16 %v1227
    %v2673 = vunpack.c.h.b16 %v1227
    %v2674 = vunpack.c.l.b16 %v1228
    %v2675 = vunpack.c.h.b16 %v1228
    %v2676 = vunpack.c.l.b16 %v1229
    %v2677 = vunpack.c.h.b16 %v1229
    %v2678 = vunpack.c.l.b16 %v1230
    %v2679 = vunpack.c.h.b16 %v1230
    %v2680 = vunpack.c.l.b16 %v1231
    %v2681 = vunpack.c.h.b16 %v1231
    %v2682 = vunpack.c.l.b16 %v1232
    %v2683 = vunpack.c.h.b16 %v1232
    %v2684 = vunpack.c.l.b16 %v1233
    %v2685 = vunpack.c.h.b16 %v1233
    %v2686 = vunpack.c.l.b16 %v1234
    %v2687 = vunpack.c.h.b16 %v1234
    %v2688 = vunpack.c.l.b16 %v1235
    %v2689 = vunpack.c.h.b16 %v1235
    %v2690 = vunpack.c.l.b16 %v1236
    %v2691 = vunpack.c.h.b16 %v1236
    %v2692 = vunpack.c.l.b16 %v1237
    %v2693 = vunpack.c.h.b16 %v1237
    %v2694 = vunpack.c.l.b16 %v1238
    %v2695 = vunpack.c.h.b16 %v1238
    %v2696 = vunpack.c.l.b16 %v1239
    %v2697 = vunpack.c.h.b16 %v1239
    %v2698 = vunpack.c.l.b16 %v1240
    %v2699 = vunpack.c.h.b16 %v1240
    %v2700 = vunpack.c.l.b16 %v1241
    %v2701 = vunpack.c.h.b16 %v1241
    %v2702 = vunpack.c.l.b16 %v1242
    %v2703 = vunpack.c.h.b16 %v1242
    %v2704 = vunpack.c.l.b16 %v1243
    %v2705 = vunpack.c.h.b16 %v1243
    %v2706 = vunpack.c.l.b16 %v1244
    %v2707 = vunpack.c.h.b16 %v1244
    %v2708 = vunpack.c.l.b16 %v1245
    %v2709 = vunpack.c.h.b16 %v1245
    %v2710 = vunpack.c.l.b16 %v1246
    %v2711 = vunpack.c.h.b16 %v1246
    %v2712 = vunpack.c.l.b16 %v1247
    %v2713 = vunpack.c.h.b16 %v1247
    %v2714 = vunpack.c.l.b16 %v1248
    %v2715 = vunpack.c.h.b16 %v1248
    %v2716 = vunpack.c.l.b16 %v1249
    %v2717 = vunpack.c.h.b16 %v1249
    %v2718 = vunpack.c.l.b16 %v1250
    %v2719 = vunpack.c.h.b16 %v1250
    %v2720 = vunpack.c.l.b16 %v1251
    %v2721 = vunpack.c.h.b16 %v1251
    %v2722 = vunpack.c.l.b16 %v1252
    %v2723 = vunpack.c.h.b16 %v1252
    %v2724 = vunpack.c.l.b16 %v1253
    %v2725 = vunpack.c.h.b16 %v1253
    %v2726 = vunpack.c.l.b16 %v1254
    %v2727 = vunpack.c.h.b16 %v1254
    %v2728 = vunpack.c.l.b16 %v1255
    %v2729 = vunpack.c.h.b16 %v1255
    %v2730 = vunpack.c.l.b16 %v1256
    %v2731 = vunpack.c.h.b16 %v1256
    %v2732 = vunpack.c.l.b16 %v1257
    %v2733 = vunpack.c.h.b16 %v1257
    %v2734 = vunpack.c.l.b16 %v1258
    %v2735 = vunpack.c.h.b16 %v1258
    %v2736 = vunpack.c.l.b16 %v1259
    %v2737 = vunpack.c.h.b16 %v1259
    %v2738 = vunpack.c.l.b16 %v1260
    %v2739 = vunpack.c.h.b16 %v1260
    %v2740 = vunpack.c.l.b16 %v1261
    %v2741 = vunpack.c.h.b16 %v1261
    %v2742 = vunpack.c.l.b16 %v1262
    %v2743 = vunpack.c.h.b16 %v1262
    %v2744 = vunpack.c.l.b16 %v1263
    %v2745 = vunpack.c.h.b16 %v1263
    %v2746 = vunpack.c.l.b16 %v1264
    %v2747 = vunpack.c.h.b16 %v1264
    %v2748 = vunpack.c.l.b16 %v1265
    %v2749 = vunpack.c.h.b16 %v1265
    %v2750 = vunpack.c.l.b16 %v1266
    %v2751 = vunpack.c.h.b16 %v1266
    %v2752 = vunpack.c.l.b16 %v1267
    %v2753 = vunpack.c.h.b16 %v1267
    %v2754 = vunpack.c.l.b16 %v1268
    %v2755 = vunpack.c.h.b16 %v1268
    %v2756 = vunpack.c.l.b16 %v1269
    %v2757 = vunpack.c.h.b16 %v1269
    %v2758 = vunpack.c.l.b16 %v1270
    %v2759 = vunpack.c.h.b16 %v1270
    %v2760 = vunpack.c.l.b16 %v1271
    %v2761 = vunpack.c.h.b16 %v1271
    %v2762 = vunpack.c.l.b16 %v1272
    %v2763 = vunpack.c.h.b16 %v1272
    %v2764 = vunpack.c.l.b16 %v1273
    %v2765 = vunpack.c.h.b16 %v1273
    %v2766 = vunpack.c.l.b16 %v1274
    %v2767 = vunpack.c.h.b16 %v1274
    %v2768 = vunpack.c.l.b16 %v1275
    %v2769 = vunpack.c.h.b16 %v1275
    %v2770 = vunpack.c.l.b16 %v1276
    %v2771 = vunpack.c.h.b16 %v1276
    %v2772 = vunpack.c.l.b16 %v1277
    %v2773 = vunpack.c.h.b16 %v1277
    %v2774 = vunpack.c.l.b16 %v1278
    %v2775 = vunpack.c.h.b16 %v1278
    %v2776 = vunpack.c.l.b16 %v1279
    %v2777 = vunpack.c.h.b16 %v1279
    %v2778 = vunpack.c.l.b16 %v1280
    %v2779 = vunpack.c.h.b16 %v1280
    %v2780 = vunpack.c.l.b16 %v1281
    %v2781 = vunpack.c.h.b16 %v1281
    %v2782 = vunpack.c.l.b16 %v1282
    %v2783 = vunpack.c.h.b16 %v1282
    %v2784 = vunpack.c.l.b16 %v1283
    %v2785 = vunpack.c.h.b16 %v1283
    %v2786 = vunpack.c.l.b16 %v1284
    %v2787 = vunpack.c.h.b16 %v1284
    %v2788 = vunpack.c.l.b16 %v1285
    %v2789 = vunpack.c.h.b16 %v1285
    %v2790 = vunpack.c.l.b16 %v1286
    %v2791 = vunpack.c.h.b16 %v1286
    %v2792 = vunpack.c.l.b16 %v1287
    %v2793 = vunpack.c.h.b16 %v1287
    %v2794 = vunpack.c.l.b16 %v1288
    %v2795 = vunpack.c.h.b16 %v1288
    %v2796 = vunpack.c.l.b16 %v1289
    %v2797 = vunpack.c.h.b16 %v1289
    %v2798 = vunpack.c.l.b16 %v1290
    %v2799 = vunpack.c.h.b16 %v1290
    %v2800 = vunpack.c.l.b16 %v1291
    %v2801 = vunpack.c.h.b16 %v1291
    %v2802 = vunpack.c.l.b16 %v1292
    %v2803 = vunpack.c.h.b16 %v1292
    %v2804 = vunpack.c.l.b16 %v1293
    %v2805 = vunpack.c.h.b16 %v1293
    %v2806 = vunpack.c.l.b16 %v1294
    %v2807 = vunpack.c.h.b16 %v1294
    %v2808 = vunpack.c.l.b16 %v1295
    %v2809 = vunpack.c.h.b16 %v1295
    %v2810 = vunpack.c.l.b16 %v1296
    %v2811 = vunpack.c.h.b16 %v1296
    %v2812 = vunpack.c.l.b16 %v1297
    %v2813 = vunpack.c.h.b16 %v1297
    %v2814 = vunpack.c.l.b16 %v1298
    %v2815 = vunpack.c.h.b16 %v1298
    %v2816 = vunpack.c.l.b16 %v1299
    %v2817 = vunpack.c.h.b16 %v1299
    %v2818 = vunpack.c.l.b16 %v1300
    %v2819 = vunpack.c.h.b16 %v1300
    %v2820 = vunpack.c.l.b16 %v1301
    %v2821 = vunpack.c.h.b16 %v1301
    %v2822 = vunpack.c.l.b16 %v1302
    %v2823 = vunpack.c.h.b16 %v1302
    %v2824 = vunpack.c.l.b16 %v1303
    %v2825 = vunpack.c.h.b16 %v1303
    %v2826 = vunpack.c.l.b16 %v1304
    %v2827 = vunpack.c.h.b16 %v1304
    %v2828 = vunpack.c.l.b16 %v1305
    %v2829 = vunpack.c.h.b16 %v1305
    %v2830 = vunpack.c.l.b16 %v1306
    %v2831 = vunpack.c.h.b16 %v1306
    %v2832 = vunpack.c.l.b16 %v1307
    %v2833 = vunpack.c.h.b16 %v1307
    %v2834 = vunpack.c.l.b16 %v1308
    %v2835 = vunpack.c.h.b16 %v1308
    %v2836 = vunpack.c.l.b16 %v1309
    %v2837 = vunpack.c.h.b16 %v1309
    %v2838 = vunpack.c.l.b16 %v1310
    %v2839 = vunpack.c.h.b16 %v1310
    %v2840 = vunpack.c.l.b16 %v1311
    %v2841 = vunpack.c.h.b16 %v1311
    %v2842 = vunpack.c.l.b16 %v1312
    %v2843 = vunpack.c.h.b16 %v1312
    %v2844 = vunpack.c.l.b16 %v1313
    %v2845 = vunpack.c.h.b16 %v1313
    %v2846 = vunpack.c.l.b16 %v1314
    %v2847 = vunpack.c.h.b16 %v1314
    %v2848 = vunpack.c.l.b16 %v1315
    %v2849 = vunpack.c.h.b16 %v1315
    %v2850 = vunpack.c.l.b16 %v1316
    %v2851 = vunpack.c.h.b16 %v1316
    %v2852 = vunpack.c.l.b16 %v1317
    %v2853 = vunpack.c.h.b16 %v1317
    %v2854 = vunpack.c.l.b16 %v1318
    %v2855 = vunpack.c.h.b16 %v1318
    %v2856 = vunpack.c.l.b16 %v1319
    %v2857 = vunpack.c.h.b16 %v1319
    %v2858 = vunpack.c.l.b16 %v1320
    %v2859 = vunpack.c.h.b16 %v1320
    %v2860 = vunpack.c.l.b16 %v1321
    %v2861 = vunpack.c.h.b16 %v1321
    %v2862 = vunpack.c.l.b16 %v1322
    %v2863 = vunpack.c.h.b16 %v1322
    %v2864 = vunpack.c.l.b16 %v1323
    %v2865 = vunpack.c.h.b16 %v1323
    %v2866 = vunpack.c.l.b16 %v1324
    %v2867 = vunpack.c.h.b16 %v1324
    %v2868 = vunpack.c.l.b16 %v1325
    %v2869 = vunpack.c.h.b16 %v1325
    %v2870 = vunpack.c.l.b16 %v1326
    %v2871 = vunpack.c.h.b16 %v1326
    %v2872 = vunpack.c.l.b16 %v1327
    %v2873 = vunpack.c.h.b16 %v1327
    %v2874 = vunpack.c.l.b16 %v1328
    %v2875 = vunpack.c.h.b16 %v1328
    %v2876 = vunpack.c.l.b16 %v1329
    %v2877 = vunpack.c.h.b16 %v1329
    %v2878 = vunpack.c.l.b16 %v1330
    %v2879 = vunpack.c.h.b16 %v1330
    %v2880 = vunpack.c.l.b16 %v1331
    %v2881 = vunpack.c.h.b16 %v1331
    %v2882 = vunpack.c.l.b16 %v1332
    %v2883 = vunpack.c.h.b16 %v1332
    %v2884 = vunpack.c.l.b16 %v1333
    %v2885 = vunpack.c.h.b16 %v1333
    %v2886 = vunpack.c.l.b16 %v1334
    %v2887 = vunpack.c.h.b16 %v1334
    %v2888 = vunpack.c.l.b16 %v1335
    %v2889 = vunpack.c.h.b16 %v1335
    %v2890 = vunpack.c.l.b16 %v1336
    %v2891 = vunpack.c.h.b16 %v1336
    %v2892 = vunpack.c.l.b16 %v1337
    %v2893 = vunpack.c.h.b16 %v1337
    %v2894 = vunpack.c.l.b16 %v1338
    %v2895 = vunpack.c.h.b16 %v1338
    %v2896 = vunpack.c.l.b16 %v1339
    %v2897 = vunpack.c.h.b16 %v1339
    %v2898 = vunpack.c.l.b16 %v1340
    %v2899 = vunpack.c.h.b16 %v1340
    %v2900 = vunpack.c.l.b16 %v1341
    %v2901 = vunpack.c.h.b16 %v1341
    %v2902 = vunpack.c.l.b16 %v1342
    %v2903 = vunpack.c.h.b16 %v1342
    %v2904 = vunpack.c.l.b16 %v1343
    %v2905 = vunpack.c.h.b16 %v1343
    %v2906 = vunpack.c.l.b16 %v1344
    %v2907 = vunpack.c.h.b16 %v1344
    %v2908 = vunpack.c.l.b16 %v1345
    %v2909 = vunpack.c.h.b16 %v1345
    %v2910 = vunpack.c.l.b16 %v1346
    %v2911 = vunpack.c.h.b16 %v1346
    %v2912 = vunpack.c.l.b16 %v1347
    %v2913 = vunpack.c.h.b16 %v1347
    %v2914 = vunpack.c.l.b16 %v1348
    %v2915 = vunpack.c.h.b16 %v1348
    %v2916 = vunpack.c.l.b16 %v1349
    %v2917 = vunpack.c.h.b16 %v1349
    %v2918 = vunpack.c.l.b16 %v1350
    %v2919 = vunpack.c.h.b16 %v1350
    %v2920 = vunpack.c.l.b16 %v1351
    %v2921 = vunpack.c.h.b16 %v1351
    %v2922 = vunpack.c.l.b16 %v1352
    %v2923 = vunpack.c.h.b16 %v1352
    %v2924 = vunpack.c.l.b16 %v1353
    %v2925 = vunpack.c.h.b16 %v1353
    %v2926 = vunpack.c.l.b16 %v1354
    %v2927 = vunpack.c.h.b16 %v1354
    %v2928 = vunpack.c.l.b16 %v1355
    %v2929 = vunpack.c.h.b16 %v1355
    %v2930 = vunpack.c.l.b16 %v1356
    %v2931 = vunpack.c.h.b16 %v1356
    %v2932 = vunpack.c.l.b16 %v1357
    %v2933 = vunpack.c.h.b16 %v1357
    %v2934 = vunpack.c.l.b16 %v1358
    %v2935 = vunpack.c.h.b16 %v1358
    %v2936 = vunpack.c.l.b16 %v1359
    %v2937 = vunpack.c.h.b16 %v1359
    %v2938 = vunpack.c.l.b16 %v1360
    %v2939 = vunpack.c.h.b16 %v1360
    %v2940 = vunpack.c.l.b16 %v1361
    %v2941 = vunpack.c.h.b16 %v1361
    %v2942 = vunpack.c.l.b16 %v1362
    %v2943 = vunpack.c.h.b16 %v1362
    %v2944 = vunpack.c.l.b16 %v1363
    %v2945 = vunpack.c.h.b16 %v1363
    %v2946 = vunpack.c.l.b16 %v1364
    %v2947 = vunpack.c.h.b16 %v1364
    %v2948 = vunpack.c.l.b16 %v1365
    %v2949 = vunpack.c.h.b16 %v1365
    %v2950 = vunpack.c.l.b16 %v1366
    %v2951 = vunpack.c.h.b16 %v1366
    %v2952 = vunpack.c.l.b16 %v1367
    %v2953 = vunpack.c.h.b16 %v1367
    %v2954 = vunpack.c.l.b16 %v1368
    %v2955 = vunpack.c.h.b16 %v1368
    %v2956 = vunpack.c.l.b16 %v1369
    %v2957 = vunpack.c.h.b16 %v1369
    %v2958 = vunpack.c.l.b16 %v1370
    %v2959 = vunpack.c.h.b16 %v1370
    %v2960 = vunpack.c.l.b16 %v1371
    %v2961 = vunpack.c.h.b16 %v1371
    %v2962 = vunpack.c.l.b16 %v1372
    %v2963 = vunpack.c.h.b16 %v1372
    %v2964 = vunpack.c.l.b16 %v1373
    %v2965 = vunpack.c.h.b16 %v1373
    %v2966 = vunpack.c.l.b16 %v1374
    %v2967 = vunpack.c.h.b16 %v1374
    %v2968 = vunpack.c.l.b16 %v1375
    %v2969 = vunpack.c.h.b16 %v1375
    %v2970 = vunpack.c.l.b16 %v1376
    %v2971 = vunpack.c.h.b16 %v1376
    %v2972 = vunpack.c.l.b16 %v1377
    %v2973 = vunpack.c.h.b16 %v1377
    %v2974 = vunpack.c.l.b16 %v1378
    %v2975 = vunpack.c.h.b16 %v1378
    %v2976 = vunpack.c.l.b16 %v1379
    %v2977 = vunpack.c.h.b16 %v1379
    %v2978 = vunpack.c.l.b16 %v1380
    %v2979 = vunpack.c.h.b16 %v1380
    %v2980 = vunpack.c.l.b16 %v1381
    %v2981 = vunpack.c.h.b16 %v1381
    %v2982 = vunpack.c.l.b16 %v1382
    %v2983 = vunpack.c.h.b16 %v1382
    %v2984 = vunpack.c.l.b16 %v1383
    %v2985 = vunpack.c.h.b16 %v1383
    %v2986 = vunpack.c.l.b16 %v1384
    %v2987 = vunpack.c.h.b16 %v1384
    %v2988 = vunpack.c.l.b16 %v1385
    %v2989 = vunpack.c.h.b16 %v1385
    %v2990 = vunpack.c.l.b16 %v1386
    %v2991 = vunpack.c.h.b16 %v1386
    %v2992 = vunpack.c.l.b16 %v1387
    %v2993 = vunpack.c.h.b16 %v1387
    %v2994 = vunpack.c.l.b16 %v1388
    %v2995 = vunpack.c.h.b16 %v1388
    %v2996 = vunpack.c.l.b16 %v1389
    %v2997 = vunpack.c.h.b16 %v1389
    %v2998 = vunpack.c.l.b16 %v1390
    %v2999 = vunpack.c.h.b16 %v1390
    %v3000 = vunpack.c.l.b16 %v1391
    %v3001 = vunpack.c.h.b16 %v1391
    %v3002 = vunpack.c.l.b16 %v1392
    %v3003 = vunpack.c.h.b16 %v1392
    %v3004 = vunpack.c.l.b16 %v1393
    %v3005 = vunpack.c.h.b16 %v1393
    %v3006 = vunpack.c.l.b16 %v1394
    %v3007 = vunpack.c.h.b16 %v1394
    %v3008 = vunpack.c.l.b16 %v1395
    %v3009 = vunpack.c.h.b16 %v1395
    %v3010 = vunpack.c.l.b16 %v1396
    %v3011 = vunpack.c.h.b16 %v1396
    %v3012 = vunpack.c.l.b16 %v1397
    %v3013 = vunpack.c.h.b16 %v1397
    %v3014 = vunpack.c.l.b16 %v1398
    %v3015 = vunpack.c.h.b16 %v1398
    %v3016 = vunpack.c.l.b16 %v1399
    %v3017 = vunpack.c.h.b16 %v1399
    %v3018 = vunpack.c.l.b16 %v1400
    %v3019 = vunpack.c.h.b16 %v1400
    %v3020 = vunpack.c.l.b16 %v1401
    %v3021 = vunpack.c.h.b16 %v1401
    %v3022 = vpack.c.b16 %v2014, %v1998
    %v3023 = vpack.c.b16 %v2015, %v1999
    %v3024 = vpack.c.b16 %v2016, %v2000
    %v3025 = vpack.c.b16 %v2017, %v2001
    %v3026 = vpack.c.b16 %v2018, %v2002
    %v3027 = vpack.c.b16 %v2019, %v2003
    %v3028 = vpack.c.b16 %v2020, %v2004
    %v3029 = vpack.c.b16 %v2021, %v2005
    %v3030 = vpack.c.b16 %v2022, %v2006
    %v3031 = vpack.c.b16 %v2023, %v2007
    %v3032 = vpack.c.b16 %v2024, %v2008
    %v3033 = vpack.c.b16 %v2025, %v2009
    %v3034 = vpack.c.b16 %v2026, %v2010
    %v3035 = vpack.c.b16 %v2027, %v2011
    %v3036 = vpack.c.b16 %v2028, %v2012
    %v3037 = vpack.c.b16 %v2029, %v2013
    %v3038 = vpack.c.b16 %v2046, %v2030
    %v3039 = vpack.c.b16 %v2047, %v2031
    %v3040 = vpack.c.b16 %v2048, %v2032
    %v3041 = vpack.c.b16 %v2049, %v2033
    %v3042 = vpack.c.b16 %v2050, %v2034
    %v3043 = vpack.c.b16 %v2051, %v2035
    %v3044 = vpack.c.b16 %v2052, %v2036
    %v3045 = vpack.c.b16 %v2053, %v2037
    %v3046 = vpack.c.b16 %v2054, %v2038
    %v3047 = vpack.c.b16 %v2055, %v2039
    %v3048 = vpack.c.b16 %v2056, %v2040
    %v3049 = vpack.c.b16 %v2057, %v2041
    %v3050 = vpack.c.b16 %v2058, %v2042
    %v3051 = vpack.c.b16 %v2059, %v2043
    %v3052 = vpack.c.b16 %v2060, %v2044
    %v3053 = vpack.c.b16 %v2061, %v2045
    %v3054 = vpack.c.b16 %v2078, %v2062
    %v3055 = vpack.c.b16 %v2079, %v2063
    %v3056 = vpack.c.b16 %v2080, %v2064
    %v3057 = vpack.c.b16 %v2081, %v2065
    %v3058 = vpack.c.b16 %v2082, %v2066
    %v3059 = vpack.c.b16 %v2083, %v2067
    %v3060 = vpack.c.b16 %v2084, %v2068
    %v3061 = vpack.c.b16 %v2085, %v2069
    %v3062 = vpack.c.b16 %v2086, %v2070
    %v3063 = vpack.c.b16 %v2087, %v2071
    %v3064 = vpack.c.b16 %v2088, %v2072
    %v3065 = vpack.c.b16 %v2089, %v2073
    %v3066 = vpack.c.b16 %v2090, %v2074
    %v3067 = vpack.c.b16 %v2091, %v2075
    %v3068 = vpack.c.b16 %v2092, %v2076
    %v3069 = vpack.c.b16 %v2093, %v2077
    %v3070 = vpack.c.b16 %v2110, %v2094
    %v3071 = vpack.c.b16 %v2111, %v2095
    %v3072 = vpack.c.b16 %v2112, %v2096
    %v3073 = vpack.c.b16 %v2113, %v2097
    %v3074 = vpack.c.b16 %v2114, %v2098
    %v3075 = vpack.c.b16 %v2115, %v2099
    %v3076 = vpack.c.b16 %v2116, %v2100
    %v3077 = vpack.c.b16 %v2117, %v2101
    %v3078 = vpack.c.b16 %v2118, %v2102
    %v3079 = vpack.c.b16 %v2119, %v2103
    %v3080 = vpack.c.b16 %v2120, %v2104
    %v3081 = vpack.c.b16 %v2121, %v2105
    %v3082 = vpack.c.b16 %v2122, %v2106
    %v3083 = vpack.c.b16 %v2123, %v2107
    %v3084 = vpack.c.b16 %v2124, %v2108
    %v3085 = vpack.c.b16 %v2125, %v2109
    %v3086 = vpack.c.b16 %v2142, %v2126
    %v3087 = vpack.c.b16 %v2143, %v2127
    %v3088 = vpack.c.b16 %v2144, %v2128
    %v3089 = vpack.c.b16 %v2145, %v2129
    %v3090 = vpack.c.b16 %v2146, %v2130
    %v3091 = vpack.c.b16 %v2147, %v2131
    %v3092 = vpack.c.b16 %v2148, %v2132
    %v3093 = vpack.c.b16 %v2149, %v2133
    %v3094 = vpack.c.b16 %v2150, %v2134
    %v3095 = vpack.c.b16 %v2151, %v2135
    %v3096 = vpack.c.b16 %v2152, %v2136
    %v3097 = vpack.c.b16 %v2153, %v2137
    %v3098 = vpack.c.b16 %v2154, %v2138
    %v3099 = vpack.c.b16 %v2155, %v2139
    %v3100 = vpack.c.b16 %v2156, %v2140
    %v3101 = vpack.c.b16 %v2157, %v2141
    %v3102 = vpack.c.b16 %v2174, %v2158
    %v3103 = vpack.c.b16 %v2175, %v2159
    %v3104 = vpack.c.b16 %v2176, %v2160
    %v3105 = vpack.c.b16 %v2177, %v2161
    %v3106 = vpack.c.b16 %v2178, %v2162
    %v3107 = vpack.c.b16 %v2179, %v2163
    %v3108 = vpack.c.b16 %v2180, %v2164
    %v3109 = vpack.c.b16 %v2181, %v2165
    %v3110 = vpack.c.b16 %v2182, %v2166
    %v3111 = vpack.c.b16 %v2183, %v2167
    %v3112 = vpack.c.b16 %v2184, %v2168
    %v3113 = vpack.c.b16 %v2185, %v2169
    %v3114 = vpack.c.b16 %v2186, %v2170
    %v3115 = vpack.c.b16 %v2187, %v2171
    %v3116 = vpack.c.b16 %v2188, %v2172
    %v3117 = vpack.c.b16 %v2189, %v2173
    %v3118 = vpack.c.b16 %v2206, %v2190
    %v3119 = vpack.c.b16 %v2207, %v2191
    %v3120 = vpack.c.b16 %v2208, %v2192
    %v3121 = vpack.c.b16 %v2209, %v2193
    %v3122 = vpack.c.b16 %v2210, %v2194
    %v3123 = vpack.c.b16 %v2211, %v2195
    %v3124 = vpack.c.b16 %v2212, %v2196
    %v3125 = vpack.c.b16 %v2213, %v2197
    %v3126 = vpack.c.b16 %v2214, %v2198
    %v3127 = vpack.c.b16 %v2215, %v2199
    %v3128 = vpack.c.b16 %v2216, %v2200
    %v3129 = vpack.c.b16 %v2217, %v2201
    %v3130 = vpack.c.b16 %v2218, %v2202
    %v3131 = vpack.c.b16 %v2219, %v2203
    %v3132 = vpack.c.b16 %v2220, %v2204
    %v3133 = vpack.c.b16 %v2221, %v2205
    %v3134 = vpack.c.b16 %v2238, %v2222
    %v3135 = vpack.c.b16 %v2239, %v2223
    %v3136 = vpack.c.b16 %v2240, %v2224
    %v3137 = vpack.c.b16 %v2241, %v2225
    %v3138 = vpack.c.b16 %v2242, %v2226
    %v3139 = vpack.c.b16 %v2243, %v2227
    %v3140 = vpack.c.b16 %v2244, %v2228
    %v3141 = vpack.c.b16 %v2245, %v2229
    %v3142 = vpack.c.b16 %v2246, %v2230
    %v3143 = vpack.c.b16 %v2247, %v2231
    %v3144 = vpack.c.b16 %v2248, %v2232
    %v3145 = vpack.c.b16 %v2249, %v2233
    %v3146 = vpack.c.b16 %v2250, %v2234
    %v3147 = vpack.c.b16 %v2251, %v2235
    %v3148 = vpack.c.b16 %v2252, %v2236
    %v3149 = vpack.c.b16 %v2253, %v2237
    %v3150 = vpack.c.b16 %v2270, %v2254
    %v3151 = vpack.c.b16 %v2271, %v2255
    %v3152 = vpack.c.b16 %v2272, %v2256
    %v3153 = vpack.c.b16 %v2273, %v2257
    %v3154 = vpack.c.b16 %v2274, %v2258
    %v3155 = vpack.c.b16 %v2275, %v2259
    %v3156 = vpack.c.b16 %v2276, %v2260
    %v3157 = vpack.c.b16 %v2277, %v2261
    %v3158 = vpack.c.b16 %v2278, %v2262
    %v3159 = vpack.c.b16 %v2279, %v2263
    %v3160 = vpack.c.b16 %v2280, %v2264
    %v3161 = vpack.c.b16 %v2281, %v2265
    %v3162 = vpack.c.b16 %v2282, %v2266
    %v3163 = vpack.c.b16 %v2283, %v2267
    %v3164 = vpack.c.b16 %v2284, %v2268
    %v3165 = vpack.c.b16 %v2285, %v2269
    %v3166 = vpack.c.b16 %v2302, %v2286
    %v3167 = vpack.c.b16 %v2303, %v2287
    %v3168 = vpack.c.b16 %v2304, %v2288
    %v3169 = vpack.c.b16 %v2305, %v2289
    %v3170 = vpack.c.b16 %v2306, %v2290
    %v3171 = vpack.c.b16 %v2307, %v2291
    %v3172 = vpack.c.b16 %v2308, %v2292
    %v3173 = vpack.c.b16 %v2309, %v2293
    %v3174 = vpack.c.b16 %v2310, %v2294
    %v3175 = vpack.c.b16 %v2311, %v2295
    %v3176 = vpack.c.b16 %v2312, %v2296
    %v3177 = vpack.c.b16 %v2313, %v2297
    %v3178 = vpack.c.b16 %v2314, %v2298
    %v3179 = vpack.c.b16 %v2315, %v2299
    %v3180 = vpack.c.b16 %v2316, %v2300
    %v3181 = vpack.c.b16 %v2317, %v2301
    %v3182 = vpack.c.b16 %v2334, %v2318
    %v3183 = vpack.c.b16 %v2335, %v2319
    %v3184 = vpack.c.b16 %v2336, %v2320
    %v3185 = vpack.c.b16 %v2337, %v2321
    %v3186 = vpack.c.b16 %v2338, %v2322
    %v3187 = vpack.c.b16 %v2339, %v2323
    %v3188 = vpack.c.b16 %v2340, %v2324
    %v3189 = vpack.c.b16 %v2341, %v2325
    %v3190 = vpack.c.b16 %v2342, %v2326
    %v3191 = vpack.c.b16 %v2343, %v2327
    %v3192 = vpack.c.b16 %v2344, %v2328
    %v3193 = vpack.c.b16 %v2345, %v2329
    %v3194 = vpack.c.b16 %v2346, %v2330
    %v3195 = vpack.c.b16 %v2347, %v2331
    %v3196 = vpack.c.b16 %v2348, %v2332
    %v3197 = vpack.c.b16 %v2349, %v2333
    %v3198 = vpack.c.b16 %v2366, %v2350
    %v3199 = vpack.c.b16 %v2367, %v2351
    %v3200 = vpack.c.b16 %v2368, %v2352
    %v3201 = vpack.c.b16 %v2369, %v2353
    %v3202 = vpack.c.b16 %v2370, %v2354
    %v3203 = vpack.c.b16 %v2371, %v2355
    %v3204 = vpack.c.b16 %v2372, %v2356
    %v3205 = vpack.c.b16 %v2373, %v2357
    %v3206 = vpack.c.b16 %v2374, %v2358
    %v3207 = vpack.c.b16 %v2375, %v2359
    %v3208 = vpack.c.b16 %v2376, %v2360
    %v3209 = vpack.c.b16 %v2377, %v2361
    %v3210 = vpack.c.b16 %v2378, %v2362
    %v3211 = vpack.c.b16 %v2379, %v2363
    %v3212 = vpack.c.b16 %v2380, %v2364
    %v3213 = vpack.c.b16 %v2381, %v2365
    %v3214 = vpack.c.b16 %v2398, %v2382
    %v3215 = vpack.c.b16 %v2399, %v2383
    %v3216 = vpack.c.b16 %v2400, %v2384
    %v3217 = vpack.c.b16 %v2401, %v2385
    %v3218 = vpack.c.b16 %v2402, %v2386
    %v3219 = vpack.c.b16 %v2403, %v2387
    %v3220 = vpack.c.b16 %v2404, %v2388
    %v3221 = vpack.c.b16 %v2405, %v2389
    %v3222 = vpack.c.b16 %v2406, %v2390
    %v3223 = vpack.c.b16 %v2407, %v2391
    %v3224 = vpack.c.b16 %v2408, %v2392
    %v3225 = vpack.c.b16 %v2409, %v2393
    %v3226 = vpack.c.b16 %v2410, %v2394
    %v3227 = vpack.c.b16 %v2411, %v2395
    %v3228 = vpack.c.b16 %v2412, %v2396
    %v3229 = vpack.c.b16 %v2413, %v2397
    %v3230 = vpack.c.b16 %v2430, %v2414
    %v3231 = vpack.c.b16 %v2431, %v2415
    %v3232 = vpack.c.b16 %v2432, %v2416
    %v3233 = vpack.c.b16 %v2433, %v2417
    %v3234 = vpack.c.b16 %v2434, %v2418
    %v3235 = vpack.c.b16 %v2435, %v2419
    %v3236 = vpack.c.b16 %v2436, %v2420
    %v3237 = vpack.c.b16 %v2437, %v2421
    %v3238 = vpack.c.b16 %v2438, %v2422
    %v3239 = vpack.c.b16 %v2439, %v2423
    %v3240 = vpack.c.b16 %v2440, %v2424
    %v3241 = vpack.c.b16 %v2441, %v2425
    %v3242 = vpack.c.b16 %v2442, %v2426
    %v3243 = vpack.c.b16 %v2443, %v2427
    %v3244 = vpack.c.b16 %v2444, %v2428
    %v3245 = vpack.c.b16 %v2445, %v2429
    %v3246 = vpack.c.b16 %v2462, %v2446
    %v3247 = vpack.c.b16 %v2463, %v2447
    %v3248 = vpack.c.b16 %v2464, %v2448
    %v3249 = vpack.c.b16 %v2465, %v2449
    %v3250 = vpack.c.b16 %v2466, %v2450
    %v3251 = vpack.c.b16 %v2467, %v2451
    %v3252 = vpack.c.b16 %v2468, %v2452
    %v3253 = vpack.c.b16 %v2469, %v2453
    %v3254 = vpack.c.b16 %v2470, %v2454
    %v3255 = vpack.c.b16 %v2471, %v2455
    %v3256 = vpack.c.b16 %v2472, %v2456
    %v3257 = vpack.c.b16 %v2473, %v2457
    %v3258 = vpack.c.b16 %v2474, %v2458
    %v3259 = vpack.c.b16 %v2475, %v2459
    %v3260 = vpack.c.b16 %v2476, %v2460
    %v3261 = vpack.c.b16 %v2477, %v2461
    %v3262 = vpack.c.b16 %v2494, %v2478
    %v3263 = vpack.c.b16 %v2495, %v2479
    %v3264 = vpack.c.b16 %v2496, %v2480
    %v3265 = vpack.c.b16 %v2497, %v2481
    %v3266 = vpack.c.b16 %v2498, %v2482
    %v3267 = vpack.c.b16 %v2499, %v2483
    %v3268 = vpack.c.b16 %v2500, %v2484
    %v3269 = vpack.c.b16 %v2501, %v2485
    %v3270 = vpack.c.b16 %v2502, %v2486
    %v3271 = vpack.c.b16 %v2503, %v2487
    %v3272 = vpack.c.b16 %v2504, %v2488
    %v3273 = vpack.c.b16 %v2505, %v2489
    %v3274 = vpack.c.b16 %v2506, %v2490
    %v3275 = vpack.c.b16 %v2507, %v2491
    %v3276 = vpack.c.b16 %v2508, %v2492
    %v3277 = vpack.c.b16 %v2509, %v2493
    %v3278 = vpack.c.b16 %v2526, %v2510
    %v3279 = vpack.c.b16 %v2527, %v2511
    %v3280 = vpack.c.b16 %v2528, %v2512
    %v3281 = vpack.c.b16 %v2529, %v2513
    %v3282 = vpack.c.b16 %v2530, %v2514
    %v3283 = vpack.c.b16 %v2531, %v2515
    %v3284 = vpack.c.b16 %v2532, %v2516
    %v3285 = vpack.c.b16 %v2533, %v2517
    %v3286 = vpack.c.b16 %v2534, %v2518
    %v3287 = vpack.c.b16 %v2535, %v2519
    %v3288 = vpack.c.b16 %v2536, %v2520
    %v3289 = vpack.c.b16 %v2537, %v2521
    %v3290 = vpack.c.b16 %v2538, %v2522
    %v3291 = vpack.c.b16 %v2539, %v2523
    %v3292 = vpack.c.b16 %v2540, %v2524
    %v3293 = vpack.c.b16 %v2541, %v2525
    %v3294 = vpack.c.b16 %v2558, %v2542
    %v3295 = vpack.c.b16 %v2559, %v2543
    %v3296 = vpack.c.b16 %v2560, %v2544
    %v3297 = vpack.c.b16 %v2561, %v2545
    %v3298 = vpack.c.b16 %v2562, %v2546
    %v3299 = vpack.c.b16 %v2563, %v2547
    %v3300 = vpack.c.b16 %v2564, %v2548
    %v3301 = vpack.c.b16 %v2565, %v2549
    %v3302 = vpack.c.b16 %v2566, %v2550
    %v3303 = vpack.c.b16 %v2567, %v2551
    %v3304 = vpack.c.b16 %v2568, %v2552
    %v3305 = vpack.c.b16 %v2569, %v2553
    %v3306 = vpack.c.b16 %v2570, %v2554
    %v3307 = vpack.c.b16 %v2571, %v2555
    %v3308 = vpack.c.b16 %v2572, %v2556
    %v3309 = vpack.c.b16 %v2573, %v2557
    %v3310 = vpack.c.b16 %v2590, %v2574
    %v3311 = vpack.c.b16 %v2591, %v2575
    %v3312 = vpack.c.b16 %v2592, %v2576
    %v3313 = vpack.c.b16 %v2593, %v2577
    %v3314 = vpack.c.b16 %v2594, %v2578
    %v3315 = vpack.c.b16 %v2595, %v2579
    %v3316 = vpack.c.b16 %v2596, %v2580
    %v3317 = vpack.c.b16 %v2597, %v2581
    %v3318 = vpack.c.b16 %v2598, %v2582
    %v3319 = vpack.c.b16 %v2599, %v2583
    %v3320 = vpack.c.b16 %v2600, %v2584
    %v3321 = vpack.c.b16 %v2601, %v2585
    %v3322 = vpack.c.b16 %v2602, %v2586
    %v3323 = vpack.c.b16 %v2603, %v2587
    %v3324 = vpack.c.b16 %v2604, %v2588
    %v3325 = vpack.c.b16 %v2605, %v2589
    %v3326 = vpack.c.b16 %v2622, %v2606
    %v3327 = vpack.c.b16 %v2623, %v2607
    %v3328 = vpack.c.b16 %v2624, %v2608
    %v3329 = vpack.c.b16 %v2625, %v2609
    %v3330 = vpack.c.b16 %v2626, %v2610
    %v3331 = vpack.c.b16 %v2627, %v2611
    %v3332 = vpack.c.b16 %v2628, %v2612
    %v3333 = vpack.c.b16 %v2629, %v2613
    %v3334 = vpack.c.b16 %v2630, %v2614
    %v3335 = vpack.c.b16 %v2631, %v2615
    %v3336 = vpack.c.b16 %v2632, %v2616
    %v3337 = vpack.c.b16 %v2633, %v2617
    %v3338 = vpack.c.b16 %v2634, %v2618
    %v3339 = vpack.c.b16 %v2635, %v2619
    %v3340 = vpack.c.b16 %v2636, %v2620
    %v3341 = vpack.c.b16 %v2637, %v2621
    %v3342 = vpack.c.b16 %v2654, %v2638
    %v3343 = vpack.c.b16 %v2655, %v2639
    %v3344 = vpack.c.b16 %v2656, %v2640
    %v3345 = vpack.c.b16 %v2657, %v2641
    %v3346 = vpack.c.b16 %v2658, %v2642
    %v3347 = vpack.c.b16 %v2659, %v2643
    %v3348 = vpack.c.b16 %v2660, %v2644
    %v3349 = vpack.c.b16 %v2661, %v2645
    %v3350 = vpack.c.b16 %v2662, %v2646
    %v3351 = vpack.c.b16 %v2663, %v2647
    %v3352 = vpack.c.b16 %v2664, %v2648
    %v3353 = vpack.c.b16 %v2665, %v2649
    %v3354 = vpack.c.b16 %v2666, %v2650
    %v3355 = vpack.c.b16 %v2667, %v2651
    %v3356 = vpack.c.b16 %v2668, %v2652
    %v3357 = vpack.c.b16 %v2669, %v2653
    %v3358 = vpack.c.b16 %v2686, %v2670
    %v3359 = vpack.c.b16 %v2687, %v2671
    %v3360 = vpack.c.b16 %v2688, %v2672
    %v3361 = vpack.c.b16 %v2689, %v2673
    %v3362 = vpack.c.b16 %v2690, %v2674
    %v3363 = vpack.c.b16 %v2691, %v2675
    %v3364 = vpack.c.b16 %v2692, %v2676
    %v3365 = vpack.c.b16 %v2693, %v2677
    %v3366 = vpack.c.b16 %v2694, %v2678
    %v3367 = vpack.c.b16 %v2695, %v2679
    %v3368 = vpack.c.b16 %v2696, %v2680
    %v3369 = vpack.c.b16 %v2697, %v2681
    %v3370 = vpack.c.b16 %v2698, %v2682
    %v3371 = vpack.c.b16 %v2699, %v2683
    %v3372 = vpack.c.b16 %v2700, %v2684
    %v3373 = vpack.c.b16 %v2701, %v2685
    %v3374 = vpack.c.b16 %v2718, %v2702
    %v3375 = vpack.c.b16 %v2719, %v2703
    %v3376 = vpack.c.b16 %v2720, %v2704
    %v3377 = vpack.c.b16 %v2721, %v2705
    %v3378 = vpack.c.b16 %v2722, %v2706
    %v3379 = vpack.c.b16 %v2723, %v2707
    %v3380 = vpack.c.b16 %v2724, %v2708
    %v3381 = vpack.c.b16 %v2725, %v2709
    %v3382 = vpack.c.b16 %v2726, %v2710
    %v3383 = vpack.c.b16 %v2727, %v2711
    %v3384 = vpack.c.b16 %v2728, %v2712
    %v3385 = vpack.c.b16 %v2729, %v2713
    %v3386 = vpack.c.b16 %v2730, %v2714
    %v3387 = vpack.c.b16 %v2731, %v2715
    %v3388 = vpack.c.b16 %v2732, %v2716
    %v3389 = vpack.c.b16 %v2733, %v2717
    %v3390 = vpack.c.b16 %v2750, %v2734
    %v3391 = vpack.c.b16 %v2751, %v2735
    %v3392 = vpack.c.b16 %v2752, %v2736
    %v3393 = vpack.c.b16 %v2753, %v2737
    %v3394 = vpack.c.b16 %v2754, %v2738
    %v3395 = vpack.c.b16 %v2755, %v2739
    %v3396 = vpack.c.b16 %v2756, %v2740
    %v3397 = vpack.c.b16 %v2757, %v2741
    %v3398 = vpack.c.b16 %v2758, %v2742
    %v3399 = vpack.c.b16 %v2759, %v2743
    %v3400 = vpack.c.b16 %v2760, %v2744
    %v3401 = vpack.c.b16 %v2761, %v2745
    %v3402 = vpack.c.b16 %v2762, %v2746
    %v3403 = vpack.c.b16 %v2763, %v2747
    %v3404 = vpack.c.b16 %v2764, %v2748
    %v3405 = vpack.c.b16 %v2765, %v2749
    %v3406 = vpack.c.b16 %v2782, %v2766
    %v3407 = vpack.c.b16 %v2783, %v2767
    %v3408 = vpack.c.b16 %v2784, %v2768
    %v3409 = vpack.c.b16 %v2785, %v2769
    %v3410 = vpack.c.b16 %v2786, %v2770
    %v3411 = vpack.c.b16 %v2787, %v2771
    %v3412 = vpack.c.b16 %v2788, %v2772
    %v3413 = vpack.c.b16 %v2789, %v2773
    %v3414 = vpack.c.b16 %v2790, %v2774
    %v3415 = vpack.c.b16 %v2791, %v2775
    %v3416 = vpack.c.b16 %v2792, %v2776
    %v3417 = vpack.c.b16 %v2793, %v2777
    %v3418 = vpack.c.b16 %v2794, %v2778
    %v3419 = vpack.c.b16 %v2795, %v2779
    %v3420 = vpack.c.b16 %v2796, %v2780
    %v3421 = vpack.c.b16 %v2797, %v2781
    %v3422 = vpack.c.b16 %v2814, %v2798
    %v3423 = vpack.c.b16 %v2815, %v2799
    %v3424 = vpack.c.b16 %v2816, %v2800
    %v3425 = vpack.c.b16 %v2817, %v2801
    %v3426 = vpack.c.b16 %v2818, %v2802
    %v3427 = vpack.c.b16 %v2819, %v2803
    %v3428 = vpack.c.b16 %v2820, %v2804
    %v3429 = vpack.c.b16 %v2821, %v2805
    %v3430 = vpack.c.b16 %v2822, %v2806
    %v3431 = vpack.c.b16 %v2823, %v2807
    %v3432 = vpack.c.b16 %v2824, %v2808
    %v3433 = vpack.c.b16 %v2825, %v2809
    %v3434 = vpack.c.b16 %v2826, %v2810
    %v3435 = vpack.c.b16 %v2827, %v2811
    %v3436 = vpack.c.b16 %v2828, %v2812
    %v3437 = vpack.c.b16 %v2829, %v2813
    %v3438 = vpack.c.b16 %v2846, %v2830
    %v3439 = vpack.c.b16 %v2847, %v2831
    %v3440 = vpack.c.b16 %v2848, %v2832
    %v3441 = vpack.c.b16 %v2849, %v2833
    %v3442 = vpack.c.b16 %v2850, %v2834
    %v3443 = vpack.c.b16 %v2851, %v2835
    %v3444 = vpack.c.b16 %v2852, %v2836
    %v3445 = vpack.c.b16 %v2853, %v2837
    %v3446 = vpack.c.b16 %v2854, %v2838
    %v3447 = vpack.c.b16 %v2855, %v2839
    %v3448 = vpack.c.b16 %v2856, %v2840
    %v3449 = vpack.c.b16 %v2857, %v2841
    %v3450 = vpack.c.b16 %v2858, %v2842
    %v3451 = vpack.c.b16 %v2859, %v2843
    %v3452 = vpack.c.b16 %v2860, %v2844
    %v3453 = vpack.c.b16 %v2861, %v2845
    %v3454 = vpack.c.b16 %v2878, %v2862
    %v3455 = vpack.c.b16 %v2879, %v2863
    %v3456 = vpack.c.b16 %v2880, %v2864
    %v3457 = vpack.c.b16 %v2881, %v2865
    %v3458 = vpack.c.b16 %v2882, %v2866
    %v3459 = vpack.c.b16 %v2883, %v2867
    %v3460 = vpack.c.b16 %v2884, %v2868
    %v3461 = vpack.c.b16 %v2885, %v2869
    %v3462 = vpack.c.b16 %v2886, %v2870
    %v3463 = vpack.c.b16 %v2887, %v2871
    %v3464 = vpack.c.b16 %v2888, %v2872
    %v3465 = vpack.c.b16 %v2889, %v2873
    %v3466 = vpack.c.b16 %v2890, %v2874
    %v3467 = vpack.c.b16 %v2891, %v2875
    %v3468 = vpack.c.b16 %v2892, %v2876
    %v3469 = vpack.c.b16 %v2893, %v2877
    %v3470 = vpack.c.b16 %v2910, %v2894
    %v3471 = vpack.c.b16 %v2911, %v2895
    %v3472 = vpack.c.b16 %v2912, %v2896
    %v3473 = vpack.c.b16 %v2913, %v2897
    %v3474 = vpack.c.b16 %v2914, %v2898
    %v3475 = vpack.c.b16 %v2915, %v2899
    %v3476 = vpack.c.b16 %v2916, %v2900
    %v3477 = vpack.c.b16 %v2917, %v2901
    %v3478 = vpack.c.b16 %v2918, %v2902
    %v3479 = vpack.c.b16 %v2919, %v2903
    %v3480 = vpack.c.b16 %v2920, %v2904
    %v3481 = vpack.c.b16 %v2921, %v2905
    %v3482 = vpack.c.b16 %v2922, %v2906
    %v3483 = vpack.c.b16 %v2923, %v2907
    %v3484 = vpack.c.b16 %v2924, %v2908
    %v3485 = vpack.c.b16 %v2925, %v2909
    %v3486 = vpack.c.b16 %v2942, %v2926
    %v3487 = vpack.c.b16 %v2943, %v2927
    %v3488 = vpack.c.b16 %v2944, %v2928
    %v3489 = vpack.c.b16 %v2945, %v2929
    %v3490 = vpack.c.b16 %v2946, %v2930
    %v3491 = vpack.c.b16 %v2947, %v2931
    %v3492 = vpack.c.b16 %v2948, %v2932
    %v3493 = vpack.c.b16 %v2949, %v2933
    %v3494 = vpack.c.b16 %v2950, %v2934
    %v3495 = vpack.c.b16 %v2951, %v2935
    %v3496 = vpack.c.b16 %v2952, %v2936
    %v3497 = vpack.c.b16 %v2953, %v2937
    %v3498 = vpack.c.b16 %v2954, %v2938
    %v3499 = vpack.c.b16 %v2955, %v2939
    %v3500 = vpack.c.b16 %v2956, %v2940
    %v3501 = vpack.c.b16 %v2957, %v2941
    %v3502 = vpack.c.b16 %v2974, %v2958
    %v3503 = vpack.c.b16 %v2975, %v2959
    %v3504 = vpack.c.b16 %v2976, %v2960
    %v3505 = vpack.c.b16 %v2977, %v2961
    %v3506 = vpack.c.b16 %v2978, %v2962
    %v3507 = vpack.c.b16 %v2979, %v2963
    %v3508 = vpack.c.b16 %v2980, %v2964
    %v3509 = vpack.c.b16 %v2981, %v2965
    %v3510 = vpack.c.b16 %v2982, %v2966
    %v3511 = vpack.c.b16 %v2983, %v2967
    %v3512 = vpack.c.b16 %v2984, %v2968
    %v3513 = vpack.c.b16 %v2985, %v2969
    %v3514 = vpack.c.b16 %v2986, %v2970
    %v3515 = vpack.c.b16 %v2987, %v2971
    %v3516 = vpack.c.b16 %v2988, %v2972
    %v3517 = vpack.c.b16 %v2989, %v2973
    %v3518 = vpack.c.b16 %v3006, %v2990
    %v3519 = vpack.c.b16 %v3007, %v2991
    %v3520 = vpack.c.b16 %v3008, %v2992
    %v3521 = vpack.c.b16 %v3009, %v2993
    %v3522 = vpack.c.b16 %v3010, %v2994
    %v3523 = vpack.c.b16 %v3011, %v2995
    %v3524 = vpack.c.b16 %v3012, %v2996
    %v3525 = vpack.c.b16 %v3013, %v2997
    %v3526 = vpack.c.b16 %v3014, %v2998
    %v3527 = vpack.c.b16 %v3015, %v2999
    %v3528 = vpack.c.b16 %v3016, %v3000
    %v3529 = vpack.c.b16 %v3017, %v3001
    %v3530 = vpack.c.b16 %v3018, %v3002
    %v3531 = vpack.c.b16 %v3019, %v3003
    %v3532 = vpack.c.b16 %v3020, %v3004
    %v3533 = vpack.c.b16 %v3021, %v3005
    %4046 = vmatprep.subr.bf16.mxu0 %v3023
    %4047 = vmatpush1.bf16.msra.mxu0 %v3022
    %4048 = vmatprep.subr.bf16.mxu0 %v3039
    %4049 = vmatpush1.bf16.msra.mxu0 %v3038
    %4050 = vmatprep.subr.bf16.mxu0 %v3055
    %4051 = vmatpush1.bf16.msra.mxu0 %v3054
    %4052 = vmatprep.subr.bf16.mxu0 %v3071
    %4053 = vmatpush1.bf16.msra.mxu0 %v3070
    %4054 = vmatprep.subr.bf16.mxu0 %v3087
    %4055 = vmatpush1.bf16.msra.mxu0 %v3086
    %4056 = vmatprep.subr.bf16.mxu0 %v3103
    %4057 = vmatpush1.bf16.msra.mxu0 %v3102
    %4058 = vmatprep.subr.bf16.mxu0 %v3119
    %4059 = vmatpush1.bf16.msra.mxu0 %v3118
    %4060 = vmatprep.subr.bf16.mxu0 %v3135
    %4061 = vmatpush1.bf16.msra.mxu0 %v3134
    %4062 = vmatprep.subr.bf16.mxu0 %v3151
    %4063 = vmatpush1.bf16.msra.mxu0 %v3150
    %4064 = vmatprep.subr.bf16.mxu0 %v3167
    %4065 = vmatpush1.bf16.msra.mxu0 %v3166
    %4066 = vmatprep.subr.bf16.mxu0 %v3183
    %4067 = vmatpush1.bf16.msra.mxu0 %v3182
    %4068 = vmatprep.subr.bf16.mxu0 %v3199
    %4069 = vmatpush1.bf16.msra.mxu0 %v3198
    %4070 = vmatprep.subr.bf16.mxu0 %v3215
    %4071 = vmatpush1.bf16.msra.mxu0 %v3214
    %4072 = vmatprep.subr.bf16.mxu0 %v3231
    %4073 = vmatpush1.bf16.msra.mxu0 %v3230
    %4074 = vmatprep.subr.bf16.mxu0 %v3247
    %4075 = vmatpush1.bf16.msra.mxu0 %v3246
    %4076 = vmatprep.subr.bf16.mxu0 %v3263
    %4077 = vmatpush1.bf16.msra.mxu0 %v3262
    %4078 = vmatprep.mubr.bf16.mxu0 %v839
    %4079 = vmatmul.mubr.bf16.gmra.mrb[0].mxu0 %v838
    %v4080 = vpop.f32.mrb[0].mxu0
    %v4081 = vadd.f32 %v1409, %v4080
    %v4082 = vpop.f32.mrb[0].mxu0
    %v4083 = vadd.f32 %v1413, %v4082
    %v4084 = vpop.f32.mrb[0].mxu0
    %v4085 = vadd.f32 %v1409, %v4084
    %v4086 = vpop.f32.mrb[0].mxu0
    %v4087 = vadd.f32 %v1413, %v4086
    %4088 = vmatprep.mubr.bf16.mxu0 %v843
    %4089 = vmatmul.mubr.bf16.gmra.mrb[0].mxu0 %v842
    %v4090 = vpop.f32.mrb[0].mxu0
    %v4091 = vadd.f32 %v1409, %v4090
    %v4092 = vpop.f32.mrb[0].mxu0
    %v4093 = vadd.f32 %v1413, %v4092
    %v4094 = vpop.f32.mrb[0].mxu0
    %v4095 = vadd.f32 %v1409, %v4094
    %v4096 = vpop.f32.mrb[0].mxu0
    %v4097 = vadd.f32 %v1413, %v4096
    %4098 = vmatprep.mubr.bf16.mxu0 %v847
    %4099 = vmatmul.mubr.bf16.gmra.mrb[0].mxu0 %v846
    %v4100 = vpop.f32.mrb[0].mxu0
    %v4101 = vadd.f32 %v1409, %v4100
    %v4102 = vpop.f32.mrb[0].mxu0
    %v4103 = vadd.f32 %v1413, %v4102
    %v4104 = vpop.f32.mrb[0].mxu0
    %v4105 = vadd.f32 %v1409, %v4104
    %v4106 = vpop.f32.mrb[0].mxu0
    %v4107 = vadd.f32 %v1413, %v4106
    %4108 = vmatprep.mubr.bf16.mxu0 %v851
    %4109 = vmatmul.mubr.bf16.gmra.mrb[0].mxu0 %v850
    %v4110 = vpop.f32.mrb[0].mxu0
    %v4111 = vadd.f32 %v1409, %v4110
    %v4112 = vpop.f32.mrb[0].mxu0
    %v4113 = vadd.f32 %v1413, %v4112
    %v4114 = vpop.f32.mrb[0].mxu0
    %v4115 = vadd.f32 %v1409, %v4114
    %v4116 = vpop.f32.mrb[0].mxu0
    %v4117 = vadd.f32 %v1413, %v4116
    %4118 = vmatprep.mubr.bf16.mxu0 %v855
    %4119 = vmatmul.mubr.bf16.gmra.mrb[0].mxu0 %v854
    %v4120 = vpop.f32.mrb[0].mxu0
    %v4121 = vadd.f32 %v1409, %v4120
    %v4122 = vpop.f32.mrb[0].mxu0
    %v4123 = vadd.f32 %v1413, %v4122
    %v4124 = vpop.f32.mrb[0].mxu0
    %v4125 = vadd.f32 %v1409, %v4124
    %v4126 = vpop.f32.mrb[0].mxu0
    %v4127 = vadd.f32 %v1413, %v4126
    %4128 = vmatprep.mubr.bf16.mxu0 %v859
    %4129 = vmatmul.mubr.bf16.gmra.mrb[0].mxu0 %v858
    %v4130 = vpop.f32.mrb[0].mxu0
    %v4131 = vadd.f32 %v1409, %v4130
    %v4132 = vpop.f32.mrb[0].mxu0
    %v4133 = vadd.f32 %v1413, %v4132
    %v4134 = vpop.f32.mrb[0].mxu0
    %v4135 = vadd.f32 %v1409, %v4134
    %v4136 = vpop.f32.mrb[0].mxu0
    %v4137 = vadd.f32 %v1413, %v4136
    %4138 = vmatprep.mubr.bf16.mxu0 %v863
    %4139 = vmatmul.mubr.bf16.gmra.mrb[0].mxu0 %v862
    %v4140 = vpop.f32.mrb[0].mxu0
    %v4141 = vadd.f32 %v1409, %v4140
    %v4142 = vpop.f32.mrb[0].mxu0
    %v4143 = vadd.f32 %v1413, %v4142
    %v4144 = vpop.f32.mrb[0].mxu0
    %v4145 = vadd.f32 %v1409, %v4144
    %v4146 = vpop.f32.mrb[0].mxu0
    %v4147 = vadd.f32 %v1413, %v4146
    %4148 = vmatprep.mubr.bf16.mxu0 %v867
    %4149 = vmatmul.mubr.bf16.gmra.mrb[0].mxu0 %v866
    %v4150 = vpop.f32.mrb[0].mxu0
    %v4151 = vadd.f32 %v1409, %v4150
    %v4152 = vpop.f32.mrb[0].mxu0
    %v4153 = vadd.f32 %v1413, %v4152
    %v4154 = vpop.f32.mrb[0].mxu0
    %v4155 = vadd.f32 %v1409, %v4154
    %v4156 = vpop.f32.mrb[0].mxu0
    %v4157 = vadd.f32 %v1413, %v4156
    %4158 = vmatprep.mubr.bf16.mxu0 %v871
    %4159 = vmatmul.mubr.bf16.gmra.mrb[0].mxu0 %v870
    %v4160 = vpop.f32.mrb[0].mxu0
    %v4161 = vadd.f32 %v1409, %v4160
    %v4162 = vpop.f32.mrb[0].mxu0
    %v4163 = vadd.f32 %v1413, %v4162
    %v4164 = vpop.f32.mrb[0].mxu0
    %v4165 = vadd.f32 %v1409, %v4164
    %v4166 = vpop.f32.mrb[0].mxu0
    %v4167 = vadd.f32 %v1413, %v4166
    %4168 = vmatprep.mubr.bf16.mxu0 %v875
    %4169 = vmatmul.mubr.bf16.gmra.mrb[0].mxu0 %v874
    %v4170 = vpop.f32.mrb[0].mxu0
    %v4171 = vadd.f32 %v1409, %v4170
    %v4172 = vpop.f32.mrb[0].mxu0
    %v4173 = vadd.f32 %v1413, %v4172
    %v4174 = vpop.f32.mrb[0].mxu0
    %v4175 = vadd.f32 %v1409, %v4174
    %v4176 = vpop.f32.mrb[0].mxu0
    %v4177 = vadd.f32 %v1413, %v4176
    %4178 = vmatprep.mubr.bf16.mxu0 %v879
    %4179 = vmatmul.mubr.bf16.gmra.mrb[0].mxu0 %v878
    %v4180 = vpop.f32.mrb[0].mxu0
    %v4181 = vadd.f32 %v1409, %v4180
    %v4182 = vpop.f32.mrb[0].mxu0
    %v4183 = vadd.f32 %v1413, %v4182
    %v4184 = vpop.f32.mrb[0].mxu0
    %v4185 = vadd.f32 %v1409, %v4184
    %v4186 = vpop.f32.mrb[0].mxu0
    %v4187 = vadd.f32 %v1413, %v4186
    %4188 = vmatprep.mubr.bf16.mxu0 %v883
    %4189 = vmatmul.mubr.bf16.gmra.mrb[0].mxu0 %v882
    %v4190 = vpop.f32.mrb[0].mxu0
    %v4191 = vadd.f32 %v1409, %v4190
    %v4192 = vpop.f32.mrb[0].mxu0
    %v4193 = vadd.f32 %v1413, %v4192
    %v4194 = vpop.f32.mrb[0].mxu0
    %v4195 = vadd.f32 %v1409, %v4194
    %v4196 = vpop.f32.mrb[0].mxu0
    %v4197 = vadd.f32 %v1413, %v4196
    %4198 = vmatprep.mubr.bf16.mxu0 %v887
    %4199 = vmatmul.mubr.bf16.gmra.mrb[0].mxu0 %v886
    %v4200 = vpop.f32.mrb[0].mxu0
    %v4201 = vadd.f32 %v1409, %v4200
    %v4202 = vpop.f32.mrb[0].mxu0
    %v4203 = vadd.f32 %v1413, %v4202
    %v4204 = vpop.f32.mrb[0].mxu0
    %v4205 = vpop.f32.mrb[0].mxu0
    %4206 = vdwg.mxu0
    %4207 = vmatprep.subr.bf16.mxu0 %v3279
    %4208 = vmatpush1.bf16.msra.mxu0 %v3278
    %4209 = vmatprep.subr.bf16.mxu0 %v3295
    %4210 = vmatpush1.bf16.msra.mxu0 %v3294
    %4211 = vmatprep.subr.bf16.mxu0 %v3311
    %4212 = vmatpush1.bf16.msra.mxu0 %v3310
    %4213 = vmatprep.subr.bf16.mxu0 %v3327
    %4214 = vmatpush1.bf16.msra.mxu0 %v3326
    %4215 = vmatprep.subr.bf16.mxu0 %v3343
    %4216 = vmatpush1.bf16.msra.mxu0 %v3342
    %4217 = vmatprep.subr.bf16.mxu0 %v3359
    %4218 = vmatpush1.bf16.msra.mxu0 %v3358
    %4219 = vmatprep.subr.bf16.mxu0 %v3375
    %4220 = vmatpush1.bf16.msra.mxu0 %v3374
    %4221 = vmatprep.subr.bf16.mxu0 %v3391
    %4222 = vmatpush1.bf16.msra.mxu0 %v3390
    %4223 = vmatprep.subr.bf16.mxu0 %v3407
    %4224 = vmatpush1.bf16.msra.mxu0 %v3406
    %4225 = vmatprep.subr.bf16.mxu0 %v3423
    %4226 = vmatpush1.bf16.msra.mxu0 %v3422
    %4227 = vmatprep.subr.bf16.mxu0 %v3439
    %4228 = vmatpush1.bf16.msra.mxu0 %v3438
    %4229 = vmatprep.subr.bf16.mxu0 %v3455
    %4230 = vmatpush1.bf16.msra.mxu0 %v3454
    %4231 = vmatprep.subr.bf16.mxu0 %v3471
    %4232 = vmatpush1.bf16.msra.mxu0 %v3470
    %4233 = vmatprep.subr.bf16.mxu0 %v3487
    %4234 = vmatpush1.bf16.msra.mxu0 %v3486
    %4235 = vmatprep.subr.bf16.mxu0 %v3503
    %4236 = vmatpush1.bf16.msra.mxu0 %v3502
    %4237 = vmatprep.subr.bf16.mxu0 %v3519
    %4238 = vmatpush1.bf16.msra.mxu0 %v3518
    %4239 = vmatprep.mubr.bf16.mxu0 %v841
    %4240 = vmatmul.mubr.bf16.gmra.mrb[0].mxu0 %v840
    %v4241 = vpop.f32.mrb[0].mxu0
    %v4242 = vadd.f32 %v4081, %v4241
    %v4243 = vpop.f32.mrb[0].mxu0
    %v4244 = vadd.f32 %v4083, %v4243
    %v4245 = vpop.f32.mrb[0].mxu0
    %v4246 = vadd.f32 %v4085, %v4245
    %v4247 = vpop.f32.mrb[0].mxu0
    %v4248 = vadd.f32 %v4087, %v4247
    %4249 = vmatprep.mubr.bf16.mxu0 %v845
    %4250 = vmatmul.mubr.bf16.gmra.mrb[0].mxu0 %v844
    %v4251 = vpop.f32.mrb[0].mxu0
    %v4252 = vadd.f32 %v4091, %v4251
    %v4253 = vpop.f32.mrb[0].mxu0
    %v4254 = vadd.f32 %v4093, %v4253
    %v4255 = vpop.f32.mrb[0].mxu0
    %v4256 = vadd.f32 %v4095, %v4255
    %v4257 = vpop.f32.mrb[0].mxu0
    %v4258 = vadd.f32 %v4097, %v4257
    %4259 = vmatprep.mubr.bf16.mxu0 %v849
    %4260 = vmatmul.mubr.bf16.gmra.mrb[0].mxu0 %v848
    %v4261 = vpop.f32.mrb[0].mxu0
    %v4262 = vadd.f32 %v4101, %v4261
    %v4263 = vpop.f32.mrb[0].mxu0
    %v4264 = vadd.f32 %v4103, %v4263
    %v4265 = vpop.f32.mrb[0].mxu0
    %v4266 = vadd.f32 %v4105, %v4265
    %v4267 = vpop.f32.mrb[0].mxu0
    %v4268 = vadd.f32 %v4107, %v4267
    %4269 = vmatprep.mubr.bf16.mxu0 %v853
    %4270 = vmatmul.mubr.bf16.gmra.mrb[0].mxu0 %v852
    %v4271 = vpop.f32.mrb[0].mxu0
    %v4272 = vadd.f32 %v4111, %v4271
    %v4273 = vpop.f32.mrb[0].mxu0
    %v4274 = vadd.f32 %v4113, %v4273
    %v4275 = vpop.f32.mrb[0].mxu0
    %v4276 = vadd.f32 %v4115, %v4275
    %v4277 = vpop.f32.mrb[0].mxu0
    %v4278 = vadd.f32 %v4117, %v4277
    %4279 = vmatprep.mubr.bf16.mxu0 %v857
    %4280 = vmatmul.mubr.bf16.gmra.mrb[0].mxu0 %v856
    %v4281 = vpop.f32.mrb[0].mxu0
    %v4282 = vadd.f32 %v4121, %v4281
    %v4283 = vpop.f32.mrb[0].mxu0
    %v4284 = vadd.f32 %v4123, %v4283
    %v4285 = vpop.f32.mrb[0].mxu0
    %v4286 = vadd.f32 %v4125, %v4285
    %v4287 = vpop.f32.mrb[0].mxu0
    %v4288 = vadd.f32 %v4127, %v4287
    %4289 = vmatprep.mubr.bf16.mxu0 %v861
    %4290 = vmatmul.mubr.bf16.gmra.mrb[0].mxu0 %v860
    %v4291 = vpop.f32.mrb[0].mxu0
    %v4292 = vadd.f32 %v4131, %v4291
    %v4293 = vpop.f32.mrb[0].mxu0
    %v4294 = vadd.f32 %v4133, %v4293
    %v4295 = vpop.f32.mrb[0].mxu0
    %v4296 = vadd.f32 %v4135, %v4295
    %v4297 = vpop.f32.mrb[0].mxu0
    %v4298 = vadd.f32 %v4137, %v4297
    %4299 = vmatprep.mubr.bf16.mxu0 %v865
    %4300 = vmatmul.mubr.bf16.gmra.mrb[0].mxu0 %v864
    %v4301 = vpop.f32.mrb[0].mxu0
    %v4302 = vadd.f32 %v4141, %v4301
    %v4303 = vpop.f32.mrb[0].mxu0
    %v4304 = vadd.f32 %v4143, %v4303
    %v4305 = vpop.f32.mrb[0].mxu0
    %v4306 = vadd.f32 %v4145, %v4305
    %v4307 = vpop.f32.mrb[0].mxu0
    %v4308 = vadd.f32 %v4147, %v4307
    %4309 = vmatprep.mubr.bf16.mxu0 %v869
    %4310 = vmatmul.mubr.bf16.gmra.mrb[0].mxu0 %v868
    %v4311 = vpop.f32.mrb[0].mxu0
    %v4312 = vadd.f32 %v4151, %v4311
    %v4313 = vpop.f32.mrb[0].mxu0
    %v4314 = vadd.f32 %v4153, %v4313
    %v4315 = vpop.f32.mrb[0].mxu0
    %v4316 = vadd.f32 %v4155, %v4315
    %v4317 = vpop.f32.mrb[0].mxu0
    %v4318 = vadd.f32 %v4157, %v4317
    %4319 = vmatprep.mubr.bf16.mxu0 %v873
    %4320 = vmatmul.mubr.bf16.gmra.mrb[0].mxu0 %v872
    %v4321 = vpop.f32.mrb[0].mxu0
    %v4322 = vadd.f32 %v4161, %v4321
    %v4323 = vpop.f32.mrb[0].mxu0
    %v4324 = vadd.f32 %v4163, %v4323
    %v4325 = vpop.f32.mrb[0].mxu0
    %v4326 = vadd.f32 %v4165, %v4325
    %v4327 = vpop.f32.mrb[0].mxu0
    %v4328 = vadd.f32 %v4167, %v4327
    %4329 = vmatprep.mubr.bf16.mxu0 %v877
    %4330 = vmatmul.mubr.bf16.gmra.mrb[0].mxu0 %v876
    %v4331 = vpop.f32.mrb[0].mxu0
    %v4332 = vadd.f32 %v4171, %v4331
    %v4333 = vpop.f32.mrb[0].mxu0
    %v4334 = vadd.f32 %v4173, %v4333
    %v4335 = vpop.f32.mrb[0].mxu0
    %v4336 = vadd.f32 %v4175, %v4335
    %v4337 = vpop.f32.mrb[0].mxu0
    %v4338 = vadd.f32 %v4177, %v4337
    %4339 = vmatprep.mubr.bf16.mxu0 %v881
    %4340 = vmatmul.mubr.bf16.gmra.mrb[0].mxu0 %v880
    %v4341 = vpop.f32.mrb[0].mxu0
    %v4342 = vadd.f32 %v4181, %v4341
    %v4343 = vpop.f32.mrb[0].mxu0
    %v4344 = vadd.f32 %v4183, %v4343
    %v4345 = vpop.f32.mrb[0].mxu0
    %v4346 = vadd.f32 %v4185, %v4345
    %v4347 = vpop.f32.mrb[0].mxu0
    %v4348 = vadd.f32 %v4187, %v4347
    %4349 = vmatprep.mubr.bf16.mxu0 %v885
    %4350 = vmatmul.mubr.bf16.gmra.mrb[0].mxu0 %v884
    %v4351 = vpop.f32.mrb[0].mxu0
    %v4352 = vadd.f32 %v4191, %v4351
    %v4353 = vpop.f32.mrb[0].mxu0
    %v4354 = vadd.f32 %v4193, %v4353
    %v4355 = vpop.f32.mrb[0].mxu0
    %v4356 = vadd.f32 %v4195, %v4355
    %v4357 = vpop.f32.mrb[0].mxu0
    %v4358 = vadd.f32 %v4197, %v4357
    %4359 = vmatprep.mubr.bf16.mxu0 %v889
    %4360 = vmatmul.mubr.bf16.gmra.mrb[0].mxu0 %v888
    %v4361 = vpop.f32.mrb[0].mxu0
    %v4362 = vadd.f32 %v4201, %v4361
    %v4363 = vpop.f32.mrb[0].mxu0
    %v4364 = vadd.f32 %v4203, %v4363
    %v4365 = vpop.f32.mrb[0].mxu0
    %v4366 = vpop.f32.mrb[0].mxu0
    %4367 = vdwg.mxu0
    %4368 = vmatprep.subr.bf16.mxu0 %v3025
    %4369 = vmatpush1.bf16.msra.mxu0 %v3024
    %4370 = vmatprep.subr.bf16.mxu0 %v3041
    %4371 = vmatpush1.bf16.msra.mxu0 %v3040
    %4372 = vmatprep.subr.bf16.mxu0 %v3057
    %4373 = vmatpush1.bf16.msra.mxu0 %v3056
    %4374 = vmatprep.subr.bf16.mxu0 %v3073
    %4375 = vmatpush1.bf16.msra.mxu0 %v3072
    %4376 = vmatprep.subr.bf16.mxu0 %v3089
    %4377 = vmatpush1.bf16.msra.mxu0 %v3088
    %4378 = vmatprep.subr.bf16.mxu0 %v3105
    %4379 = vmatpush1.bf16.msra.mxu0 %v3104
    %4380 = vmatprep.subr.bf16.mxu0 %v3121
    %4381 = vmatpush1.bf16.msra.mxu0 %v3120
    %4382 = vmatprep.subr.bf16.mxu0 %v3137
    %4383 = vmatpush1.bf16.msra.mxu0 %v3136
    %4384 = vmatprep.subr.bf16.mxu0 %v3153
    %4385 = vmatpush1.bf16.msra.mxu0 %v3152
    %4386 = vmatprep.subr.bf16.mxu0 %v3169
    %4387 = vmatpush1.bf16.msra.mxu0 %v3168
    %4388 = vmatprep.subr.bf16.mxu0 %v3185
    %4389 = vmatpush1.bf16.msra.mxu0 %v3184
    %4390 = vmatprep.subr.bf16.mxu0 %v3201
    %4391 = vmatpush1.bf16.msra.mxu0 %v3200
    %4392 = vmatprep.subr.bf16.mxu0 %v3217
    %4393 = vmatpush1.bf16.msra.mxu0 %v3216
    %4394 = vmatprep.subr.bf16.mxu0 %v3233
    %4395 = vmatpush1.bf16.msra.mxu0 %v3232
    %4396 = vmatprep.subr.bf16.mxu0 %v3249
    %4397 = vmatpush1.bf16.msra.mxu0 %v3248
    %4398 = vmatprep.subr.bf16.mxu0 %v3265
    %4399 = vmatpush1.bf16.msra.mxu0 %v3264
    %4400 = vmatprep.mubr.bf16.mxu0 %v839
    %4401 = vmatmul.mubr.bf16.gmra.mrb[0].mxu0 %v838
    %v4402 = vpop.f32.mrb[0].mxu0
    %v4403 = vadd.f32 %v1417, %v4402
    %v4404 = vpop.f32.mrb[0].mxu0
    %v4405 = vadd.f32 %v1421, %v4404
    %v4406 = vpop.f32.mrb[0].mxu0
    %v4407 = vadd.f32 %v1417, %v4406
    %v4408 = vpop.f32.mrb[0].mxu0
    %v4409 = vadd.f32 %v1421, %v4408
    %4410 = vmatprep.mubr.bf16.mxu0 %v843
    %4411 = vmatmul.mubr.bf16.gmra.mrb[0].mxu0 %v842
    %v4412 = vpop.f32.mrb[0].mxu0
    %v4413 = vadd.f32 %v1417, %v4412
    %v4414 = vpop.f32.mrb[0].mxu0
    %v4415 = vadd.f32 %v1421, %v4414
    %v4416 = vpop.f32.mrb[0].mxu0
    %v4417 = vadd.f32 %v1417, %v4416
    %v4418 = vpop.f32.mrb[0].mxu0
    %v4419 = vadd.f32 %v1421, %v4418
    %4420 = vmatprep.mubr.bf16.mxu0 %v847
    %4421 = vmatmul.mubr.bf16.gmra.mrb[0].mxu0 %v846
    %v4422 = vpop.f32.mrb[0].mxu0
    %v4423 = vadd.f32 %v1417, %v4422
    %v4424 = vpop.f32.mrb[0].mxu0
    %v4425 = vadd.f32 %v1421, %v4424
    %v4426 = vpop.f32.mrb[0].mxu0
    %v4427 = vadd.f32 %v1417, %v4426
    %v4428 = vpop.f32.mrb[0].mxu0
    %v4429 = vadd.f32 %v1421, %v4428
    %4430 = vmatprep.mubr.bf16.mxu0 %v851
    %4431 = vmatmul.mubr.bf16.gmra.mrb[0].mxu0 %v850
    %v4432 = vpop.f32.mrb[0].mxu0
    %v4433 = vadd.f32 %v1417, %v4432
    %v4434 = vpop.f32.mrb[0].mxu0
    %v4435 = vadd.f32 %v1421, %v4434
    %v4436 = vpop.f32.mrb[0].mxu0
    %v4437 = vadd.f32 %v1417, %v4436
    %v4438 = vpop.f32.mrb[0].mxu0
    %v4439 = vadd.f32 %v1421, %v4438
    %4440 = vmatprep.mubr.bf16.mxu0 %v855
    %4441 = vmatmul.mubr.bf16.gmra.mrb[0].mxu0 %v854
    %v4442 = vpop.f32.mrb[0].mxu0
    %v4443 = vadd.f32 %v1417, %v4442
    %v4444 = vpop.f32.mrb[0].mxu0
    %v4445 = vadd.f32 %v1421, %v4444
    %v4446 = vpop.f32.mrb[0].mxu0
    %v4447 = vadd.f32 %v1417, %v4446
    %v4448 = vpop.f32.mrb[0].mxu0
    %v4449 = vadd.f32 %v1421, %v4448
    %4450 = vmatprep.mubr.bf16.mxu0 %v859
    %4451 = vmatmul.mubr.bf16.gmra.mrb[0].mxu0 %v858
    %v4452 = vpop.f32.mrb[0].mxu0
    %v4453 = vadd.f32 %v1417, %v4452
    %v4454 = vpop.f32.mrb[0].mxu0
    %v4455 = vadd.f32 %v1421, %v4454
    %v4456 = vpop.f32.mrb[0].mxu0
    %v4457 = vadd.f32 %v1417, %v4456
    %v4458 = vpop.f32.mrb[0].mxu0
    %v4459 = vadd.f32 %v1421, %v4458
    %4460 = vmatprep.mubr.bf16.mxu0 %v863
    %4461 = vmatmul.mubr.bf16.gmra.mrb[0].mxu0 %v862
    %v4462 = vpop.f32.mrb[0].mxu0
    %v4463 = vadd.f32 %v1417, %v4462
    %v4464 = vpop.f32.mrb[0].mxu0
    %v4465 = vadd.f32 %v1421, %v4464
    %v4466 = vpop.f32.mrb[0].mxu0
    %v4467 = vadd.f32 %v1417, %v4466
    %v4468 = vpop.f32.mrb[0].mxu0
    %v4469 = vadd.f32 %v1421, %v4468
    %4470 = vmatprep.mubr.bf16.mxu0 %v867
    %4471 = vmatmul.mubr.bf16.gmra.mrb[0].mxu0 %v866
    %v4472 = vpop.f32.mrb[0].mxu0
    %v4473 = vadd.f32 %v1417, %v4472
    %v4474 = vpop.f32.mrb[0].mxu0
    %v4475 = vadd.f32 %v1421, %v4474
    %v4476 = vpop.f32.mrb[0].mxu0
    %v4477 = vadd.f32 %v1417, %v4476
    %v4478 = vpop.f32.mrb[0].mxu0
    %v4479 = vadd.f32 %v1421, %v4478
    %4480 = vmatprep.mubr.bf16.mxu0 %v871
    %4481 = vmatmul.mubr.bf16.gmra.mrb[0].mxu0 %v870
    %v4482 = vpop.f32.mrb[0].mxu0
    %v4483 = vadd.f32 %v1417, %v4482
    %v4484 = vpop.f32.mrb[0].mxu0
    %v4485 = vadd.f32 %v1421, %v4484
    %v4486 = vpop.f32.mrb[0].mxu0
    %v4487 = vadd.f32 %v1417, %v4486
    %v4488 = vpop.f32.mrb[0].mxu0
    %v4489 = vadd.f32 %v1421, %v4488
    %4490 = vmatprep.mubr.bf16.mxu0 %v875
    %4491 = vmatmul.mubr.bf16.gmra.mrb[0].mxu0 %v874
    %v4492 = vpop.f32.mrb[0].mxu0
    %v4493 = vadd.f32 %v1417, %v4492
    %v4494 = vpop.f32.mrb[0].mxu0
    %v4495 = vadd.f32 %v1421, %v4494
    %v4496 = vpop.f32.mrb[0].mxu0
    %v4497 = vadd.f32 %v1417, %v4496
    %v4498 = vpop.f32.mrb[0].mxu0
    %v4499 = vadd.f32 %v1421, %v4498
    %4500 = vmatprep.mubr.bf16.mxu0 %v879
    %4501 = vmatmul.mubr.bf16.gmra.mrb[0].mxu0 %v878
    %v4502 = vpop.f32.mrb[0].mxu0
    %v4503 = vadd.f32 %v1417, %v4502
    %v4504 = vpop.f32.mrb[0].mxu0
    %v4505 = vadd.f32 %v1421, %v4504
    %v4506 = vpop.f32.mrb[0].mxu0
    %v4507 = vadd.f32 %v1417, %v4506
    %v4508 = vpop.f32.mrb[0].mxu0
    %v4509 = vadd.f32 %v1421, %v4508
    %4510 = vmatprep.mubr.bf16.mxu0 %v883
    %4511 = vmatmul.mubr.bf16.gmra.mrb[0].mxu0 %v882
    %v4512 = vpop.f32.mrb[0].mxu0
    %v4513 = vadd.f32 %v1417, %v4512
    %v4514 = vpop.f32.mrb[0].mxu0
    %v4515 = vadd.f32 %v1421, %v4514
    %v4516 = vpop.f32.mrb[0].mxu0
    %v4517 = vadd.f32 %v1417, %v4516
    %v4518 = vpop.f32.mrb[0].mxu0
    %v4519 = vadd.f32 %v1421, %v4518
    %4520 = vmatprep.mubr.bf16.mxu0 %v887
    %4521 = vmatmul.mubr.bf16.gmra.mrb[0].mxu0 %v886
    %v4522 = vpop.f32.mrb[0].mxu0
    %v4523 = vadd.f32 %v1417, %v4522
    %v4524 = vpop.f32.mrb[0].mxu0
    %v4525 = vadd.f32 %v1421, %v4524
    %v4526 = vpop.f32.mrb[0].mxu0
    %v4527 = vpop.f32.mrb[0].mxu0
    %4528 = vdwg.mxu0
    %4529 = vmatprep.subr.bf16.mxu0 %v3281
    %4530 = vmatpush1.bf16.msra.mxu0 %v3280
    %4531 = vmatprep.subr.bf16.mxu0 %v3297
    %4532 = vmatpush1.bf16.msra.mxu0 %v3296
    %4533 = vmatprep.subr.bf16.mxu0 %v3313
    %4534 = vmatpush1.bf16.msra.mxu0 %v3312
    %4535 = vmatprep.subr.bf16.mxu0 %v3329
    %4536 = vmatpush1.bf16.msra.mxu0 %v3328
    %4537 = vmatprep.subr.bf16.mxu0 %v3345
    %4538 = vmatpush1.bf16.msra.mxu0 %v3344
    %4539 = vmatprep.subr.bf16.mxu0 %v3361
    %4540 = vmatpush1.bf16.msra.mxu0 %v3360
    %4541 = vmatprep.subr.bf16.mxu0 %v3377
    %4542 = vmatpush1.bf16.msra.mxu0 %v3376
    %4543 = vmatprep.subr.bf16.mxu0 %v3393
    %4544 = vmatpush1.bf16.msra.mxu0 %v3392
    %4545 = vmatprep.subr.bf16.mxu0 %v3409
    %4546 = vmatpush1.bf16.msra.mxu0 %v3408
    %4547 = vmatprep.subr.bf16.mxu0 %v3425
    %4548 = vmatpush1.bf16.msra.mxu0 %v3424
    %4549 = vmatprep.subr.bf16.mxu0 %v3441
    %4550 = vmatpush1.bf16.msra.mxu0 %v3440
    %4551 = vmatprep.subr.bf16.mxu0 %v3457
    %4552 = vmatpush1.bf16.msra.mxu0 %v3456
    %4553 = vmatprep.subr.bf16.mxu0 %v3473
    %4554 = vmatpush1.bf16.msra.mxu0 %v3472
    %4555 = vmatprep.subr.bf16.mxu0 %v3489
    %4556 = vmatpush1.bf16.msra.mxu0 %v3488
    %4557 = vmatprep.subr.bf16.mxu0 %v3505
    %4558 = vmatpush1.bf16.msra.mxu0 %v3504
    %4559 = vmatprep.subr.bf16.mxu0 %v3521
    %4560 = vmatpush1.bf16.msra.mxu0 %v3520
    %4561 = vmatprep.mubr.bf16.mxu0 %v841
    %4562 = vmatmul.mubr.bf16.gmra.mrb[0].mxu0 %v840
    %v4563 = vpop.f32.mrb[0].mxu0
    %v4564 = vadd.f32 %v4403, %v4563
    %v4565 = vpop.f32.mrb[0].mxu0
    %v4566 = vadd.f32 %v4405, %v4565
    %v4567 = vpop.f32.mrb[0].mxu0
    %v4568 = vadd.f32 %v4407, %v4567
    %v4569 = vpop.f32.mrb[0].mxu0
    %v4570 = vadd.f32 %v4409, %v4569
    %4571 = vmatprep.mubr.bf16.mxu0 %v845
    %4572 = vmatmul.mubr.bf16.gmra.mrb[0].mxu0 %v844
    %v4573 = vpop.f32.mrb[0].mxu0
    %v4574 = vadd.f32 %v4413, %v4573
    %v4575 = vpop.f32.mrb[0].mxu0
    %v4576 = vadd.f32 %v4415, %v4575
    %v4577 = vpop.f32.mrb[0].mxu0
    %v4578 = vadd.f32 %v4417, %v4577
    %v4579 = vpop.f32.mrb[0].mxu0
    %v4580 = vadd.f32 %v4419, %v4579
    %4581 = vmatprep.mubr.bf16.mxu0 %v849
    %4582 = vmatmul.mubr.bf16.gmra.mrb[0].mxu0 %v848
    %v4583 = vpop.f32.mrb[0].mxu0
    %v4584 = vadd.f32 %v4423, %v4583
    %v4585 = vpop.f32.mrb[0].mxu0
    %v4586 = vadd.f32 %v4425, %v4585
    %v4587 = vpop.f32.mrb[0].mxu0
    %v4588 = vadd.f32 %v4427, %v4587
    %v4589 = vpop.f32.mrb[0].mxu0
    %v4590 = vadd.f32 %v4429, %v4589
    %4591 = vmatprep.mubr.bf16.mxu0 %v853
    %4592 = vmatmul.mubr.bf16.gmra.mrb[0].mxu0 %v852
    %v4593 = vpop.f32.mrb[0].mxu0
    %v4594 = vadd.f32 %v4433, %v4593
    %v4595 = vpop.f32.mrb[0].mxu0
    %v4596 = vadd.f32 %v4435, %v4595
    %v4597 = vpop.f32.mrb[0].mxu0
    %v4598 = vadd.f32 %v4437, %v4597
    %v4599 = vpop.f32.mrb[0].mxu0
    %v4600 = vadd.f32 %v4439, %v4599
    %4601 = vmatprep.mubr.bf16.mxu0 %v857
    %4602 = vmatmul.mubr.bf16.gmra.mrb[0].mxu0 %v856
    %v4603 = vpop.f32.mrb[0].mxu0
    %v4604 = vadd.f32 %v4443, %v4603
    %v4605 = vpop.f32.mrb[0].mxu0
    %v4606 = vadd.f32 %v4445, %v4605
    %v4607 = vpop.f32.mrb[0].mxu0
    %v4608 = vadd.f32 %v4447, %v4607
    %v4609 = vpop.f32.mrb[0].mxu0
    %v4610 = vadd.f32 %v4449, %v4609
    %4611 = vmatprep.mubr.bf16.mxu0 %v861
    %4612 = vmatmul.mubr.bf16.gmra.mrb[0].mxu0 %v860
    %v4613 = vpop.f32.mrb[0].mxu0
    %v4614 = vadd.f32 %v4453, %v4613
    %v4615 = vpop.f32.mrb[0].mxu0
    %v4616 = vadd.f32 %v4455, %v4615
    %v4617 = vpop.f32.mrb[0].mxu0
    %v4618 = vadd.f32 %v4457, %v4617
    %v4619 = vpop.f32.mrb[0].mxu0
    %v4620 = vadd.f32 %v4459, %v4619
    %4621 = vmatprep.mubr.bf16.mxu0 %v865
    %4622 = vmatmul.mubr.bf16.gmra.mrb[0].mxu0 %v864
    %v4623 = vpop.f32.mrb[0].mxu0
    %v4624 = vadd.f32 %v4463, %v4623
    %v4625 = vpop.f32.mrb[0].mxu0
    %v4626 = vadd.f32 %v4465, %v4625
    %v4627 = vpop.f32.mrb[0].mxu0
    %v4628 = vadd.f32 %v4467, %v4627
    %v4629 = vpop.f32.mrb[0].mxu0
    %v4630 = vadd.f32 %v4469, %v4629
    %4631 = vmatprep.mubr.bf16.mxu0 %v869
    %4632 = vmatmul.mubr.bf16.gmra.mrb[0].mxu0 %v868
    %v4633 = vpop.f32.mrb[0].mxu0
    %v4634 = vadd.f32 %v4473, %v4633
    %v4635 = vpop.f32.mrb[0].mxu0
    %v4636 = vadd.f32 %v4475, %v4635
    %v4637 = vpop.f32.mrb[0].mxu0
    %v4638 = vadd.f32 %v4477, %v4637
    %v4639 = vpop.f32.mrb[0].mxu0
    %v4640 = vadd.f32 %v4479, %v4639
    %4641 = vmatprep.mubr.bf16.mxu0 %v873
    %4642 = vmatmul.mubr.bf16.gmra.mrb[0].mxu0 %v872
    %v4643 = vpop.f32.mrb[0].mxu0
    %v4644 = vadd.f32 %v4483, %v4643
    %v4645 = vpop.f32.mrb[0].mxu0
    %v4646 = vadd.f32 %v4485, %v4645
    %v4647 = vpop.f32.mrb[0].mxu0
    %v4648 = vadd.f32 %v4487, %v4647
    %v4649 = vpop.f32.mrb[0].mxu0
    %v4650 = vadd.f32 %v4489, %v4649
    %4651 = vmatprep.mubr.bf16.mxu0 %v877
    %4652 = vmatmul.mubr.bf16.gmra.mrb[0].mxu0 %v876
    %v4653 = vpop.f32.mrb[0].mxu0
    %v4654 = vadd.f32 %v4493, %v4653
    %v4655 = vpop.f32.mrb[0].mxu0
    %v4656 = vadd.f32 %v4495, %v4655
    %v4657 = vpop.f32.mrb[0].mxu0
    %v4658 = vadd.f32 %v4497, %v4657
    %v4659 = vpop.f32.mrb[0].mxu0
    %v4660 = vadd.f32 %v4499, %v4659
    %4661 = vmatprep.mubr.bf16.mxu0 %v881
    %4662 = vmatmul.mubr.bf16.gmra.mrb[0].mxu0 %v880
    %v4663 = vpop.f32.mrb[0].mxu0
    %v4664 = vadd.f32 %v4503, %v4663
    %v4665 = vpop.f32.mrb[0].mxu0
    %v4666 = vadd.f32 %v4505, %v4665
    %v4667 = vpop.f32.mrb[0].mxu0
    %v4668 = vadd.f32 %v4507, %v4667
    %v4669 = vpop.f32.mrb[0].mxu0
    %v4670 = vadd.f32 %v4509, %v4669
    %4671 = vmatprep.mubr.bf16.mxu0 %v885
    %4672 = vmatmul.mubr.bf16.gmra.mrb[0].mxu0 %v884
    %v4673 = vpop.f32.mrb[0].mxu0
    %v4674 = vadd.f32 %v4513, %v4673
    %v4675 = vpop.f32.mrb[0].mxu0
    %v4676 = vadd.f32 %v4515, %v4675
    %v4677 = vpop.f32.mrb[0].mxu0
    %v4678 = vadd.f32 %v4517, %v4677
    %v4679 = vpop.f32.mrb[0].mxu0
    %v4680 = vadd.f32 %v4519, %v4679
    %4681 = vmatprep.mubr.bf16.mxu0 %v889
    %4682 = vmatmul.mubr.bf16.gmra.mrb[0].mxu0 %v888
    %v4683 = vpop.f32.mrb[0].mxu0
    %v4684 = vadd.f32 %v4523, %v4683
    %v4685 = vpop.f32.mrb[0].mxu0
    %v4686 = vadd.f32 %v4525, %v4685
    %v4687 = vpop.f32.mrb[0].mxu0
    %v4688 = vpop.f32.mrb[0].mxu0
    %4689 = vdwg.mxu0
    %4690 = vmatprep.subr.bf16.mxu0 %v3027
    %4691 = vmatpush1.bf16.msra.mxu0 %v3026
    %4692 = vmatprep.subr.bf16.mxu0 %v3043
    %4693 = vmatpush1.bf16.msra.mxu0 %v3042
    %4694 = vmatprep.subr.bf16.mxu0 %v3059
    %4695 = vmatpush1.bf16.msra.mxu0 %v3058
    %4696 = vmatprep.subr.bf16.mxu0 %v3075
    %4697 = vmatpush1.bf16.msra.mxu0 %v3074
    %4698 = vmatprep.subr.bf16.mxu0 %v3091
    %4699 = vmatpush1.bf16.msra.mxu0 %v3090
    %4700 = vmatprep.subr.bf16.mxu0 %v3107
    %4701 = vmatpush1.bf16.msra.mxu0 %v3106
    %4702 = vmatprep.subr.bf16.mxu0 %v3123
    %4703 = vmatpush1.bf16.msra.mxu0 %v3122
    %4704 = vmatprep.subr.bf16.mxu0 %v3139
    %4705 = vmatpush1.bf16.msra.mxu0 %v3138
    %4706 = vmatprep.subr.bf16.mxu0 %v3155
    %4707 = vmatpush1.bf16.msra.mxu0 %v3154
    %4708 = vmatprep.subr.bf16.mxu0 %v3171
    %4709 = vmatpush1.bf16.msra.mxu0 %v3170
    %4710 = vmatprep.subr.bf16.mxu0 %v3187
    %4711 = vmatpush1.bf16.msra.mxu0 %v3186
    %4712 = vmatprep.subr.bf16.mxu0 %v3203
    %4713 = vmatpush1.bf16.msra.mxu0 %v3202
    %4714 = vmatprep.subr.bf16.mxu0 %v3219
    %4715 = vmatpush1.bf16.msra.mxu0 %v3218
    %4716 = vmatprep.subr.bf16.mxu0 %v3235
    %4717 = vmatpush1.bf16.msra.mxu0 %v3234
    %4718 = vmatprep.subr.bf16.mxu0 %v3251
    %4719 = vmatpush1.bf16.msra.mxu0 %v3250
    %4720 = vmatprep.subr.bf16.mxu0 %v3267
    %4721 = vmatpush1.bf16.msra.mxu0 %v3266
    %4722 = vmatprep.mubr.bf16.mxu0 %v839
    %4723 = vmatmul.mubr.bf16.gmra.mrb[0].mxu0 %v838
    %v4724 = vpop.f32.mrb[0].mxu0
    %v4725 = vadd.f32 %v1425, %v4724
    %v4726 = vpop.f32.mrb[0].mxu0
    %v4727 = vadd.f32 %v1429, %v4726
    %v4728 = vpop.f32.mrb[0].mxu0
    %v4729 = vadd.f32 %v1425, %v4728
    %v4730 = vpop.f32.mrb[0].mxu0
    %v4731 = vadd.f32 %v1429, %v4730
    %4732 = vmatprep.mubr.bf16.mxu0 %v843
    %4733 = vmatmul.mubr.bf16.gmra.mrb[0].mxu0 %v842
    %v4734 = vpop.f32.mrb[0].mxu0
    %v4735 = vadd.f32 %v1425, %v4734
    %v4736 = vpop.f32.mrb[0].mxu0
    %v4737 = vadd.f32 %v1429, %v4736
    %v4738 = vpop.f32.mrb[0].mxu0
    %v4739 = vadd.f32 %v1425, %v4738
    %v4740 = vpop.f32.mrb[0].mxu0
    %v4741 = vadd.f32 %v1429, %v4740
    %4742 = vmatprep.mubr.bf16.mxu0 %v847
    %4743 = vmatmul.mubr.bf16.gmra.mrb[0].mxu0 %v846
    %v4744 = vpop.f32.mrb[0].mxu0
    %v4745 = vadd.f32 %v1425, %v4744
    %v4746 = vpop.f32.mrb[0].mxu0
    %v4747 = vadd.f32 %v1429, %v4746
    %v4748 = vpop.f32.mrb[0].mxu0
    %v4749 = vadd.f32 %v1425, %v4748
    %v4750 = vpop.f32.mrb[0].mxu0
    %v4751 = vadd.f32 %v1429, %v4750
    %4752 = vmatprep.mubr.bf16.mxu0 %v851
    %4753 = vmatmul.mubr.bf16.gmra.mrb[0].mxu0 %v850
    %v4754 = vpop.f32.mrb[0].mxu0
    %v4755 = vadd.f32 %v1425, %v4754
    %v4756 = vpop.f32.mrb[0].mxu0
    %v4757 = vadd.f32 %v1429, %v4756
    %v4758 = vpop.f32.mrb[0].mxu0
    %v4759 = vadd.f32 %v1425, %v4758
    %v4760 = vpop.f32.mrb[0].mxu0
    %v4761 = vadd.f32 %v1429, %v4760
    %4762 = vmatprep.mubr.bf16.mxu0 %v855
    %4763 = vmatmul.mubr.bf16.gmra.mrb[0].mxu0 %v854
    %v4764 = vpop.f32.mrb[0].mxu0
    %v4765 = vadd.f32 %v1425, %v4764
    %v4766 = vpop.f32.mrb[0].mxu0
    %v4767 = vadd.f32 %v1429, %v4766
    %v4768 = vpop.f32.mrb[0].mxu0
    %v4769 = vadd.f32 %v1425, %v4768
    %v4770 = vpop.f32.mrb[0].mxu0
    %v4771 = vadd.f32 %v1429, %v4770
    %4772 = vmatprep.mubr.bf16.mxu0 %v859
    %4773 = vmatmul.mubr.bf16.gmra.mrb[0].mxu0 %v858
    %v4774 = vpop.f32.mrb[0].mxu0
    %v4775 = vadd.f32 %v1425, %v4774
    %v4776 = vpop.f32.mrb[0].mxu0
    %v4777 = vadd.f32 %v1429, %v4776
    %v4778 = vpop.f32.mrb[0].mxu0
    %v4779 = vadd.f32 %v1425, %v4778
    %v4780 = vpop.f32.mrb[0].mxu0
    %v4781 = vadd.f32 %v1429, %v4780
    %4782 = vmatprep.mubr.bf16.mxu0 %v863
    %4783 = vmatmul.mubr.bf16.gmra.mrb[0].mxu0 %v862
    %v4784 = vpop.f32.mrb[0].mxu0
    %v4785 = vadd.f32 %v1425, %v4784
    %v4786 = vpop.f32.mrb[0].mxu0
    %v4787 = vadd.f32 %v1429, %v4786
    %v4788 = vpop.f32.mrb[0].mxu0
    %v4789 = vadd.f32 %v1425, %v4788
    %v4790 = vpop.f32.mrb[0].mxu0
    %v4791 = vadd.f32 %v1429, %v4790
    %4792 = vmatprep.mubr.bf16.mxu0 %v867
    %4793 = vmatmul.mubr.bf16.gmra.mrb[0].mxu0 %v866
    %v4794 = vpop.f32.mrb[0].mxu0
    %v4795 = vadd.f32 %v1425, %v4794
    %v4796 = vpop.f32.mrb[0].mxu0
    %v4797 = vadd.f32 %v1429, %v4796
    %v4798 = vpop.f32.mrb[0].mxu0
    %v4799 = vadd.f32 %v1425, %v4798
    %v4800 = vpop.f32.mrb[0].mxu0
    %v4801 = vadd.f32 %v1429, %v4800
    %4802 = vmatprep.mubr.bf16.mxu0 %v871
    %4803 = vmatmul.mubr.bf16.gmra.mrb[0].mxu0 %v870
    %v4804 = vpop.f32.mrb[0].mxu0
    %v4805 = vadd.f32 %v1425, %v4804
    %v4806 = vpop.f32.mrb[0].mxu0
    %v4807 = vadd.f32 %v1429, %v4806
    %v4808 = vpop.f32.mrb[0].mxu0
    %v4809 = vadd.f32 %v1425, %v4808
    %v4810 = vpop.f32.mrb[0].mxu0
    %v4811 = vadd.f32 %v1429, %v4810
    %4812 = vmatprep.mubr.bf16.mxu0 %v875
    %4813 = vmatmul.mubr.bf16.gmra.mrb[0].mxu0 %v874
    %v4814 = vpop.f32.mrb[0].mxu0
    %v4815 = vadd.f32 %v1425, %v4814
    %v4816 = vpop.f32.mrb[0].mxu0
    %v4817 = vadd.f32 %v1429, %v4816
    %v4818 = vpop.f32.mrb[0].mxu0
    %v4819 = vadd.f32 %v1425, %v4818
    %v4820 = vpop.f32.mrb[0].mxu0
    %v4821 = vadd.f32 %v1429, %v4820
    %4822 = vmatprep.mubr.bf16.mxu0 %v879
    %4823 = vmatmul.mubr.bf16.gmra.mrb[0].mxu0 %v878
    %v4824 = vpop.f32.mrb[0].mxu0
    %v4825 = vadd.f32 %v1425, %v4824
    %v4826 = vpop.f32.mrb[0].mxu0
    %v4827 = vadd.f32 %v1429, %v4826
    %v4828 = vpop.f32.mrb[0].mxu0
    %v4829 = vadd.f32 %v1425, %v4828
    %v4830 = vpop.f32.mrb[0].mxu0
    %v4831 = vadd.f32 %v1429, %v4830
    %4832 = vmatprep.mubr.bf16.mxu0 %v883
    %4833 = vmatmul.mubr.bf16.gmra.mrb[0].mxu0 %v882
    %v4834 = vpop.f32.mrb[0].mxu0
    %v4835 = vadd.f32 %v1425, %v4834
    %v4836 = vpop.f32.mrb[0].mxu0
    %v4837 = vadd.f32 %v1429, %v4836
    %v4838 = vpop.f32.mrb[0].mxu0
    %v4839 = vadd.f32 %v1425, %v4838
    %v4840 = vpop.f32.mrb[0].mxu0
    %v4841 = vadd.f32 %v1429, %v4840
    %4842 = vmatprep.mubr.bf16.mxu0 %v887
    %4843 = vmatmul.mubr.bf16.gmra.mrb[0].mxu0 %v886
    %v4844 = vpop.f32.mrb[0].mxu0
    %v4845 = vadd.f32 %v1425, %v4844
    %v4846 = vpop.f32.mrb[0].mxu0
    %v4847 = vadd.f32 %v1429, %v4846
    %v4848 = vpop.f32.mrb[0].mxu0
    %v4849 = vpop.f32.mrb[0].mxu0
    %4850 = vdwg.mxu0
    %4851 = vmatprep.subr.bf16.mxu0 %v3283
    %4852 = vmatpush1.bf16.msra.mxu0 %v3282
    %4853 = vmatprep.subr.bf16.mxu0 %v3299
    %4854 = vmatpush1.bf16.msra.mxu0 %v3298
    %4855 = vmatprep.subr.bf16.mxu0 %v3315
    %4856 = vmatpush1.bf16.msra.mxu0 %v3314
    %4857 = vmatprep.subr.bf16.mxu0 %v3331
    %4858 = vmatpush1.bf16.msra.mxu0 %v3330
    %4859 = vmatprep.subr.bf16.mxu0 %v3347
    %4860 = vmatpush1.bf16.msra.mxu0 %v3346
    %4861 = vmatprep.subr.bf16.mxu0 %v3363
    %4862 = vmatpush1.bf16.msra.mxu0 %v3362
    %4863 = vmatprep.subr.bf16.mxu0 %v3379
    %4864 = vmatpush1.bf16.msra.mxu0 %v3378
    %4865 = vmatprep.subr.bf16.mxu0 %v3395
    %4866 = vmatpush1.bf16.msra.mxu0 %v3394
    %4867 = vmatprep.subr.bf16.mxu0 %v3411
    %4868 = vmatpush1.bf16.msra.mxu0 %v3410
    %4869 = vmatprep.subr.bf16.mxu0 %v3427
    %4870 = vmatpush1.bf16.msra.mxu0 %v3426
    %4871 = vmatprep.subr.bf16.mxu0 %v3443
    %4872 = vmatpush1.bf16.msra.mxu0 %v3442
    %4873 = vmatprep.subr.bf16.mxu0 %v3459
    %4874 = vmatpush1.bf16.msra.mxu0 %v3458
    %4875 = vmatprep.subr.bf16.mxu0 %v3475
    %4876 = vmatpush1.bf16.msra.mxu0 %v3474
    %4877 = vmatprep.subr.bf16.mxu0 %v3491
    %4878 = vmatpush1.bf16.msra.mxu0 %v3490
    %4879 = vmatprep.subr.bf16.mxu0 %v3507
    %4880 = vmatpush1.bf16.msra.mxu0 %v3506
    %4881 = vmatprep.subr.bf16.mxu0 %v3523
    %4882 = vmatpush1.bf16.msra.mxu0 %v3522
    %4883 = vmatprep.mubr.bf16.mxu0 %v841
    %4884 = vmatmul.mubr.bf16.gmra.mrb[0].mxu0 %v840
    %v4885 = vpop.f32.mrb[0].mxu0
    %v4886 = vadd.f32 %v4725, %v4885
    %v4887 = vpop.f32.mrb[0].mxu0
    %v4888 = vadd.f32 %v4727, %v4887
    %v4889 = vpop.f32.mrb[0].mxu0
    %v4890 = vadd.f32 %v4729, %v4889
    %v4891 = vpop.f32.mrb[0].mxu0
    %v4892 = vadd.f32 %v4731, %v4891
    %4893 = vmatprep.mubr.bf16.mxu0 %v845
    %4894 = vmatmul.mubr.bf16.gmra.mrb[0].mxu0 %v844
    %v4895 = vpop.f32.mrb[0].mxu0
    %v4896 = vadd.f32 %v4735, %v4895
    %v4897 = vpop.f32.mrb[0].mxu0
    %v4898 = vadd.f32 %v4737, %v4897
    %v4899 = vpop.f32.mrb[0].mxu0
    %v4900 = vadd.f32 %v4739, %v4899
    %v4901 = vpop.f32.mrb[0].mxu0
    %v4902 = vadd.f32 %v4741, %v4901
    %4903 = vmatprep.mubr.bf16.mxu0 %v849
    %4904 = vmatmul.mubr.bf16.gmra.mrb[0].mxu0 %v848
    %v4905 = vpop.f32.mrb[0].mxu0
    %v4906 = vadd.f32 %v4745, %v4905
    %v4907 = vpop.f32.mrb[0].mxu0
    %v4908 = vadd.f32 %v4747, %v4907
    %v4909 = vpop.f32.mrb[0].mxu0
    %v4910 = vadd.f32 %v4749, %v4909
    %v4911 = vpop.f32.mrb[0].mxu0
    %v4912 = vadd.f32 %v4751, %v4911
    %4913 = vmatprep.mubr.bf16.mxu0 %v853
    %4914 = vmatmul.mubr.bf16.gmra.mrb[0].mxu0 %v852
    %v4915 = vpop.f32.mrb[0].mxu0
    %v4916 = vadd.f32 %v4755, %v4915
    %v4917 = vpop.f32.mrb[0].mxu0
    %v4918 = vadd.f32 %v4757, %v4917
    %v4919 = vpop.f32.mrb[0].mxu0
    %v4920 = vadd.f32 %v4759, %v4919
    %v4921 = vpop.f32.mrb[0].mxu0
    %v4922 = vadd.f32 %v4761, %v4921
    %4923 = vmatprep.mubr.bf16.mxu0 %v857
    %4924 = vmatmul.mubr.bf16.gmra.mrb[0].mxu0 %v856
    %v4925 = vpop.f32.mrb[0].mxu0
    %v4926 = vadd.f32 %v4765, %v4925
    %v4927 = vpop.f32.mrb[0].mxu0
    %v4928 = vadd.f32 %v4767, %v4927
    %v4929 = vpop.f32.mrb[0].mxu0
    %v4930 = vadd.f32 %v4769, %v4929
    %v4931 = vpop.f32.mrb[0].mxu0
    %v4932 = vadd.f32 %v4771, %v4931
    %4933 = vmatprep.mubr.bf16.mxu0 %v861
    %4934 = vmatmul.mubr.bf16.gmra.mrb[0].mxu0 %v860
    %v4935 = vpop.f32.mrb[0].mxu0
    %v4936 = vadd.f32 %v4775, %v4935
    %v4937 = vpop.f32.mrb[0].mxu0
    %v4938 = vadd.f32 %v4777, %v4937
    %v4939 = vpop.f32.mrb[0].mxu0
    %v4940 = vadd.f32 %v4779, %v4939
    %v4941 = vpop.f32.mrb[0].mxu0
    %v4942 = vadd.f32 %v4781, %v4941
    %4943 = vmatprep.mubr.bf16.mxu0 %v865
    %4944 = vmatmul.mubr.bf16.gmra.mrb[0].mxu0 %v864
    %v4945 = vpop.f32.mrb[0].mxu0
    %v4946 = vadd.f32 %v4785, %v4945
    %v4947 = vpop.f32.mrb[0].mxu0
    %v4948 = vadd.f32 %v4787, %v4947
    %v4949 = vpop.f32.mrb[0].mxu0
    %v4950 = vadd.f32 %v4789, %v4949
    %v4951 = vpop.f32.mrb[0].mxu0
    %v4952 = vadd.f32 %v4791, %v4951
    %4953 = vmatprep.mubr.bf16.mxu0 %v869
    %4954 = vmatmul.mubr.bf16.gmra.mrb[0].mxu0 %v868
    %v4955 = vpop.f32.mrb[0].mxu0
    %v4956 = vadd.f32 %v4795, %v4955
    %v4957 = vpop.f32.mrb[0].mxu0
    %v4958 = vadd.f32 %v4797, %v4957
    %v4959 = vpop.f32.mrb[0].mxu0
    %v4960 = vadd.f32 %v4799, %v4959
    %v4961 = vpop.f32.mrb[0].mxu0
    %v4962 = vadd.f32 %v4801, %v4961
    %4963 = vmatprep.mubr.bf16.mxu0 %v873
    %4964 = vmatmul.mubr.bf16.gmra.mrb[0].mxu0 %v872
    %v4965 = vpop.f32.mrb[0].mxu0
    %v4966 = vadd.f32 %v4805, %v4965
    %v4967 = vpop.f32.mrb[0].mxu0
    %v4968 = vadd.f32 %v4807, %v4967
    %v4969 = vpop.f32.mrb[0].mxu0
    %v4970 = vadd.f32 %v4809, %v4969
    %v4971 = vpop.f32.mrb[0].mxu0
    %v4972 = vadd.f32 %v4811, %v4971
    %4973 = vmatprep.mubr.bf16.mxu0 %v877
    %4974 = vmatmul.mubr.bf16.gmra.mrb[0].mxu0 %v876
    %v4975 = vpop.f32.mrb[0].mxu0
    %v4976 = vadd.f32 %v4815, %v4975
    %v4977 = vpop.f32.mrb[0].mxu0
    %v4978 = vadd.f32 %v4817, %v4977
    %v4979 = vpop.f32.mrb[0].mxu0
    %v4980 = vadd.f32 %v4819, %v4979
    %v4981 = vpop.f32.mrb[0].mxu0
    %v4982 = vadd.f32 %v4821, %v4981
    %4983 = vmatprep.mubr.bf16.mxu0 %v881
    %4984 = vmatmul.mubr.bf16.gmra.mrb[0].mxu0 %v880
    %v4985 = vpop.f32.mrb[0].mxu0
    %v4986 = vadd.f32 %v4825, %v4985
    %v4987 = vpop.f32.mrb[0].mxu0
    %v4988 = vadd.f32 %v4827, %v4987
    %v4989 = vpop.f32.mrb[0].mxu0
    %v4990 = vadd.f32 %v4829, %v4989
    %v4991 = vpop.f32.mrb[0].mxu0
    %v4992 = vadd.f32 %v4831, %v4991
    %4993 = vmatprep.mubr.bf16.mxu0 %v885
    %4994 = vmatmul.mubr.bf16.gmra.mrb[0].mxu0 %v884
    %v4995 = vpop.f32.mrb[0].mxu0
    %v4996 = vadd.f32 %v4835, %v4995
    %v4997 = vpop.f32.mrb[0].mxu0
    %v4998 = vadd.f32 %v4837, %v4997
    %v4999 = vpop.f32.mrb[0].mxu0
    %v5000 = vadd.f32 %v4839, %v4999
    %v5001 = vpop.f32.mrb[0].mxu0
    %v5002 = vadd.f32 %v4841, %v5001
    %5003 = vmatprep.mubr.bf16.mxu0 %v889
    %5004 = vmatmul.mubr.bf16.gmra.mrb[0].mxu0 %v888
    %v5005 = vpop.f32.mrb[0].mxu0
    %v5006 = vadd.f32 %v4845, %v5005
    %v5007 = vpop.f32.mrb[0].mxu0
    %v5008 = vadd.f32 %v4847, %v5007
    %v5009 = vpop.f32.mrb[0].mxu0
    %v5010 = vpop.f32.mrb[0].mxu0
    %5011 = vdwg.mxu0
    %5012 = vmatprep.subr.bf16.mxu0 %v3029
    %5013 = vmatpush1.bf16.msra.mxu0 %v3028
    %5014 = vmatprep.subr.bf16.mxu0 %v3045
    %5015 = vmatpush1.bf16.msra.mxu0 %v3044
    %5016 = vmatprep.subr.bf16.mxu0 %v3061
    %5017 = vmatpush1.bf16.msra.mxu0 %v3060
    %5018 = vmatprep.subr.bf16.mxu0 %v3077
    %5019 = vmatpush1.bf16.msra.mxu0 %v3076
    %5020 = vmatprep.subr.bf16.mxu0 %v3093
    %5021 = vmatpush1.bf16.msra.mxu0 %v3092
    %5022 = vmatprep.subr.bf16.mxu0 %v3109
    %5023 = vmatpush1.bf16.msra.mxu0 %v3108
    %5024 = vmatprep.subr.bf16.mxu0 %v3125
    %5025 = vmatpush1.bf16.msra.mxu0 %v3124
    %5026 = vmatprep.subr.bf16.mxu0 %v3141
    %5027 = vmatpush1.bf16.msra.mxu0 %v3140
    %5028 = vmatprep.subr.bf16.mxu0 %v3157
    %5029 = vmatpush1.bf16.msra.mxu0 %v3156
    %5030 = vmatprep.subr.bf16.mxu0 %v3173
    %5031 = vmatpush1.bf16.msra.mxu0 %v3172
    %5032 = vmatprep.subr.bf16.mxu0 %v3189
    %5033 = vmatpush1.bf16.msra.mxu0 %v3188
    %5034 = vmatprep.subr.bf16.mxu0 %v3205
    %5035 = vmatpush1.bf16.msra.mxu0 %v3204
    %5036 = vmatprep.subr.bf16.mxu0 %v3221
    %5037 = vmatpush1.bf16.msra.mxu0 %v3220
    %5038 = vmatprep.subr.bf16.mxu0 %v3237
    %5039 = vmatpush1.bf16.msra.mxu0 %v3236
    %5040 = vmatprep.subr.bf16.mxu0 %v3253
    %5041 = vmatpush1.bf16.msra.mxu0 %v3252
    %5042 = vmatprep.subr.bf16.mxu0 %v3269
    %5043 = vmatpush1.bf16.msra.mxu0 %v3268
    %5044 = vmatprep.mubr.bf16.mxu0 %v839
    %5045 = vmatmul.mubr.bf16.gmra.mrb[0].mxu0 %v838
    %v5046 = vpop.f32.mrb[0].mxu0
    %v5047 = vadd.f32 %v1433, %v5046
    %v5048 = vpop.f32.mrb[0].mxu0
    %v5049 = vadd.f32 %v1437, %v5048
    %v5050 = vpop.f32.mrb[0].mxu0
    %v5051 = vadd.f32 %v1433, %v5050
    %v5052 = vpop.f32.mrb[0].mxu0
    %v5053 = vadd.f32 %v1437, %v5052
    %5054 = vmatprep.mubr.bf16.mxu0 %v843
    %5055 = vmatmul.mubr.bf16.gmra.mrb[0].mxu0 %v842
    %v5056 = vpop.f32.mrb[0].mxu0
    %v5057 = vadd.f32 %v1433, %v5056
    %v5058 = vpop.f32.mrb[0].mxu0
    %v5059 = vadd.f32 %v1437, %v5058
    %v5060 = vpop.f32.mrb[0].mxu0
    %v5061 = vadd.f32 %v1433, %v5060
    %v5062 = vpop.f32.mrb[0].mxu0
    %v5063 = vadd.f32 %v1437, %v5062
    %5064 = vmatprep.mubr.bf16.mxu0 %v847
    %5065 = vmatmul.mubr.bf16.gmra.mrb[0].mxu0 %v846
    %v5066 = vpop.f32.mrb[0].mxu0
    %v5067 = vadd.f32 %v1433, %v5066
    %v5068 = vpop.f32.mrb[0].mxu0
    %v5069 = vadd.f32 %v1437, %v5068
    %v5070 = vpop.f32.mrb[0].mxu0
    %v5071 = vadd.f32 %v1433, %v5070
    %v5072 = vpop.f32.mrb[0].mxu0
    %v5073 = vadd.f32 %v1437, %v5072
    %5074 = vmatprep.mubr.bf16.mxu0 %v851
    %5075 = vmatmul.mubr.bf16.gmra.mrb[0].mxu0 %v850
    %v5076 = vpop.f32.mrb[0].mxu0
    %v5077 = vadd.f32 %v1433, %v5076
    %v5078 = vpop.f32.mrb[0].mxu0
    %v5079 = vadd.f32 %v1437, %v5078
    %v5080 = vpop.f32.mrb[0].mxu0
    %v5081 = vadd.f32 %v1433, %v5080
    %v5082 = vpop.f32.mrb[0].mxu0
    %v5083 = vadd.f32 %v1437, %v5082
    %5084 = vmatprep.mubr.bf16.mxu0 %v855
    %5085 = vmatmul.mubr.bf16.gmra.mrb[0].mxu0 %v854
    %v5086 = vpop.f32.mrb[0].mxu0
    %v5087 = vadd.f32 %v1433, %v5086
    %v5088 = vpop.f32.mrb[0].mxu0
    %v5089 = vadd.f32 %v1437, %v5088
    %v5090 = vpop.f32.mrb[0].mxu0
    %v5091 = vadd.f32 %v1433, %v5090
    %v5092 = vpop.f32.mrb[0].mxu0
    %v5093 = vadd.f32 %v1437, %v5092
    %5094 = vmatprep.mubr.bf16.mxu0 %v859
    %5095 = vmatmul.mubr.bf16.gmra.mrb[0].mxu0 %v858
    %v5096 = vpop.f32.mrb[0].mxu0
    %v5097 = vadd.f32 %v1433, %v5096
    %v5098 = vpop.f32.mrb[0].mxu0
    %v5099 = vadd.f32 %v1437, %v5098
    %v5100 = vpop.f32.mrb[0].mxu0
    %v5101 = vadd.f32 %v1433, %v5100
    %v5102 = vpop.f32.mrb[0].mxu0
    %v5103 = vadd.f32 %v1437, %v5102
    %5104 = vmatprep.mubr.bf16.mxu0 %v863
    %5105 = vmatmul.mubr.bf16.gmra.mrb[0].mxu0 %v862
    %v5106 = vpop.f32.mrb[0].mxu0
    %v5107 = vadd.f32 %v1433, %v5106
    %v5108 = vpop.f32.mrb[0].mxu0
    %v5109 = vadd.f32 %v1437, %v5108
    %v5110 = vpop.f32.mrb[0].mxu0
    %v5111 = vadd.f32 %v1433, %v5110
    %v5112 = vpop.f32.mrb[0].mxu0
    %v5113 = vadd.f32 %v1437, %v5112
    %5114 = vmatprep.mubr.bf16.mxu0 %v867
    %5115 = vmatmul.mubr.bf16.gmra.mrb[0].mxu0 %v866
    %v5116 = vpop.f32.mrb[0].mxu0
    %v5117 = vadd.f32 %v1433, %v5116
    %v5118 = vpop.f32.mrb[0].mxu0
    %v5119 = vadd.f32 %v1437, %v5118
    %v5120 = vpop.f32.mrb[0].mxu0
    %v5121 = vadd.f32 %v1433, %v5120
    %v5122 = vpop.f32.mrb[0].mxu0
    %v5123 = vadd.f32 %v1437, %v5122
    %5124 = vmatprep.mubr.bf16.mxu0 %v871
    %5125 = vmatmul.mubr.bf16.gmra.mrb[0].mxu0 %v870
    %v5126 = vpop.f32.mrb[0].mxu0
    %v5127 = vadd.f32 %v1433, %v5126
    %v5128 = vpop.f32.mrb[0].mxu0
    %v5129 = vadd.f32 %v1437, %v5128
    %v5130 = vpop.f32.mrb[0].mxu0
    %v5131 = vadd.f32 %v1433, %v5130
    %v5132 = vpop.f32.mrb[0].mxu0
    %v5133 = vadd.f32 %v1437, %v5132
    %5134 = vmatprep.mubr.bf16.mxu0 %v875
    %5135 = vmatmul.mubr.bf16.gmra.mrb[0].mxu0 %v874
    %v5136 = vpop.f32.mrb[0].mxu0
    %v5137 = vadd.f32 %v1433, %v5136
    %v5138 = vpop.f32.mrb[0].mxu0
    %v5139 = vadd.f32 %v1437, %v5138
    %v5140 = vpop.f32.mrb[0].mxu0
    %v5141 = vadd.f32 %v1433, %v5140
    %v5142 = vpop.f32.mrb[0].mxu0
    %v5143 = vadd.f32 %v1437, %v5142
    %5144 = vmatprep.mubr.bf16.mxu0 %v879
    %5145 = vmatmul.mubr.bf16.gmra.mrb[0].mxu0 %v878
    %v5146 = vpop.f32.mrb[0].mxu0
    %v5147 = vadd.f32 %v1433, %v5146
    %v5148 = vpop.f32.mrb[0].mxu0
    %v5149 = vadd.f32 %v1437, %v5148
    %v5150 = vpop.f32.mrb[0].mxu0
    %v5151 = vadd.f32 %v1433, %v5150
    %v5152 = vpop.f32.mrb[0].mxu0
    %v5153 = vadd.f32 %v1437, %v5152
    %5154 = vmatprep.mubr.bf16.mxu0 %v883
    %5155 = vmatmul.mubr.bf16.gmra.mrb[0].mxu0 %v882
    %v5156 = vpop.f32.mrb[0].mxu0
    %v5157 = vadd.f32 %v1433, %v5156
    %v5158 = vpop.f32.mrb[0].mxu0
    %v5159 = vadd.f32 %v1437, %v5158
    %v5160 = vpop.f32.mrb[0].mxu0
    %v5161 = vadd.f32 %v1433, %v5160
    %v5162 = vpop.f32.mrb[0].mxu0
    %v5163 = vadd.f32 %v1437, %v5162
    %5164 = vmatprep.mubr.bf16.mxu0 %v887
    %5165 = vmatmul.mubr.bf16.gmra.mrb[0].mxu0 %v886
    %v5166 = vpop.f32.mrb[0].mxu0
    %v5167 = vadd.f32 %v1433, %v5166
    %v5168 = vpop.f32.mrb[0].mxu0
    %v5169 = vadd.f32 %v1437, %v5168
    %v5170 = vpop.f32.mrb[0].mxu0
    %v5171 = vpop.f32.mrb[0].mxu0
    %5172 = vdwg.mxu0
    %5173 = vmatprep.subr.bf16.mxu0 %v3285
    %5174 = vmatpush1.bf16.msra.mxu0 %v3284
    %5175 = vmatprep.subr.bf16.mxu0 %v3301
    %5176 = vmatpush1.bf16.msra.mxu0 %v3300
    %5177 = vmatprep.subr.bf16.mxu0 %v3317
    %5178 = vmatpush1.bf16.msra.mxu0 %v3316
    %5179 = vmatprep.subr.bf16.mxu0 %v3333
    %5180 = vmatpush1.bf16.msra.mxu0 %v3332
    %5181 = vmatprep.subr.bf16.mxu0 %v3349
    %5182 = vmatpush1.bf16.msra.mxu0 %v3348
    %5183 = vmatprep.subr.bf16.mxu0 %v3365
    %5184 = vmatpush1.bf16.msra.mxu0 %v3364
    %5185 = vmatprep.subr.bf16.mxu0 %v3381
    %5186 = vmatpush1.bf16.msra.mxu0 %v3380
    %5187 = vmatprep.subr.bf16.mxu0 %v3397
    %5188 = vmatpush1.bf16.msra.mxu0 %v3396
    %5189 = vmatprep.subr.bf16.mxu0 %v3413
    %5190 = vmatpush1.bf16.msra.mxu0 %v3412
    %5191 = vmatprep.subr.bf16.mxu0 %v3429
    %5192 = vmatpush1.bf16.msra.mxu0 %v3428
    %5193 = vmatprep.subr.bf16.mxu0 %v3445
    %5194 = vmatpush1.bf16.msra.mxu0 %v3444
    %5195 = vmatprep.subr.bf16.mxu0 %v3461
    %5196 = vmatpush1.bf16.msra.mxu0 %v3460
    %5197 = vmatprep.subr.bf16.mxu0 %v3477
    %5198 = vmatpush1.bf16.msra.mxu0 %v3476
    %5199 = vmatprep.subr.bf16.mxu0 %v3493
    %5200 = vmatpush1.bf16.msra.mxu0 %v3492
    %5201 = vmatprep.subr.bf16.mxu0 %v3509
    %5202 = vmatpush1.bf16.msra.mxu0 %v3508
    %5203 = vmatprep.subr.bf16.mxu0 %v3525
    %5204 = vmatpush1.bf16.msra.mxu0 %v3524
    %5205 = vmatprep.mubr.bf16.mxu0 %v841
    %5206 = vmatmul.mubr.bf16.gmra.mrb[0].mxu0 %v840
    %v5207 = vpop.f32.mrb[0].mxu0
    %v5208 = vadd.f32 %v5047, %v5207
    %v5209 = vpop.f32.mrb[0].mxu0
    %v5210 = vadd.f32 %v5049, %v5209
    %v5211 = vpop.f32.mrb[0].mxu0
    %v5212 = vadd.f32 %v5051, %v5211
    %v5213 = vpop.f32.mrb[0].mxu0
    %v5214 = vadd.f32 %v5053, %v5213
    %5215 = vmatprep.mubr.bf16.mxu0 %v845
    %5216 = vmatmul.mubr.bf16.gmra.mrb[0].mxu0 %v844
    %v5217 = vpop.f32.mrb[0].mxu0
    %v5218 = vadd.f32 %v5057, %v5217
    %v5219 = vpop.f32.mrb[0].mxu0
    %v5220 = vadd.f32 %v5059, %v5219
    %v5221 = vpop.f32.mrb[0].mxu0
    %v5222 = vadd.f32 %v5061, %v5221
    %v5223 = vpop.f32.mrb[0].mxu0
    %v5224 = vadd.f32 %v5063, %v5223
    %5225 = vmatprep.mubr.bf16.mxu0 %v849
    %5226 = vmatmul.mubr.bf16.gmra.mrb[0].mxu0 %v848
    %v5227 = vpop.f32.mrb[0].mxu0
    %v5228 = vadd.f32 %v5067, %v5227
    %v5229 = vpop.f32.mrb[0].mxu0
    %v5230 = vadd.f32 %v5069, %v5229
    %v5231 = vpop.f32.mrb[0].mxu0
    %v5232 = vadd.f32 %v5071, %v5231
    %v5233 = vpop.f32.mrb[0].mxu0
    %v5234 = vadd.f32 %v5073, %v5233
    %5235 = vmatprep.mubr.bf16.mxu0 %v853
    %5236 = vmatmul.mubr.bf16.gmra.mrb[0].mxu0 %v852
    %v5237 = vpop.f32.mrb[0].mxu0
    %v5238 = vadd.f32 %v5077, %v5237
    %v5239 = vpop.f32.mrb[0].mxu0
    %v5240 = vadd.f32 %v5079, %v5239
    %v5241 = vpop.f32.mrb[0].mxu0
    %v5242 = vadd.f32 %v5081, %v5241
    %v5243 = vpop.f32.mrb[0].mxu0
    %v5244 = vadd.f32 %v5083, %v5243
    %5245 = vmatprep.mubr.bf16.mxu0 %v857
    %5246 = vmatmul.mubr.bf16.gmra.mrb[0].mxu0 %v856
    %v5247 = vpop.f32.mrb[0].mxu0
    %v5248 = vadd.f32 %v5087, %v5247
    %v5249 = vpop.f32.mrb[0].mxu0
    %v5250 = vadd.f32 %v5089, %v5249
    %v5251 = vpop.f32.mrb[0].mxu0
    %v5252 = vadd.f32 %v5091, %v5251
    %v5253 = vpop.f32.mrb[0].mxu0
    %v5254 = vadd.f32 %v5093, %v5253
    %5255 = vmatprep.mubr.bf16.mxu0 %v861
    %5256 = vmatmul.mubr.bf16.gmra.mrb[0].mxu0 %v860
    %v5257 = vpop.f32.mrb[0].mxu0
    %v5258 = vadd.f32 %v5097, %v5257
    %v5259 = vpop.f32.mrb[0].mxu0
    %v5260 = vadd.f32 %v5099, %v5259
    %v5261 = vpop.f32.mrb[0].mxu0
    %v5262 = vadd.f32 %v5101, %v5261
    %v5263 = vpop.f32.mrb[0].mxu0
    %v5264 = vadd.f32 %v5103, %v5263
    %5265 = vmatprep.mubr.bf16.mxu0 %v865
    %5266 = vmatmul.mubr.bf16.gmra.mrb[0].mxu0 %v864
    %v5267 = vpop.f32.mrb[0].mxu0
    %v5268 = vadd.f32 %v5107, %v5267
    %v5269 = vpop.f32.mrb[0].mxu0
    %v5270 = vadd.f32 %v5109, %v5269
    %v5271 = vpop.f32.mrb[0].mxu0
    %v5272 = vadd.f32 %v5111, %v5271
    %v5273 = vpop.f32.mrb[0].mxu0
    %v5274 = vadd.f32 %v5113, %v5273
    %5275 = vmatprep.mubr.bf16.mxu0 %v869
    %5276 = vmatmul.mubr.bf16.gmra.mrb[0].mxu0 %v868
    %v5277 = vpop.f32.mrb[0].mxu0
    %v5278 = vadd.f32 %v5117, %v5277
    %v5279 = vpop.f32.mrb[0].mxu0
    %v5280 = vadd.f32 %v5119, %v5279
    %v5281 = vpop.f32.mrb[0].mxu0
    %v5282 = vadd.f32 %v5121, %v5281
    %v5283 = vpop.f32.mrb[0].mxu0
    %v5284 = vadd.f32 %v5123, %v5283
    %5285 = vmatprep.mubr.bf16.mxu0 %v873
    %5286 = vmatmul.mubr.bf16.gmra.mrb[0].mxu0 %v872
    %v5287 = vpop.f32.mrb[0].mxu0
    %v5288 = vadd.f32 %v5127, %v5287
    %v5289 = vpop.f32.mrb[0].mxu0
    %v5290 = vadd.f32 %v5129, %v5289
    %v5291 = vpop.f32.mrb[0].mxu0
    %v5292 = vadd.f32 %v5131, %v5291
    %v5293 = vpop.f32.mrb[0].mxu0
    %v5294 = vadd.f32 %v5133, %v5293
    %5295 = vmatprep.mubr.bf16.mxu0 %v877
    %5296 = vmatmul.mubr.bf16.gmra.mrb[0].mxu0 %v876
    %v5297 = vpop.f32.mrb[0].mxu0
    %v5298 = vadd.f32 %v5137, %v5297
    %v5299 = vpop.f32.mrb[0].mxu0
    %v5300 = vadd.f32 %v5139, %v5299
    %v5301 = vpop.f32.mrb[0].mxu0
    %v5302 = vadd.f32 %v5141, %v5301
    %v5303 = vpop.f32.mrb[0].mxu0
    %v5304 = vadd.f32 %v5143, %v5303
    %5305 = vmatprep.mubr.bf16.mxu0 %v881
    %5306 = vmatmul.mubr.bf16.gmra.mrb[0].mxu0 %v880
    %v5307 = vpop.f32.mrb[0].mxu0
    %v5308 = vadd.f32 %v5147, %v5307
    %v5309 = vpop.f32.mrb[0].mxu0
    %v5310 = vadd.f32 %v5149, %v5309
    %v5311 = vpop.f32.mrb[0].mxu0
    %v5312 = vadd.f32 %v5151, %v5311
    %v5313 = vpop.f32.mrb[0].mxu0
    %v5314 = vadd.f32 %v5153, %v5313
    %5315 = vmatprep.mubr.bf16.mxu0 %v885
    %5316 = vmatmul.mubr.bf16.gmra.mrb[0].mxu0 %v884
    %v5317 = vpop.f32.mrb[0].mxu0
    %v5318 = vadd.f32 %v5157, %v5317
    %v5319 = vpop.f32.mrb[0].mxu0
    %v5320 = vadd.f32 %v5159, %v5319
    %v5321 = vpop.f32.mrb[0].mxu0
    %v5322 = vadd.f32 %v5161, %v5321
    %v5323 = vpop.f32.mrb[0].mxu0
    %v5324 = vadd.f32 %v5163, %v5323
    %5325 = vmatprep.mubr.bf16.mxu0 %v889
    %5326 = vmatmul.mubr.bf16.gmra.mrb[0].mxu0 %v888
    %v5327 = vpop.f32.mrb[0].mxu0
    %v5328 = vadd.f32 %v5167, %v5327
    %v5329 = vpop.f32.mrb[0].mxu0
    %v5330 = vadd.f32 %v5169, %v5329
    %v5331 = vpop.f32.mrb[0].mxu0
    %v5332 = vpop.f32.mrb[0].mxu0
    %5333 = vdwg.mxu0
    %5334 = vmatprep.subr.bf16.mxu0 %v3031
    %5335 = vmatpush1.bf16.msra.mxu0 %v3030
    %5336 = vmatprep.subr.bf16.mxu0 %v3047
    %5337 = vmatpush1.bf16.msra.mxu0 %v3046
    %5338 = vmatprep.subr.bf16.mxu0 %v3063
    %5339 = vmatpush1.bf16.msra.mxu0 %v3062
    %5340 = vmatprep.subr.bf16.mxu0 %v3079
    %5341 = vmatpush1.bf16.msra.mxu0 %v3078
    %5342 = vmatprep.subr.bf16.mxu0 %v3095
    %5343 = vmatpush1.bf16.msra.mxu0 %v3094
    %5344 = vmatprep.subr.bf16.mxu0 %v3111
    %5345 = vmatpush1.bf16.msra.mxu0 %v3110
    %5346 = vmatprep.subr.bf16.mxu0 %v3127
    %5347 = vmatpush1.bf16.msra.mxu0 %v3126
    %5348 = vmatprep.subr.bf16.mxu0 %v3143
    %5349 = vmatpush1.bf16.msra.mxu0 %v3142
    %5350 = vmatprep.subr.bf16.mxu0 %v3159
    %5351 = vmatpush1.bf16.msra.mxu0 %v3158
    %5352 = vmatprep.subr.bf16.mxu0 %v3175
    %5353 = vmatpush1.bf16.msra.mxu0 %v3174
    %5354 = vmatprep.subr.bf16.mxu0 %v3191
    %5355 = vmatpush1.bf16.msra.mxu0 %v3190
    %5356 = vmatprep.subr.bf16.mxu0 %v3207
    %5357 = vmatpush1.bf16.msra.mxu0 %v3206
    %5358 = vmatprep.subr.bf16.mxu0 %v3223
    %5359 = vmatpush1.bf16.msra.mxu0 %v3222
    %5360 = vmatprep.subr.bf16.mxu0 %v3239
    %5361 = vmatpush1.bf16.msra.mxu0 %v3238
    %5362 = vmatprep.subr.bf16.mxu0 %v3255
    %5363 = vmatpush1.bf16.msra.mxu0 %v3254
    %5364 = vmatprep.subr.bf16.mxu0 %v3271
    %5365 = vmatpush1.bf16.msra.mxu0 %v3270
    %5366 = vmatprep.mubr.bf16.mxu0 %v839
    %5367 = vmatmul.mubr.bf16.gmra.mrb[0].mxu0 %v838
    %v5368 = vpop.f32.mrb[0].mxu0
    %v5369 = vadd.f32 %v1441, %v5368
    %v5370 = vpop.f32.mrb[0].mxu0
    %v5371 = vadd.f32 %v1445, %v5370
    %v5372 = vpop.f32.mrb[0].mxu0
    %v5373 = vadd.f32 %v1441, %v5372
    %v5374 = vpop.f32.mrb[0].mxu0
    %v5375 = vadd.f32 %v1445, %v5374
    %5376 = vmatprep.mubr.bf16.mxu0 %v843
    %5377 = vmatmul.mubr.bf16.gmra.mrb[0].mxu0 %v842
    %v5378 = vpop.f32.mrb[0].mxu0
    %v5379 = vadd.f32 %v1441, %v5378
    %v5380 = vpop.f32.mrb[0].mxu0
    %v5381 = vadd.f32 %v1445, %v5380
    %v5382 = vpop.f32.mrb[0].mxu0
    %v5383 = vadd.f32 %v1441, %v5382
    %v5384 = vpop.f32.mrb[0].mxu0
    %v5385 = vadd.f32 %v1445, %v5384
    %5386 = vmatprep.mubr.bf16.mxu0 %v847
    %5387 = vmatmul.mubr.bf16.gmra.mrb[0].mxu0 %v846
    %v5388 = vpop.f32.mrb[0].mxu0
    %v5389 = vadd.f32 %v1441, %v5388
    %v5390 = vpop.f32.mrb[0].mxu0
    %v5391 = vadd.f32 %v1445, %v5390
    %v5392 = vpop.f32.mrb[0].mxu0
    %v5393 = vadd.f32 %v1441, %v5392
    %v5394 = vpop.f32.mrb[0].mxu0
    %v5395 = vadd.f32 %v1445, %v5394
    %5396 = vmatprep.mubr.bf16.mxu0 %v851
    %5397 = vmatmul.mubr.bf16.gmra.mrb[0].mxu0 %v850
    %v5398 = vpop.f32.mrb[0].mxu0
    %v5399 = vadd.f32 %v1441, %v5398
    %v5400 = vpop.f32.mrb[0].mxu0
    %v5401 = vadd.f32 %v1445, %v5400
    %v5402 = vpop.f32.mrb[0].mxu0
    %v5403 = vadd.f32 %v1441, %v5402
    %v5404 = vpop.f32.mrb[0].mxu0
    %v5405 = vadd.f32 %v1445, %v5404
    %5406 = vmatprep.mubr.bf16.mxu0 %v855
    %5407 = vmatmul.mubr.bf16.gmra.mrb[0].mxu0 %v854
    %v5408 = vpop.f32.mrb[0].mxu0
    %v5409 = vadd.f32 %v1441, %v5408
    %v5410 = vpop.f32.mrb[0].mxu0
    %v5411 = vadd.f32 %v1445, %v5410
    %v5412 = vpop.f32.mrb[0].mxu0
    %v5413 = vadd.f32 %v1441, %v5412
    %v5414 = vpop.f32.mrb[0].mxu0
    %v5415 = vadd.f32 %v1445, %v5414
    %5416 = vmatprep.mubr.bf16.mxu0 %v859
    %5417 = vmatmul.mubr.bf16.gmra.mrb[0].mxu0 %v858
    %v5418 = vpop.f32.mrb[0].mxu0
    %v5419 = vadd.f32 %v1441, %v5418
    %v5420 = vpop.f32.mrb[0].mxu0
    %v5421 = vadd.f32 %v1445, %v5420
    %v5422 = vpop.f32.mrb[0].mxu0
    %v5423 = vadd.f32 %v1441, %v5422
    %v5424 = vpop.f32.mrb[0].mxu0
    %v5425 = vadd.f32 %v1445, %v5424
    %5426 = vmatprep.mubr.bf16.mxu0 %v863
    %5427 = vmatmul.mubr.bf16.gmra.mrb[0].mxu0 %v862
    %v5428 = vpop.f32.mrb[0].mxu0
    %v5429 = vadd.f32 %v1441, %v5428
    %v5430 = vpop.f32.mrb[0].mxu0
    %v5431 = vadd.f32 %v1445, %v5430
    %v5432 = vpop.f32.mrb[0].mxu0
    %v5433 = vadd.f32 %v1441, %v5432
    %v5434 = vpop.f32.mrb[0].mxu0
    %v5435 = vadd.f32 %v1445, %v5434
    %5436 = vmatprep.mubr.bf16.mxu0 %v867
    %5437 = vmatmul.mubr.bf16.gmra.mrb[0].mxu0 %v866
    %v5438 = vpop.f32.mrb[0].mxu0
    %v5439 = vadd.f32 %v1441, %v5438
    %v5440 = vpop.f32.mrb[0].mxu0
    %v5441 = vadd.f32 %v1445, %v5440
    %v5442 = vpop.f32.mrb[0].mxu0
    %v5443 = vadd.f32 %v1441, %v5442
    %v5444 = vpop.f32.mrb[0].mxu0
    %v5445 = vadd.f32 %v1445, %v5444
    %5446 = vmatprep.mubr.bf16.mxu0 %v871
    %5447 = vmatmul.mubr.bf16.gmra.mrb[0].mxu0 %v870
    %v5448 = vpop.f32.mrb[0].mxu0
    %v5449 = vadd.f32 %v1441, %v5448
    %v5450 = vpop.f32.mrb[0].mxu0
    %v5451 = vadd.f32 %v1445, %v5450
    %v5452 = vpop.f32.mrb[0].mxu0
    %v5453 = vadd.f32 %v1441, %v5452
    %v5454 = vpop.f32.mrb[0].mxu0
    %v5455 = vadd.f32 %v1445, %v5454
    %5456 = vmatprep.mubr.bf16.mxu0 %v875
    %5457 = vmatmul.mubr.bf16.gmra.mrb[0].mxu0 %v874
    %v5458 = vpop.f32.mrb[0].mxu0
    %v5459 = vadd.f32 %v1441, %v5458
    %v5460 = vpop.f32.mrb[0].mxu0
    %v5461 = vadd.f32 %v1445, %v5460
    %v5462 = vpop.f32.mrb[0].mxu0
    %v5463 = vadd.f32 %v1441, %v5462
    %v5464 = vpop.f32.mrb[0].mxu0
    %v5465 = vadd.f32 %v1445, %v5464
    %5466 = vmatprep.mubr.bf16.mxu0 %v879
    %5467 = vmatmul.mubr.bf16.gmra.mrb[0].mxu0 %v878
    %v5468 = vpop.f32.mrb[0].mxu0
    %v5469 = vadd.f32 %v1441, %v5468
    %v5470 = vpop.f32.mrb[0].mxu0
    %v5471 = vadd.f32 %v1445, %v5470
    %v5472 = vpop.f32.mrb[0].mxu0
    %v5473 = vadd.f32 %v1441, %v5472
    %v5474 = vpop.f32.mrb[0].mxu0
    %v5475 = vadd.f32 %v1445, %v5474
    %5476 = vmatprep.mubr.bf16.mxu0 %v883
    %5477 = vmatmul.mubr.bf16.gmra.mrb[0].mxu0 %v882
    %v5478 = vpop.f32.mrb[0].mxu0
    %v5479 = vadd.f32 %v1441, %v5478
    %v5480 = vpop.f32.mrb[0].mxu0
    %v5481 = vadd.f32 %v1445, %v5480
    %v5482 = vpop.f32.mrb[0].mxu0
    %v5483 = vadd.f32 %v1441, %v5482
    %v5484 = vpop.f32.mrb[0].mxu0
    %v5485 = vadd.f32 %v1445, %v5484
    %5486 = vmatprep.mubr.bf16.mxu0 %v887
    %5487 = vmatmul.mubr.bf16.gmra.mrb[0].mxu0 %v886
    %v5488 = vpop.f32.mrb[0].mxu0
    %v5489 = vadd.f32 %v1441, %v5488
    %v5490 = vpop.f32.mrb[0].mxu0
    %v5491 = vadd.f32 %v1445, %v5490
    %v5492 = vpop.f32.mrb[0].mxu0
    %v5493 = vpop.f32.mrb[0].mxu0
    %5494 = vdwg.mxu0
    %5495 = vmatprep.subr.bf16.mxu0 %v3287
    %5496 = vmatpush1.bf16.msra.mxu0 %v3286
    %5497 = vmatprep.subr.bf16.mxu0 %v3303
    %5498 = vmatpush1.bf16.msra.mxu0 %v3302
    %5499 = vmatprep.subr.bf16.mxu0 %v3319
    %5500 = vmatpush1.bf16.msra.mxu0 %v3318
    %5501 = vmatprep.subr.bf16.mxu0 %v3335
    %5502 = vmatpush1.bf16.msra.mxu0 %v3334
    %5503 = vmatprep.subr.bf16.mxu0 %v3351
    %5504 = vmatpush1.bf16.msra.mxu0 %v3350
    %5505 = vmatprep.subr.bf16.mxu0 %v3367
    %5506 = vmatpush1.bf16.msra.mxu0 %v3366
    %5507 = vmatprep.subr.bf16.mxu0 %v3383
    %5508 = vmatpush1.bf16.msra.mxu0 %v3382
    %5509 = vmatprep.subr.bf16.mxu0 %v3399
    %5510 = vmatpush1.bf16.msra.mxu0 %v3398
    %5511 = vmatprep.subr.bf16.mxu0 %v3415
    %5512 = vmatpush1.bf16.msra.mxu0 %v3414
    %5513 = vmatprep.subr.bf16.mxu0 %v3431
    %5514 = vmatpush1.bf16.msra.mxu0 %v3430
    %5515 = vmatprep.subr.bf16.mxu0 %v3447
    %5516 = vmatpush1.bf16.msra.mxu0 %v3446
    %5517 = vmatprep.subr.bf16.mxu0 %v3463
    %5518 = vmatpush1.bf16.msra.mxu0 %v3462
    %5519 = vmatprep.subr.bf16.mxu0 %v3479
    %5520 = vmatpush1.bf16.msra.mxu0 %v3478
    %5521 = vmatprep.subr.bf16.mxu0 %v3495
    %5522 = vmatpush1.bf16.msra.mxu0 %v3494
    %5523 = vmatprep.subr.bf16.mxu0 %v3511
    %5524 = vmatpush1.bf16.msra.mxu0 %v3510
    %5525 = vmatprep.subr.bf16.mxu0 %v3527
    %5526 = vmatpush1.bf16.msra.mxu0 %v3526
    %5527 = vmatprep.mubr.bf16.mxu0 %v841
    %5528 = vmatmul.mubr.bf16.gmra.mrb[0].mxu0 %v840
    %v5529 = vpop.f32.mrb[0].mxu0
    %v5530 = vadd.f32 %v5369, %v5529
    %v5531 = vpop.f32.mrb[0].mxu0
    %v5532 = vadd.f32 %v5371, %v5531
    %v5533 = vpop.f32.mrb[0].mxu0
    %v5534 = vadd.f32 %v5373, %v5533
    %v5535 = vpop.f32.mrb[0].mxu0
    %v5536 = vadd.f32 %v5375, %v5535
    %5537 = vmatprep.mubr.bf16.mxu0 %v845
    %5538 = vmatmul.mubr.bf16.gmra.mrb[0].mxu0 %v844
    %v5539 = vpop.f32.mrb[0].mxu0
    %v5540 = vadd.f32 %v5379, %v5539
    %v5541 = vpop.f32.mrb[0].mxu0
    %v5542 = vadd.f32 %v5381, %v5541
    %v5543 = vpop.f32.mrb[0].mxu0
    %v5544 = vadd.f32 %v5383, %v5543
    %v5545 = vpop.f32.mrb[0].mxu0
    %v5546 = vadd.f32 %v5385, %v5545
    %5547 = vmatprep.mubr.bf16.mxu0 %v849
    %5548 = vmatmul.mubr.bf16.gmra.mrb[0].mxu0 %v848
    %v5549 = vpop.f32.mrb[0].mxu0
    %v5550 = vadd.f32 %v5389, %v5549
    %v5551 = vpop.f32.mrb[0].mxu0
    %v5552 = vadd.f32 %v5391, %v5551
    %v5553 = vpop.f32.mrb[0].mxu0
    %v5554 = vadd.f32 %v5393, %v5553
    %v5555 = vpop.f32.mrb[0].mxu0
    %v5556 = vadd.f32 %v5395, %v5555
    %5557 = vmatprep.mubr.bf16.mxu0 %v853
    %5558 = vmatmul.mubr.bf16.gmra.mrb[0].mxu0 %v852
    %v5559 = vpop.f32.mrb[0].mxu0
    %v5560 = vadd.f32 %v5399, %v5559
    %v5561 = vpop.f32.mrb[0].mxu0
    %v5562 = vadd.f32 %v5401, %v5561
    %v5563 = vpop.f32.mrb[0].mxu0
    %v5564 = vadd.f32 %v5403, %v5563
    %v5565 = vpop.f32.mrb[0].mxu0
    %v5566 = vadd.f32 %v5405, %v5565
    %5567 = vmatprep.mubr.bf16.mxu0 %v857
    %5568 = vmatmul.mubr.bf16.gmra.mrb[0].mxu0 %v856
    %v5569 = vpop.f32.mrb[0].mxu0
    %v5570 = vadd.f32 %v5409, %v5569
    %v5571 = vpop.f32.mrb[0].mxu0
    %v5572 = vadd.f32 %v5411, %v5571
    %v5573 = vpop.f32.mrb[0].mxu0
    %v5574 = vadd.f32 %v5413, %v5573
    %v5575 = vpop.f32.mrb[0].mxu0
    %v5576 = vadd.f32 %v5415, %v5575
    %5577 = vmatprep.mubr.bf16.mxu0 %v861
    %5578 = vmatmul.mubr.bf16.gmra.mrb[0].mxu0 %v860
    %v5579 = vpop.f32.mrb[0].mxu0
    %v5580 = vadd.f32 %v5419, %v5579
    %v5581 = vpop.f32.mrb[0].mxu0
    %v5582 = vadd.f32 %v5421, %v5581
    %v5583 = vpop.f32.mrb[0].mxu0
    %v5584 = vadd.f32 %v5423, %v5583
    %v5585 = vpop.f32.mrb[0].mxu0
    %v5586 = vadd.f32 %v5425, %v5585
    %5587 = vmatprep.mubr.bf16.mxu0 %v865
    %5588 = vmatmul.mubr.bf16.gmra.mrb[0].mxu0 %v864
    %v5589 = vpop.f32.mrb[0].mxu0
    %v5590 = vadd.f32 %v5429, %v5589
    %v5591 = vpop.f32.mrb[0].mxu0
    %v5592 = vadd.f32 %v5431, %v5591
    %v5593 = vpop.f32.mrb[0].mxu0
    %v5594 = vadd.f32 %v5433, %v5593
    %v5595 = vpop.f32.mrb[0].mxu0
    %v5596 = vadd.f32 %v5435, %v5595
    %5597 = vmatprep.mubr.bf16.mxu0 %v869
    %5598 = vmatmul.mubr.bf16.gmra.mrb[0].mxu0 %v868
    %v5599 = vpop.f32.mrb[0].mxu0
    %v5600 = vadd.f32 %v5439, %v5599
    %v5601 = vpop.f32.mrb[0].mxu0
    %v5602 = vadd.f32 %v5441, %v5601
    %v5603 = vpop.f32.mrb[0].mxu0
    %v5604 = vadd.f32 %v5443, %v5603
    %v5605 = vpop.f32.mrb[0].mxu0
    %v5606 = vadd.f32 %v5445, %v5605
    %5607 = vmatprep.mubr.bf16.mxu0 %v873
    %5608 = vmatmul.mubr.bf16.gmra.mrb[0].mxu0 %v872
    %v5609 = vpop.f32.mrb[0].mxu0
    %v5610 = vadd.f32 %v5449, %v5609
    %v5611 = vpop.f32.mrb[0].mxu0
    %v5612 = vadd.f32 %v5451, %v5611
    %v5613 = vpop.f32.mrb[0].mxu0
    %v5614 = vadd.f32 %v5453, %v5613
    %v5615 = vpop.f32.mrb[0].mxu0
    %v5616 = vadd.f32 %v5455, %v5615
    %5617 = vmatprep.mubr.bf16.mxu0 %v877
    %5618 = vmatmul.mubr.bf16.gmra.mrb[0].mxu0 %v876
    %v5619 = vpop.f32.mrb[0].mxu0
    %v5620 = vadd.f32 %v5459, %v5619
    %v5621 = vpop.f32.mrb[0].mxu0
    %v5622 = vadd.f32 %v5461, %v5621
    %v5623 = vpop.f32.mrb[0].mxu0
    %v5624 = vadd.f32 %v5463, %v5623
    %v5625 = vpop.f32.mrb[0].mxu0
    %v5626 = vadd.f32 %v5465, %v5625
    %5627 = vmatprep.mubr.bf16.mxu0 %v881
    %5628 = vmatmul.mubr.bf16.gmra.mrb[0].mxu0 %v880
    %v5629 = vpop.f32.mrb[0].mxu0
    %v5630 = vadd.f32 %v5469, %v5629
    %v5631 = vpop.f32.mrb[0].mxu0
    %v5632 = vadd.f32 %v5471, %v5631
    %v5633 = vpop.f32.mrb[0].mxu0
    %v5634 = vadd.f32 %v5473, %v5633
    %v5635 = vpop.f32.mrb[0].mxu0
    %v5636 = vadd.f32 %v5475, %v5635
    %5637 = vmatprep.mubr.bf16.mxu0 %v885
    %5638 = vmatmul.mubr.bf16.gmra.mrb[0].mxu0 %v884
    %v5639 = vpop.f32.mrb[0].mxu0
    %v5640 = vadd.f32 %v5479, %v5639
    %v5641 = vpop.f32.mrb[0].mxu0
    %v5642 = vadd.f32 %v5481, %v5641
    %v5643 = vpop.f32.mrb[0].mxu0
    %v5644 = vadd.f32 %v5483, %v5643
    %v5645 = vpop.f32.mrb[0].mxu0
    %v5646 = vadd.f32 %v5485, %v5645
    %5647 = vmatprep.mubr.bf16.mxu0 %v889
    %5648 = vmatmul.mubr.bf16.gmra.mrb[0].mxu0 %v888
    %v5649 = vpop.f32.mrb[0].mxu0
    %v5650 = vadd.f32 %v5489, %v5649
    %v5651 = vpop.f32.mrb[0].mxu0
    %v5652 = vadd.f32 %v5491, %v5651
    %v5653 = vpop.f32.mrb[0].mxu0
    %v5654 = vpop.f32.mrb[0].mxu0
    %5655 = vdwg.mxu0
    %5656 = vmatprep.subr.bf16.mxu0 %v3033
    %5657 = vmatpush1.bf16.msra.mxu0 %v3032
    %5658 = vmatprep.subr.bf16.mxu0 %v3049
    %5659 = vmatpush1.bf16.msra.mxu0 %v3048
    %5660 = vmatprep.subr.bf16.mxu0 %v3065
    %5661 = vmatpush1.bf16.msra.mxu0 %v3064
    %5662 = vmatprep.subr.bf16.mxu0 %v3081
    %5663 = vmatpush1.bf16.msra.mxu0 %v3080
    %5664 = vmatprep.subr.bf16.mxu0 %v3097
    %5665 = vmatpush1.bf16.msra.mxu0 %v3096
    %5666 = vmatprep.subr.bf16.mxu0 %v3113
    %5667 = vmatpush1.bf16.msra.mxu0 %v3112
    %5668 = vmatprep.subr.bf16.mxu0 %v3129
    %5669 = vmatpush1.bf16.msra.mxu0 %v3128
    %5670 = vmatprep.subr.bf16.mxu0 %v3145
    %5671 = vmatpush1.bf16.msra.mxu0 %v3144
    %5672 = vmatprep.subr.bf16.mxu0 %v3161
    %5673 = vmatpush1.bf16.msra.mxu0 %v3160
    %5674 = vmatprep.subr.bf16.mxu0 %v3177
    %5675 = vmatpush1.bf16.msra.mxu0 %v3176
    %5676 = vmatprep.subr.bf16.mxu0 %v3193
    %5677 = vmatpush1.bf16.msra.mxu0 %v3192
    %5678 = vmatprep.subr.bf16.mxu0 %v3209
    %5679 = vmatpush1.bf16.msra.mxu0 %v3208
    %5680 = vmatprep.subr.bf16.mxu0 %v3225
    %5681 = vmatpush1.bf16.msra.mxu0 %v3224
    %5682 = vmatprep.subr.bf16.mxu0 %v3241
    %5683 = vmatpush1.bf16.msra.mxu0 %v3240
    %5684 = vmatprep.subr.bf16.mxu0 %v3257
    %5685 = vmatpush1.bf16.msra.mxu0 %v3256
    %5686 = vmatprep.subr.bf16.mxu0 %v3273
    %5687 = vmatpush1.bf16.msra.mxu0 %v3272
    %5688 = vmatprep.mubr.bf16.mxu0 %v839
    %5689 = vmatmul.mubr.bf16.gmra.mrb[0].mxu0 %v838
    %v5690 = vpop.f32.mrb[0].mxu0
    %v5691 = vadd.f32 %v1449, %v5690
    %v5692 = vpop.f32.mrb[0].mxu0
    %v5693 = vadd.f32 %v1453, %v5692
    %v5694 = vpop.f32.mrb[0].mxu0
    %v5695 = vadd.f32 %v1449, %v5694
    %v5696 = vpop.f32.mrb[0].mxu0
    %v5697 = vadd.f32 %v1453, %v5696
    %5698 = vmatprep.mubr.bf16.mxu0 %v843
    %5699 = vmatmul.mubr.bf16.gmra.mrb[0].mxu0 %v842
    %v5700 = vpop.f32.mrb[0].mxu0
    %v5701 = vadd.f32 %v1449, %v5700
    %v5702 = vpop.f32.mrb[0].mxu0
    %v5703 = vadd.f32 %v1453, %v5702
    %v5704 = vpop.f32.mrb[0].mxu0
    %v5705 = vadd.f32 %v1449, %v5704
    %v5706 = vpop.f32.mrb[0].mxu0
    %v5707 = vadd.f32 %v1453, %v5706
    %5708 = vmatprep.mubr.bf16.mxu0 %v847
    %5709 = vmatmul.mubr.bf16.gmra.mrb[0].mxu0 %v846
    %v5710 = vpop.f32.mrb[0].mxu0
    %v5711 = vadd.f32 %v1449, %v5710
    %v5712 = vpop.f32.mrb[0].mxu0
    %v5713 = vadd.f32 %v1453, %v5712
    %v5714 = vpop.f32.mrb[0].mxu0
    %v5715 = vadd.f32 %v1449, %v5714
    %v5716 = vpop.f32.mrb[0].mxu0
    %v5717 = vadd.f32 %v1453, %v5716
    %5718 = vmatprep.mubr.bf16.mxu0 %v851
    %5719 = vmatmul.mubr.bf16.gmra.mrb[0].mxu0 %v850
    %v5720 = vpop.f32.mrb[0].mxu0
    %v5721 = vadd.f32 %v1449, %v5720
    %v5722 = vpop.f32.mrb[0].mxu0
    %v5723 = vadd.f32 %v1453, %v5722
    %v5724 = vpop.f32.mrb[0].mxu0
    %v5725 = vadd.f32 %v1449, %v5724
    %v5726 = vpop.f32.mrb[0].mxu0
    %v5727 = vadd.f32 %v1453, %v5726
    %5728 = vmatprep.mubr.bf16.mxu0 %v855
    %5729 = vmatmul.mubr.bf16.gmra.mrb[0].mxu0 %v854
    %v5730 = vpop.f32.mrb[0].mxu0
    %v5731 = vadd.f32 %v1449, %v5730
    %v5732 = vpop.f32.mrb[0].mxu0
    %v5733 = vadd.f32 %v1453, %v5732
    %v5734 = vpop.f32.mrb[0].mxu0
    %v5735 = vadd.f32 %v1449, %v5734
    %v5736 = vpop.f32.mrb[0].mxu0
    %v5737 = vadd.f32 %v1453, %v5736
    %5738 = vmatprep.mubr.bf16.mxu0 %v859
    %5739 = vmatmul.mubr.bf16.gmra.mrb[0].mxu0 %v858
    %v5740 = vpop.f32.mrb[0].mxu0
    %v5741 = vadd.f32 %v1449, %v5740
    %v5742 = vpop.f32.mrb[0].mxu0
    %v5743 = vadd.f32 %v1453, %v5742
    %v5744 = vpop.f32.mrb[0].mxu0
    %v5745 = vadd.f32 %v1449, %v5744
    %v5746 = vpop.f32.mrb[0].mxu0
    %v5747 = vadd.f32 %v1453, %v5746
    %5748 = vmatprep.mubr.bf16.mxu0 %v863
    %5749 = vmatmul.mubr.bf16.gmra.mrb[0].mxu0 %v862
    %v5750 = vpop.f32.mrb[0].mxu0
    %v5751 = vadd.f32 %v1449, %v5750
    %v5752 = vpop.f32.mrb[0].mxu0
    %v5753 = vadd.f32 %v1453, %v5752
    %v5754 = vpop.f32.mrb[0].mxu0
    %v5755 = vadd.f32 %v1449, %v5754
    %v5756 = vpop.f32.mrb[0].mxu0
    %v5757 = vadd.f32 %v1453, %v5756
    %5758 = vmatprep.mubr.bf16.mxu0 %v867
    %5759 = vmatmul.mubr.bf16.gmra.mrb[0].mxu0 %v866
    %v5760 = vpop.f32.mrb[0].mxu0
    %v5761 = vadd.f32 %v1449, %v5760
    %v5762 = vpop.f32.mrb[0].mxu0
    %v5763 = vadd.f32 %v1453, %v5762
    %v5764 = vpop.f32.mrb[0].mxu0
    %v5765 = vadd.f32 %v1449, %v5764
    %v5766 = vpop.f32.mrb[0].mxu0
    %v5767 = vadd.f32 %v1453, %v5766
    %5768 = vmatprep.mubr.bf16.mxu0 %v871
    %5769 = vmatmul.mubr.bf16.gmra.mrb[0].mxu0 %v870
    %v5770 = vpop.f32.mrb[0].mxu0
    %v5771 = vadd.f32 %v1449, %v5770
    %v5772 = vpop.f32.mrb[0].mxu0
    %v5773 = vadd.f32 %v1453, %v5772
    %v5774 = vpop.f32.mrb[0].mxu0
    %v5775 = vadd.f32 %v1449, %v5774
    %v5776 = vpop.f32.mrb[0].mxu0
    %v5777 = vadd.f32 %v1453, %v5776
    %5778 = vmatprep.mubr.bf16.mxu0 %v875
    %5779 = vmatmul.mubr.bf16.gmra.mrb[0].mxu0 %v874
    %v5780 = vpop.f32.mrb[0].mxu0
    %v5781 = vadd.f32 %v1449, %v5780
    %v5782 = vpop.f32.mrb[0].mxu0
    %v5783 = vadd.f32 %v1453, %v5782
    %v5784 = vpop.f32.mrb[0].mxu0
    %v5785 = vadd.f32 %v1449, %v5784
    %v5786 = vpop.f32.mrb[0].mxu0
    %v5787 = vadd.f32 %v1453, %v5786
    %5788 = vmatprep.mubr.bf16.mxu0 %v879
    %5789 = vmatmul.mubr.bf16.gmra.mrb[0].mxu0 %v878
    %v5790 = vpop.f32.mrb[0].mxu0
    %v5791 = vadd.f32 %v1449, %v5790
    %v5792 = vpop.f32.mrb[0].mxu0
    %v5793 = vadd.f32 %v1453, %v5792
    %v5794 = vpop.f32.mrb[0].mxu0
    %v5795 = vadd.f32 %v1449, %v5794
    %v5796 = vpop.f32.mrb[0].mxu0
    %v5797 = vadd.f32 %v1453, %v5796
    %5798 = vmatprep.mubr.bf16.mxu0 %v883
    %5799 = vmatmul.mubr.bf16.gmra.mrb[0].mxu0 %v882
    %v5800 = vpop.f32.mrb[0].mxu0
    %v5801 = vadd.f32 %v1449, %v5800
    %v5802 = vpop.f32.mrb[0].mxu0
    %v5803 = vadd.f32 %v1453, %v5802
    %v5804 = vpop.f32.mrb[0].mxu0
    %v5805 = vadd.f32 %v1449, %v5804
    %v5806 = vpop.f32.mrb[0].mxu0
    %v5807 = vadd.f32 %v1453, %v5806
    %5808 = vmatprep.mubr.bf16.mxu0 %v887
    %5809 = vmatmul.mubr.bf16.gmra.mrb[0].mxu0 %v886
    %v5810 = vpop.f32.mrb[0].mxu0
    %v5811 = vadd.f32 %v1449, %v5810
    %v5812 = vpop.f32.mrb[0].mxu0
    %v5813 = vadd.f32 %v1453, %v5812
    %v5814 = vpop.f32.mrb[0].mxu0
    %v5815 = vpop.f32.mrb[0].mxu0
    %5816 = vdwg.mxu0
    %5817 = vmatprep.subr.bf16.mxu0 %v3289
    %5818 = vmatpush1.bf16.msra.mxu0 %v3288
    %5819 = vmatprep.subr.bf16.mxu0 %v3305
    %5820 = vmatpush1.bf16.msra.mxu0 %v3304
    %5821 = vmatprep.subr.bf16.mxu0 %v3321
    %5822 = vmatpush1.bf16.msra.mxu0 %v3320
    %5823 = vmatprep.subr.bf16.mxu0 %v3337
    %5824 = vmatpush1.bf16.msra.mxu0 %v3336
    %5825 = vmatprep.subr.bf16.mxu0 %v3353
    %5826 = vmatpush1.bf16.msra.mxu0 %v3352
    %5827 = vmatprep.subr.bf16.mxu0 %v3369
    %5828 = vmatpush1.bf16.msra.mxu0 %v3368
    %5829 = vmatprep.subr.bf16.mxu0 %v3385
    %5830 = vmatpush1.bf16.msra.mxu0 %v3384
    %5831 = vmatprep.subr.bf16.mxu0 %v3401
    %5832 = vmatpush1.bf16.msra.mxu0 %v3400
    %5833 = vmatprep.subr.bf16.mxu0 %v3417
    %5834 = vmatpush1.bf16.msra.mxu0 %v3416
    %5835 = vmatprep.subr.bf16.mxu0 %v3433
    %5836 = vmatpush1.bf16.msra.mxu0 %v3432
    %5837 = vmatprep.subr.bf16.mxu0 %v3449
    %5838 = vmatpush1.bf16.msra.mxu0 %v3448
    %5839 = vmatprep.subr.bf16.mxu0 %v3465
    %5840 = vmatpush1.bf16.msra.mxu0 %v3464
    %5841 = vmatprep.subr.bf16.mxu0 %v3481
    %5842 = vmatpush1.bf16.msra.mxu0 %v3480
    %5843 = vmatprep.subr.bf16.mxu0 %v3497
    %5844 = vmatpush1.bf16.msra.mxu0 %v3496
    %5845 = vmatprep.subr.bf16.mxu0 %v3513
    %5846 = vmatpush1.bf16.msra.mxu0 %v3512
    %5847 = vmatprep.subr.bf16.mxu0 %v3529
    %5848 = vmatpush1.bf16.msra.mxu0 %v3528
    %5849 = vmatprep.mubr.bf16.mxu0 %v841
    %5850 = vmatmul.mubr.bf16.gmra.mrb[0].mxu0 %v840
    %v5851 = vpop.f32.mrb[0].mxu0
    %v5852 = vadd.f32 %v5691, %v5851
    %v5853 = vpop.f32.mrb[0].mxu0
    %v5854 = vadd.f32 %v5693, %v5853
    %v5855 = vpop.f32.mrb[0].mxu0
    %v5856 = vadd.f32 %v5695, %v5855
    %v5857 = vpop.f32.mrb[0].mxu0
    %v5858 = vadd.f32 %v5697, %v5857
    %5859 = vmatprep.mubr.bf16.mxu0 %v845
    %5860 = vmatmul.mubr.bf16.gmra.mrb[0].mxu0 %v844
    %v5861 = vpop.f32.mrb[0].mxu0
    %v5862 = vadd.f32 %v5701, %v5861
    %v5863 = vpop.f32.mrb[0].mxu0
    %v5864 = vadd.f32 %v5703, %v5863
    %v5865 = vpop.f32.mrb[0].mxu0
    %v5866 = vadd.f32 %v5705, %v5865
    %v5867 = vpop.f32.mrb[0].mxu0
    %v5868 = vadd.f32 %v5707, %v5867
    %5869 = vmatprep.mubr.bf16.mxu0 %v849
    %5870 = vmatmul.mubr.bf16.gmra.mrb[0].mxu0 %v848
    %v5871 = vpop.f32.mrb[0].mxu0
    %v5872 = vadd.f32 %v5711, %v5871
    %v5873 = vpop.f32.mrb[0].mxu0
    %v5874 = vadd.f32 %v5713, %v5873
    %v5875 = vpop.f32.mrb[0].mxu0
    %v5876 = vadd.f32 %v5715, %v5875
    %v5877 = vpop.f32.mrb[0].mxu0
    %v5878 = vadd.f32 %v5717, %v5877
    %5879 = vmatprep.mubr.bf16.mxu0 %v853
    %5880 = vmatmul.mubr.bf16.gmra.mrb[0].mxu0 %v852
    %v5881 = vpop.f32.mrb[0].mxu0
    %v5882 = vadd.f32 %v5721, %v5881
    %v5883 = vpop.f32.mrb[0].mxu0
    %v5884 = vadd.f32 %v5723, %v5883
    %v5885 = vpop.f32.mrb[0].mxu0
    %v5886 = vadd.f32 %v5725, %v5885
    %v5887 = vpop.f32.mrb[0].mxu0
    %v5888 = vadd.f32 %v5727, %v5887
    %5889 = vmatprep.mubr.bf16.mxu0 %v857
    %5890 = vmatmul.mubr.bf16.gmra.mrb[0].mxu0 %v856
    %v5891 = vpop.f32.mrb[0].mxu0
    %v5892 = vadd.f32 %v5731, %v5891
    %v5893 = vpop.f32.mrb[0].mxu0
    %v5894 = vadd.f32 %v5733, %v5893
    %v5895 = vpop.f32.mrb[0].mxu0
    %v5896 = vadd.f32 %v5735, %v5895
    %v5897 = vpop.f32.mrb[0].mxu0
    %v5898 = vadd.f32 %v5737, %v5897
    %5899 = vmatprep.mubr.bf16.mxu0 %v861
    %5900 = vmatmul.mubr.bf16.gmra.mrb[0].mxu0 %v860
    %v5901 = vpop.f32.mrb[0].mxu0
    %v5902 = vadd.f32 %v5741, %v5901
    %v5903 = vpop.f32.mrb[0].mxu0
    %v5904 = vadd.f32 %v5743, %v5903
    %v5905 = vpop.f32.mrb[0].mxu0
    %v5906 = vadd.f32 %v5745, %v5905
    %v5907 = vpop.f32.mrb[0].mxu0
    %v5908 = vadd.f32 %v5747, %v5907
    %5909 = vmatprep.mubr.bf16.mxu0 %v865
    %5910 = vmatmul.mubr.bf16.gmra.mrb[0].mxu0 %v864
    %v5911 = vpop.f32.mrb[0].mxu0
    %v5912 = vadd.f32 %v5751, %v5911
    %v5913 = vpop.f32.mrb[0].mxu0
    %v5914 = vadd.f32 %v5753, %v5913
    %v5915 = vpop.f32.mrb[0].mxu0
    %v5916 = vadd.f32 %v5755, %v5915
    %v5917 = vpop.f32.mrb[0].mxu0
    %v5918 = vadd.f32 %v5757, %v5917
    %5919 = vmatprep.mubr.bf16.mxu0 %v869
    %5920 = vmatmul.mubr.bf16.gmra.mrb[0].mxu0 %v868
    %v5921 = vpop.f32.mrb[0].mxu0
    %v5922 = vadd.f32 %v5761, %v5921
    %v5923 = vpop.f32.mrb[0].mxu0
    %v5924 = vadd.f32 %v5763, %v5923
    %v5925 = vpop.f32.mrb[0].mxu0
    %v5926 = vadd.f32 %v5765, %v5925
    %v5927 = vpop.f32.mrb[0].mxu0
    %v5928 = vadd.f32 %v5767, %v5927
    %5929 = vmatprep.mubr.bf16.mxu0 %v873
    %5930 = vmatmul.mubr.bf16.gmra.mrb[0].mxu0 %v872
    %v5931 = vpop.f32.mrb[0].mxu0
    %v5932 = vadd.f32 %v5771, %v5931
    %v5933 = vpop.f32.mrb[0].mxu0
    %v5934 = vadd.f32 %v5773, %v5933
    %v5935 = vpop.f32.mrb[0].mxu0
    %v5936 = vadd.f32 %v5775, %v5935
    %v5937 = vpop.f32.mrb[0].mxu0
    %v5938 = vadd.f32 %v5777, %v5937
    %5939 = vmatprep.mubr.bf16.mxu0 %v877
    %5940 = vmatmul.mubr.bf16.gmra.mrb[0].mxu0 %v876
    %v5941 = vpop.f32.mrb[0].mxu0
    %v5942 = vadd.f32 %v5781, %v5941
    %v5943 = vpop.f32.mrb[0].mxu0
    %v5944 = vadd.f32 %v5783, %v5943
    %v5945 = vpop.f32.mrb[0].mxu0
    %v5946 = vadd.f32 %v5785, %v5945
    %v5947 = vpop.f32.mrb[0].mxu0
    %v5948 = vadd.f32 %v5787, %v5947
    %5949 = vmatprep.mubr.bf16.mxu0 %v881
    %5950 = vmatmul.mubr.bf16.gmra.mrb[0].mxu0 %v880
    %v5951 = vpop.f32.mrb[0].mxu0
    %v5952 = vadd.f32 %v5791, %v5951
    %v5953 = vpop.f32.mrb[0].mxu0
    %v5954 = vadd.f32 %v5793, %v5953
    %v5955 = vpop.f32.mrb[0].mxu0
    %v5956 = vadd.f32 %v5795, %v5955
    %v5957 = vpop.f32.mrb[0].mxu0
    %v5958 = vadd.f32 %v5797, %v5957
    %5959 = vmatprep.mubr.bf16.mxu0 %v885
    %5960 = vmatmul.mubr.bf16.gmra.mrb[0].mxu0 %v884
    %v5961 = vpop.f32.mrb[0].mxu0
    %v5962 = vadd.f32 %v5801, %v5961
    %v5963 = vpop.f32.mrb[0].mxu0
    %v5964 = vadd.f32 %v5803, %v5963
    %v5965 = vpop.f32.mrb[0].mxu0
    %v5966 = vadd.f32 %v5805, %v5965
    %v5967 = vpop.f32.mrb[0].mxu0
    %v5968 = vadd.f32 %v5807, %v5967
    %5969 = vmatprep.mubr.bf16.mxu0 %v889
    %5970 = vmatmul.mubr.bf16.gmra.mrb[0].mxu0 %v888
    %v5971 = vpop.f32.mrb[0].mxu0
    %v5972 = vadd.f32 %v5811, %v5971
    %v5973 = vpop.f32.mrb[0].mxu0
    %v5974 = vadd.f32 %v5813, %v5973
    %v5975 = vpop.f32.mrb[0].mxu0
    %v5976 = vpop.f32.mrb[0].mxu0
    %5977 = vdwg.mxu0
    %5978 = vmatprep.subr.bf16.mxu0 %v3035
    %5979 = vmatpush1.bf16.msra.mxu0 %v3034
    %5980 = vmatprep.subr.bf16.mxu0 %v3051
    %5981 = vmatpush1.bf16.msra.mxu0 %v3050
    %5982 = vmatprep.subr.bf16.mxu0 %v3067
    %5983 = vmatpush1.bf16.msra.mxu0 %v3066
    %5984 = vmatprep.subr.bf16.mxu0 %v3083
    %5985 = vmatpush1.bf16.msra.mxu0 %v3082
    %5986 = vmatprep.subr.bf16.mxu0 %v3099
    %5987 = vmatpush1.bf16.msra.mxu0 %v3098
    %5988 = vmatprep.subr.bf16.mxu0 %v3115
    %5989 = vmatpush1.bf16.msra.mxu0 %v3114
    %5990 = vmatprep.subr.bf16.mxu0 %v3131
    %5991 = vmatpush1.bf16.msra.mxu0 %v3130
    %5992 = vmatprep.subr.bf16.mxu0 %v3147
    %5993 = vmatpush1.bf16.msra.mxu0 %v3146
    %5994 = vmatprep.subr.bf16.mxu0 %v3163
    %5995 = vmatpush1.bf16.msra.mxu0 %v3162
    %5996 = vmatprep.subr.bf16.mxu0 %v3179
    %5997 = vmatpush1.bf16.msra.mxu0 %v3178
    %5998 = vmatprep.subr.bf16.mxu0 %v3195
    %5999 = vmatpush1.bf16.msra.mxu0 %v3194
    %6000 = vmatprep.subr.bf16.mxu0 %v3211
    %6001 = vmatpush1.bf16.msra.mxu0 %v3210
    %6002 = vmatprep.subr.bf16.mxu0 %v3227
    %6003 = vmatpush1.bf16.msra.mxu0 %v3226
    %6004 = vmatprep.subr.bf16.mxu0 %v3243
    %6005 = vmatpush1.bf16.msra.mxu0 %v3242
    %6006 = vmatprep.subr.bf16.mxu0 %v3259
    %6007 = vmatpush1.bf16.msra.mxu0 %v3258
    %6008 = vmatprep.subr.bf16.mxu0 %v3275
    %6009 = vmatpush1.bf16.msra.mxu0 %v3274
    %6010 = vmatprep.mubr.bf16.mxu0 %v839
    %6011 = vmatmul.mubr.bf16.gmra.mrb[0].mxu0 %v838
    %v6012 = vpop.f32.mrb[0].mxu0
    %v6013 = vadd.f32 %v1457, %v6012
    %v6014 = vpop.f32.mrb[0].mxu0
    %v6015 = vadd.f32 %v1461, %v6014
    %v6016 = vpop.f32.mrb[0].mxu0
    %v6017 = vadd.f32 %v1457, %v6016
    %v6018 = vpop.f32.mrb[0].mxu0
    %v6019 = vadd.f32 %v1461, %v6018
    %6020 = vmatprep.mubr.bf16.mxu0 %v843
    %6021 = vmatmul.mubr.bf16.gmra.mrb[0].mxu0 %v842
    %v6022 = vpop.f32.mrb[0].mxu0
    %v6023 = vadd.f32 %v1457, %v6022
    %v6024 = vpop.f32.mrb[0].mxu0
    %v6025 = vadd.f32 %v1461, %v6024
    %v6026 = vpop.f32.mrb[0].mxu0
    %v6027 = vadd.f32 %v1457, %v6026
    %v6028 = vpop.f32.mrb[0].mxu0
    %v6029 = vadd.f32 %v1461, %v6028
    %6030 = vmatprep.mubr.bf16.mxu0 %v847
    %6031 = vmatmul.mubr.bf16.gmra.mrb[0].mxu0 %v846
    %v6032 = vpop.f32.mrb[0].mxu0
    %v6033 = vadd.f32 %v1457, %v6032
    %v6034 = vpop.f32.mrb[0].mxu0
    %v6035 = vadd.f32 %v1461, %v6034
    %v6036 = vpop.f32.mrb[0].mxu0
    %v6037 = vadd.f32 %v1457, %v6036
    %v6038 = vpop.f32.mrb[0].mxu0
    %v6039 = vadd.f32 %v1461, %v6038
    %6040 = vmatprep.mubr.bf16.mxu0 %v851
    %6041 = vmatmul.mubr.bf16.gmra.mrb[0].mxu0 %v850
    %v6042 = vpop.f32.mrb[0].mxu0
    %v6043 = vadd.f32 %v1457, %v6042
    %v6044 = vpop.f32.mrb[0].mxu0
    %v6045 = vadd.f32 %v1461, %v6044
    %v6046 = vpop.f32.mrb[0].mxu0
    %v6047 = vadd.f32 %v1457, %v6046
    %v6048 = vpop.f32.mrb[0].mxu0
    %v6049 = vadd.f32 %v1461, %v6048
    %6050 = vmatprep.mubr.bf16.mxu0 %v855
    %6051 = vmatmul.mubr.bf16.gmra.mrb[0].mxu0 %v854
    %v6052 = vpop.f32.mrb[0].mxu0
    %v6053 = vadd.f32 %v1457, %v6052
    %v6054 = vpop.f32.mrb[0].mxu0
    %v6055 = vadd.f32 %v1461, %v6054
    %v6056 = vpop.f32.mrb[0].mxu0
    %v6057 = vadd.f32 %v1457, %v6056
    %v6058 = vpop.f32.mrb[0].mxu0
    %v6059 = vadd.f32 %v1461, %v6058
    %6060 = vmatprep.mubr.bf16.mxu0 %v859
    %6061 = vmatmul.mubr.bf16.gmra.mrb[0].mxu0 %v858
    %v6062 = vpop.f32.mrb[0].mxu0
    %v6063 = vadd.f32 %v1457, %v6062
    %v6064 = vpop.f32.mrb[0].mxu0
    %v6065 = vadd.f32 %v1461, %v6064
    %v6066 = vpop.f32.mrb[0].mxu0
    %v6067 = vadd.f32 %v1457, %v6066
    %v6068 = vpop.f32.mrb[0].mxu0
    %v6069 = vadd.f32 %v1461, %v6068
    %6070 = vmatprep.mubr.bf16.mxu0 %v863
    %6071 = vmatmul.mubr.bf16.gmra.mrb[0].mxu0 %v862
    %v6072 = vpop.f32.mrb[0].mxu0
    %v6073 = vadd.f32 %v1457, %v6072
    %v6074 = vpop.f32.mrb[0].mxu0
    %v6075 = vadd.f32 %v1461, %v6074
    %v6076 = vpop.f32.mrb[0].mxu0
    %v6077 = vadd.f32 %v1457, %v6076
    %v6078 = vpop.f32.mrb[0].mxu0
    %v6079 = vadd.f32 %v1461, %v6078
    %6080 = vmatprep.mubr.bf16.mxu0 %v867
    %6081 = vmatmul.mubr.bf16.gmra.mrb[0].mxu0 %v866
    %v6082 = vpop.f32.mrb[0].mxu0
    %v6083 = vadd.f32 %v1457, %v6082
    %v6084 = vpop.f32.mrb[0].mxu0
    %v6085 = vadd.f32 %v1461, %v6084
    %v6086 = vpop.f32.mrb[0].mxu0
    %v6087 = vadd.f32 %v1457, %v6086
    %v6088 = vpop.f32.mrb[0].mxu0
    %v6089 = vadd.f32 %v1461, %v6088
    %6090 = vmatprep.mubr.bf16.mxu0 %v871
    %6091 = vmatmul.mubr.bf16.gmra.mrb[0].mxu0 %v870
    %v6092 = vpop.f32.mrb[0].mxu0
    %v6093 = vadd.f32 %v1457, %v6092
    %v6094 = vpop.f32.mrb[0].mxu0
    %v6095 = vadd.f32 %v1461, %v6094
    %v6096 = vpop.f32.mrb[0].mxu0
    %v6097 = vadd.f32 %v1457, %v6096
    %v6098 = vpop.f32.mrb[0].mxu0
    %v6099 = vadd.f32 %v1461, %v6098
    %6100 = vmatprep.mubr.bf16.mxu0 %v875
    %6101 = vmatmul.mubr.bf16.gmra.mrb[0].mxu0 %v874
    %v6102 = vpop.f32.mrb[0].mxu0
    %v6103 = vadd.f32 %v1457, %v6102
    %v6104 = vpop.f32.mrb[0].mxu0
    %v6105 = vadd.f32 %v1461, %v6104
    %v6106 = vpop.f32.mrb[0].mxu0
    %v6107 = vadd.f32 %v1457, %v6106
    %v6108 = vpop.f32.mrb[0].mxu0
    %v6109 = vadd.f32 %v1461, %v6108
    %6110 = vmatprep.mubr.bf16.mxu0 %v879
    %6111 = vmatmul.mubr.bf16.gmra.mrb[0].mxu0 %v878
    %v6112 = vpop.f32.mrb[0].mxu0
    %v6113 = vadd.f32 %v1457, %v6112
    %v6114 = vpop.f32.mrb[0].mxu0
    %v6115 = vadd.f32 %v1461, %v6114
    %v6116 = vpop.f32.mrb[0].mxu0
    %v6117 = vadd.f32 %v1457, %v6116
    %v6118 = vpop.f32.mrb[0].mxu0
    %v6119 = vadd.f32 %v1461, %v6118
    %6120 = vmatprep.mubr.bf16.mxu0 %v883
    %6121 = vmatmul.mubr.bf16.gmra.mrb[0].mxu0 %v882
    %v6122 = vpop.f32.mrb[0].mxu0
    %v6123 = vadd.f32 %v1457, %v6122
    %v6124 = vpop.f32.mrb[0].mxu0
    %v6125 = vadd.f32 %v1461, %v6124
    %v6126 = vpop.f32.mrb[0].mxu0
    %v6127 = vadd.f32 %v1457, %v6126
    %v6128 = vpop.f32.mrb[0].mxu0
    %v6129 = vadd.f32 %v1461, %v6128
    %6130 = vmatprep.mubr.bf16.mxu0 %v887
    %6131 = vmatmul.mubr.bf16.gmra.mrb[0].mxu0 %v886
    %v6132 = vpop.f32.mrb[0].mxu0
    %v6133 = vadd.f32 %v1457, %v6132
    %v6134 = vpop.f32.mrb[0].mxu0
    %v6135 = vadd.f32 %v1461, %v6134
    %v6136 = vpop.f32.mrb[0].mxu0
    %v6137 = vpop.f32.mrb[0].mxu0
    %6138 = vdwg.mxu0
    %6139 = vmatprep.subr.bf16.mxu0 %v3291
    %6140 = vmatpush1.bf16.msra.mxu0 %v3290
    %6141 = vmatprep.subr.bf16.mxu0 %v3307
    %6142 = vmatpush1.bf16.msra.mxu0 %v3306
    %6143 = vmatprep.subr.bf16.mxu0 %v3323
    %6144 = vmatpush1.bf16.msra.mxu0 %v3322
    %6145 = vmatprep.subr.bf16.mxu0 %v3339
    %6146 = vmatpush1.bf16.msra.mxu0 %v3338
    %6147 = vmatprep.subr.bf16.mxu0 %v3355
    %6148 = vmatpush1.bf16.msra.mxu0 %v3354
    %6149 = vmatprep.subr.bf16.mxu0 %v3371
    %6150 = vmatpush1.bf16.msra.mxu0 %v3370
    %6151 = vmatprep.subr.bf16.mxu0 %v3387
    %6152 = vmatpush1.bf16.msra.mxu0 %v3386
    %6153 = vmatprep.subr.bf16.mxu0 %v3403
    %6154 = vmatpush1.bf16.msra.mxu0 %v3402
    %6155 = vmatprep.subr.bf16.mxu0 %v3419
    %6156 = vmatpush1.bf16.msra.mxu0 %v3418
    %6157 = vmatprep.subr.bf16.mxu0 %v3435
    %6158 = vmatpush1.bf16.msra.mxu0 %v3434
    %6159 = vmatprep.subr.bf16.mxu0 %v3451
    %6160 = vmatpush1.bf16.msra.mxu0 %v3450
    %6161 = vmatprep.subr.bf16.mxu0 %v3467
    %6162 = vmatpush1.bf16.msra.mxu0 %v3466
    %6163 = vmatprep.subr.bf16.mxu0 %v3483
    %6164 = vmatpush1.bf16.msra.mxu0 %v3482
    %6165 = vmatprep.subr.bf16.mxu0 %v3499
    %6166 = vmatpush1.bf16.msra.mxu0 %v3498
    %6167 = vmatprep.subr.bf16.mxu0 %v3515
    %6168 = vmatpush1.bf16.msra.mxu0 %v3514
    %6169 = vmatprep.subr.bf16.mxu0 %v3531
    %6170 = vmatpush1.bf16.msra.mxu0 %v3530
    %6171 = vmatprep.mubr.bf16.mxu0 %v841
    %6172 = vmatmul.mubr.bf16.gmra.mrb[0].mxu0 %v840
    %v6173 = vpop.f32.mrb[0].mxu0
    %v6174 = vadd.f32 %v6013, %v6173
    %v6175 = vpop.f32.mrb[0].mxu0
    %v6176 = vadd.f32 %v6015, %v6175
    %v6177 = vpop.f32.mrb[0].mxu0
    %v6178 = vadd.f32 %v6017, %v6177
    %v6179 = vpop.f32.mrb[0].mxu0
    %v6180 = vadd.f32 %v6019, %v6179
    %6181 = vmatprep.mubr.bf16.mxu0 %v845
    %6182 = vmatmul.mubr.bf16.gmra.mrb[0].mxu0 %v844
    %v6183 = vpop.f32.mrb[0].mxu0
    %v6184 = vadd.f32 %v6023, %v6183
    %v6185 = vpop.f32.mrb[0].mxu0
    %v6186 = vadd.f32 %v6025, %v6185
    %v6187 = vpop.f32.mrb[0].mxu0
    %v6188 = vadd.f32 %v6027, %v6187
    %v6189 = vpop.f32.mrb[0].mxu0
    %v6190 = vadd.f32 %v6029, %v6189
    %6191 = vmatprep.mubr.bf16.mxu0 %v849
    %6192 = vmatmul.mubr.bf16.gmra.mrb[0].mxu0 %v848
    %v6193 = vpop.f32.mrb[0].mxu0
    %v6194 = vadd.f32 %v6033, %v6193
    %v6195 = vpop.f32.mrb[0].mxu0
    %v6196 = vadd.f32 %v6035, %v6195
    %v6197 = vpop.f32.mrb[0].mxu0
    %v6198 = vadd.f32 %v6037, %v6197
    %v6199 = vpop.f32.mrb[0].mxu0
    %v6200 = vadd.f32 %v6039, %v6199
    %6201 = vmatprep.mubr.bf16.mxu0 %v853
    %6202 = vmatmul.mubr.bf16.gmra.mrb[0].mxu0 %v852
    %v6203 = vpop.f32.mrb[0].mxu0
    %v6204 = vadd.f32 %v6043, %v6203
    %v6205 = vpop.f32.mrb[0].mxu0
    %v6206 = vadd.f32 %v6045, %v6205
    %v6207 = vpop.f32.mrb[0].mxu0
    %v6208 = vadd.f32 %v6047, %v6207
    %v6209 = vpop.f32.mrb[0].mxu0
    %v6210 = vadd.f32 %v6049, %v6209
    %6211 = vmatprep.mubr.bf16.mxu0 %v857
    %6212 = vmatmul.mubr.bf16.gmra.mrb[0].mxu0 %v856
    %v6213 = vpop.f32.mrb[0].mxu0
    %v6214 = vadd.f32 %v6053, %v6213
    %v6215 = vpop.f32.mrb[0].mxu0
    %v6216 = vadd.f32 %v6055, %v6215
    %v6217 = vpop.f32.mrb[0].mxu0
    %v6218 = vadd.f32 %v6057, %v6217
    %v6219 = vpop.f32.mrb[0].mxu0
    %v6220 = vadd.f32 %v6059, %v6219
    %6221 = vmatprep.mubr.bf16.mxu0 %v861
    %6222 = vmatmul.mubr.bf16.gmra.mrb[0].mxu0 %v860
    %v6223 = vpop.f32.mrb[0].mxu0
    %v6224 = vadd.f32 %v6063, %v6223
    %v6225 = vpop.f32.mrb[0].mxu0
    %v6226 = vadd.f32 %v6065, %v6225
    %v6227 = vpop.f32.mrb[0].mxu0
    %v6228 = vadd.f32 %v6067, %v6227
    %v6229 = vpop.f32.mrb[0].mxu0
    %v6230 = vadd.f32 %v6069, %v6229
    %6231 = vmatprep.mubr.bf16.mxu0 %v865
    %6232 = vmatmul.mubr.bf16.gmra.mrb[0].mxu0 %v864
    %v6233 = vpop.f32.mrb[0].mxu0
    %v6234 = vadd.f32 %v6073, %v6233
    %v6235 = vpop.f32.mrb[0].mxu0
    %v6236 = vadd.f32 %v6075, %v6235
    %v6237 = vpop.f32.mrb[0].mxu0
    %v6238 = vadd.f32 %v6077, %v6237
    %v6239 = vpop.f32.mrb[0].mxu0
    %v6240 = vadd.f32 %v6079, %v6239
    %6241 = vmatprep.mubr.bf16.mxu0 %v869
    %6242 = vmatmul.mubr.bf16.gmra.mrb[0].mxu0 %v868
    %v6243 = vpop.f32.mrb[0].mxu0
    %v6244 = vadd.f32 %v6083, %v6243
    %v6245 = vpop.f32.mrb[0].mxu0
    %v6246 = vadd.f32 %v6085, %v6245
    %v6247 = vpop.f32.mrb[0].mxu0
    %v6248 = vadd.f32 %v6087, %v6247
    %v6249 = vpop.f32.mrb[0].mxu0
    %v6250 = vadd.f32 %v6089, %v6249
    %6251 = vmatprep.mubr.bf16.mxu0 %v873
    %6252 = vmatmul.mubr.bf16.gmra.mrb[0].mxu0 %v872
    %v6253 = vpop.f32.mrb[0].mxu0
    %v6254 = vadd.f32 %v6093, %v6253
    %v6255 = vpop.f32.mrb[0].mxu0
    %v6256 = vadd.f32 %v6095, %v6255
    %v6257 = vpop.f32.mrb[0].mxu0
    %v6258 = vadd.f32 %v6097, %v6257
    %v6259 = vpop.f32.mrb[0].mxu0
    %v6260 = vadd.f32 %v6099, %v6259
    %6261 = vmatprep.mubr.bf16.mxu0 %v877
    %6262 = vmatmul.mubr.bf16.gmra.mrb[0].mxu0 %v876
    %v6263 = vpop.f32.mrb[0].mxu0
    %v6264 = vadd.f32 %v6103, %v6263
    %v6265 = vpop.f32.mrb[0].mxu0
    %v6266 = vadd.f32 %v6105, %v6265
    %v6267 = vpop.f32.mrb[0].mxu0
    %v6268 = vadd.f32 %v6107, %v6267
    %v6269 = vpop.f32.mrb[0].mxu0
    %v6270 = vadd.f32 %v6109, %v6269
    %6271 = vmatprep.mubr.bf16.mxu0 %v881
    %6272 = vmatmul.mubr.bf16.gmra.mrb[0].mxu0 %v880
    %v6273 = vpop.f32.mrb[0].mxu0
    %v6274 = vadd.f32 %v6113, %v6273
    %v6275 = vpop.f32.mrb[0].mxu0
    %v6276 = vadd.f32 %v6115, %v6275
    %v6277 = vpop.f32.mrb[0].mxu0
    %v6278 = vadd.f32 %v6117, %v6277
    %v6279 = vpop.f32.mrb[0].mxu0
    %v6280 = vadd.f32 %v6119, %v6279
    %6281 = vmatprep.mubr.bf16.mxu0 %v885
    %6282 = vmatmul.mubr.bf16.gmra.mrb[0].mxu0 %v884
    %v6283 = vpop.f32.mrb[0].mxu0
    %v6284 = vadd.f32 %v6123, %v6283
    %v6285 = vpop.f32.mrb[0].mxu0
    %v6286 = vadd.f32 %v6125, %v6285
    %v6287 = vpop.f32.mrb[0].mxu0
    %v6288 = vadd.f32 %v6127, %v6287
    %v6289 = vpop.f32.mrb[0].mxu0
    %v6290 = vadd.f32 %v6129, %v6289
    %6291 = vmatprep.mubr.bf16.mxu0 %v889
    %6292 = vmatmul.mubr.bf16.gmra.mrb[0].mxu0 %v888
    %v6293 = vpop.f32.mrb[0].mxu0
    %v6294 = vadd.f32 %v6133, %v6293
    %v6295 = vpop.f32.mrb[0].mxu0
    %v6296 = vadd.f32 %v6135, %v6295
    %v6297 = vpop.f32.mrb[0].mxu0
    %v6298 = vpop.f32.mrb[0].mxu0
    %6299 = vdwg.mxu0
    %6300 = vmatprep.subr.bf16.mxu0 %v3037
    %6301 = vmatpush1.bf16.msra.mxu0 %v3036
    %6302 = vmatprep.subr.bf16.mxu0 %v3053
    %6303 = vmatpush1.bf16.msra.mxu0 %v3052
    %6304 = vmatprep.subr.bf16.mxu0 %v3069
    %6305 = vmatpush1.bf16.msra.mxu0 %v3068
    %6306 = vmatprep.subr.bf16.mxu0 %v3085
    %6307 = vmatpush1.bf16.msra.mxu0 %v3084
    %6308 = vmatprep.subr.bf16.mxu0 %v3101
    %6309 = vmatpush1.bf16.msra.mxu0 %v3100
    %6310 = vmatprep.subr.bf16.mxu0 %v3117
    %6311 = vmatpush1.bf16.msra.mxu0 %v3116
    %6312 = vmatprep.subr.bf16.mxu0 %v3133
    %6313 = vmatpush1.bf16.msra.mxu0 %v3132
    %6314 = vmatprep.subr.bf16.mxu0 %v3149
    %6315 = vmatpush1.bf16.msra.mxu0 %v3148
    %6316 = vmatprep.subr.bf16.mxu0 %v3165
    %6317 = vmatpush1.bf16.msra.mxu0 %v3164
    %6318 = vmatprep.subr.bf16.mxu0 %v3181
    %6319 = vmatpush1.bf16.msra.mxu0 %v3180
    %6320 = vmatprep.subr.bf16.mxu0 %v3197
    %6321 = vmatpush1.bf16.msra.mxu0 %v3196
    %6322 = vmatprep.subr.bf16.mxu0 %v3213
    %6323 = vmatpush1.bf16.msra.mxu0 %v3212
    %6324 = vmatprep.subr.bf16.mxu0 %v3229
    %6325 = vmatpush1.bf16.msra.mxu0 %v3228
    %6326 = vmatprep.subr.bf16.mxu0 %v3245
    %6327 = vmatpush1.bf16.msra.mxu0 %v3244
    %6328 = vmatprep.subr.bf16.mxu0 %v3261
    %6329 = vmatpush1.bf16.msra.mxu0 %v3260
    %6330 = vmatprep.subr.bf16.mxu0 %v3277
    %6331 = vmatpush1.bf16.msra.mxu0 %v3276
    %6332 = vmatprep.mubr.bf16.mxu0 %v839
    %6333 = vmatmul.mubr.bf16.gmra.mrb[0].mxu0 %v838
    %v6334 = vpop.f32.mrb[0].mxu0
    %v6335 = vadd.f32 %v1465, %v6334
    %v6336 = vpop.f32.mrb[0].mxu0
    %v6337 = vadd.f32 %v1469, %v6336
    %v6338 = vpop.f32.mrb[0].mxu0
    %v6339 = vadd.f32 %v1465, %v6338
    %v6340 = vpop.f32.mrb[0].mxu0
    %v6341 = vadd.f32 %v1469, %v6340
    %6342 = vmatprep.mubr.bf16.mxu0 %v843
    %6343 = vmatmul.mubr.bf16.gmra.mrb[0].mxu0 %v842
    %v6344 = vpop.f32.mrb[0].mxu0
    %v6345 = vadd.f32 %v1465, %v6344
    %v6346 = vpop.f32.mrb[0].mxu0
    %v6347 = vadd.f32 %v1469, %v6346
    %v6348 = vpop.f32.mrb[0].mxu0
    %v6349 = vadd.f32 %v1465, %v6348
    %v6350 = vpop.f32.mrb[0].mxu0
    %v6351 = vadd.f32 %v1469, %v6350
    %6352 = vmatprep.mubr.bf16.mxu0 %v847
    %6353 = vmatmul.mubr.bf16.gmra.mrb[0].mxu0 %v846
    %v6354 = vpop.f32.mrb[0].mxu0
    %v6355 = vadd.f32 %v1465, %v6354
    %v6356 = vpop.f32.mrb[0].mxu0
    %v6357 = vadd.f32 %v1469, %v6356
    %v6358 = vpop.f32.mrb[0].mxu0
    %v6359 = vadd.f32 %v1465, %v6358
    %v6360 = vpop.f32.mrb[0].mxu0
    %v6361 = vadd.f32 %v1469, %v6360
    %6362 = vmatprep.mubr.bf16.mxu0 %v851
    %6363 = vmatmul.mubr.bf16.gmra.mrb[0].mxu0 %v850
    %v6364 = vpop.f32.mrb[0].mxu0
    %v6365 = vadd.f32 %v1465, %v6364
    %v6366 = vpop.f32.mrb[0].mxu0
    %v6367 = vadd.f32 %v1469, %v6366
    %v6368 = vpop.f32.mrb[0].mxu0
    %v6369 = vadd.f32 %v1465, %v6368
    %v6370 = vpop.f32.mrb[0].mxu0
    %v6371 = vadd.f32 %v1469, %v6370
    %6372 = vmatprep.mubr.bf16.mxu0 %v855
    %6373 = vmatmul.mubr.bf16.gmra.mrb[0].mxu0 %v854
    %v6374 = vpop.f32.mrb[0].mxu0
    %v6375 = vadd.f32 %v1465, %v6374
    %v6376 = vpop.f32.mrb[0].mxu0
    %v6377 = vadd.f32 %v1469, %v6376
    %v6378 = vpop.f32.mrb[0].mxu0
    %v6379 = vadd.f32 %v1465, %v6378
    %v6380 = vpop.f32.mrb[0].mxu0
    %v6381 = vadd.f32 %v1469, %v6380
    %6382 = vmatprep.mubr.bf16.mxu0 %v859
    %6383 = vmatmul.mubr.bf16.gmra.mrb[0].mxu0 %v858
    %v6384 = vpop.f32.mrb[0].mxu0
    %v6385 = vadd.f32 %v1465, %v6384
    %v6386 = vpop.f32.mrb[0].mxu0
    %v6387 = vadd.f32 %v1469, %v6386
    %v6388 = vpop.f32.mrb[0].mxu0
    %v6389 = vadd.f32 %v1465, %v6388
    %v6390 = vpop.f32.mrb[0].mxu0
    %v6391 = vadd.f32 %v1469, %v6390
    %6392 = vmatprep.mubr.bf16.mxu0 %v863
    %6393 = vmatmul.mubr.bf16.gmra.mrb[0].mxu0 %v862
    %v6394 = vpop.f32.mrb[0].mxu0
    %v6395 = vadd.f32 %v1465, %v6394
    %v6396 = vpop.f32.mrb[0].mxu0
    %v6397 = vadd.f32 %v1469, %v6396
    %v6398 = vpop.f32.mrb[0].mxu0
    %v6399 = vadd.f32 %v1465, %v6398
    %v6400 = vpop.f32.mrb[0].mxu0
    %v6401 = vadd.f32 %v1469, %v6400
    %6402 = vmatprep.mubr.bf16.mxu0 %v867
    %6403 = vmatmul.mubr.bf16.gmra.mrb[0].mxu0 %v866
    %v6404 = vpop.f32.mrb[0].mxu0
    %v6405 = vadd.f32 %v1465, %v6404
    %v6406 = vpop.f32.mrb[0].mxu0
    %v6407 = vadd.f32 %v1469, %v6406
    %v6408 = vpop.f32.mrb[0].mxu0
    %v6409 = vadd.f32 %v1465, %v6408
    %v6410 = vpop.f32.mrb[0].mxu0
    %v6411 = vadd.f32 %v1469, %v6410
    %6412 = vmatprep.mubr.bf16.mxu0 %v871
    %6413 = vmatmul.mubr.bf16.gmra.mrb[0].mxu0 %v870
    %v6414 = vpop.f32.mrb[0].mxu0
    %v6415 = vadd.f32 %v1465, %v6414
    %v6416 = vpop.f32.mrb[0].mxu0
    %v6417 = vadd.f32 %v1469, %v6416
    %v6418 = vpop.f32.mrb[0].mxu0
    %v6419 = vadd.f32 %v1465, %v6418
    %v6420 = vpop.f32.mrb[0].mxu0
    %v6421 = vadd.f32 %v1469, %v6420
    %6422 = vmatprep.mubr.bf16.mxu0 %v875
    %6423 = vmatmul.mubr.bf16.gmra.mrb[0].mxu0 %v874
    %v6424 = vpop.f32.mrb[0].mxu0
    %v6425 = vadd.f32 %v1465, %v6424
    %v6426 = vpop.f32.mrb[0].mxu0
    %v6427 = vadd.f32 %v1469, %v6426
    %v6428 = vpop.f32.mrb[0].mxu0
    %v6429 = vadd.f32 %v1465, %v6428
    %v6430 = vpop.f32.mrb[0].mxu0
    %v6431 = vadd.f32 %v1469, %v6430
    %6432 = vmatprep.mubr.bf16.mxu0 %v879
    %6433 = vmatmul.mubr.bf16.gmra.mrb[0].mxu0 %v878
    %v6434 = vpop.f32.mrb[0].mxu0
    %v6435 = vadd.f32 %v1465, %v6434
    %v6436 = vpop.f32.mrb[0].mxu0
    %v6437 = vadd.f32 %v1469, %v6436
    %v6438 = vpop.f32.mrb[0].mxu0
    %v6439 = vadd.f32 %v1465, %v6438
    %v6440 = vpop.f32.mrb[0].mxu0
    %v6441 = vadd.f32 %v1469, %v6440
    %6442 = vmatprep.mubr.bf16.mxu0 %v883
    %6443 = vmatmul.mubr.bf16.gmra.mrb[0].mxu0 %v882
    %v6444 = vpop.f32.mrb[0].mxu0
    %v6445 = vadd.f32 %v1465, %v6444
    %v6446 = vpop.f32.mrb[0].mxu0
    %v6447 = vadd.f32 %v1469, %v6446
    %v6448 = vpop.f32.mrb[0].mxu0
    %v6449 = vadd.f32 %v1465, %v6448
    %v6450 = vpop.f32.mrb[0].mxu0
    %v6451 = vadd.f32 %v1469, %v6450
    %6452 = vmatprep.mubr.bf16.mxu0 %v887
    %6453 = vmatmul.mubr.bf16.gmra.mrb[0].mxu0 %v886
    %v6454 = vpop.f32.mrb[0].mxu0
    %v6455 = vadd.f32 %v1465, %v6454
    %v6456 = vpop.f32.mrb[0].mxu0
    %v6457 = vadd.f32 %v1469, %v6456
    %v6458 = vpop.f32.mrb[0].mxu0
    %v6459 = vpop.f32.mrb[0].mxu0
    %6460 = vdwg.mxu0
    %6461 = vmatprep.subr.bf16.mxu0 %v3293
    %6462 = vmatpush1.bf16.msra.mxu0 %v3292
    %6463 = vmatprep.subr.bf16.mxu0 %v3309
    %6464 = vmatpush1.bf16.msra.mxu0 %v3308
    %6465 = vmatprep.subr.bf16.mxu0 %v3325
    %6466 = vmatpush1.bf16.msra.mxu0 %v3324
    %6467 = vmatprep.subr.bf16.mxu0 %v3341
    %6468 = vmatpush1.bf16.msra.mxu0 %v3340
    %6469 = vmatprep.subr.bf16.mxu0 %v3357
    %6470 = vmatpush1.bf16.msra.mxu0 %v3356
    %6471 = vmatprep.subr.bf16.mxu0 %v3373
    %6472 = vmatpush1.bf16.msra.mxu0 %v3372
    %6473 = vmatprep.subr.bf16.mxu0 %v3389
    %6474 = vmatpush1.bf16.msra.mxu0 %v3388
    %6475 = vmatprep.subr.bf16.mxu0 %v3405
    %6476 = vmatpush1.bf16.msra.mxu0 %v3404
    %6477 = vmatprep.subr.bf16.mxu0 %v3421
    %6478 = vmatpush1.bf16.msra.mxu0 %v3420
    %6479 = vmatprep.subr.bf16.mxu0 %v3437
    %6480 = vmatpush1.bf16.msra.mxu0 %v3436
    %6481 = vmatprep.subr.bf16.mxu0 %v3453
    %6482 = vmatpush1.bf16.msra.mxu0 %v3452
    %6483 = vmatprep.subr.bf16.mxu0 %v3469
    %6484 = vmatpush1.bf16.msra.mxu0 %v3468
    %6485 = vmatprep.subr.bf16.mxu0 %v3485
    %6486 = vmatpush1.bf16.msra.mxu0 %v3484
    %6487 = vmatprep.subr.bf16.mxu0 %v3501
    %6488 = vmatpush1.bf16.msra.mxu0 %v3500
    %6489 = vmatprep.subr.bf16.mxu0 %v3517
    %6490 = vmatpush1.bf16.msra.mxu0 %v3516
    %6491 = vmatprep.subr.bf16.mxu0 %v3533
    %6492 = vmatpush1.bf16.msra.mxu0 %v3532
    %6493 = vmatprep.mubr.bf16.mxu0 %v841
    %6494 = vmatmul.mubr.bf16.gmra.mrb[0].mxu0 %v840
    %v6495 = vpop.f32.mrb[0].mxu0
    %v6496 = vadd.f32 %v6335, %v6495
    %v6497 = vpop.f32.mrb[0].mxu0
    %v6498 = vadd.f32 %v6337, %v6497
    %v6499 = vpop.f32.mrb[0].mxu0
    %v6500 = vadd.f32 %v6339, %v6499
    %v6501 = vpop.f32.mrb[0].mxu0
    %v6502 = vadd.f32 %v6341, %v6501
    %6503 = vmatprep.mubr.bf16.mxu0 %v845
    %6504 = vmatmul.mubr.bf16.gmra.mrb[0].mxu0 %v844
    %v6505 = vpop.f32.mrb[0].mxu0
    %v6506 = vadd.f32 %v6345, %v6505
    %v6507 = vpop.f32.mrb[0].mxu0
    %v6508 = vadd.f32 %v6347, %v6507
    %v6509 = vpop.f32.mrb[0].mxu0
    %v6510 = vadd.f32 %v6349, %v6509
    %v6511 = vpop.f32.mrb[0].mxu0
    %v6512 = vadd.f32 %v6351, %v6511
    %6513 = vmatprep.mubr.bf16.mxu0 %v849
    %6514 = vmatmul.mubr.bf16.gmra.mrb[0].mxu0 %v848
    %v6515 = vpop.f32.mrb[0].mxu0
    %v6516 = vadd.f32 %v6355, %v6515
    %v6517 = vpop.f32.mrb[0].mxu0
    %v6518 = vadd.f32 %v6357, %v6517
    %v6519 = vpop.f32.mrb[0].mxu0
    %v6520 = vadd.f32 %v6359, %v6519
    %v6521 = vpop.f32.mrb[0].mxu0
    %v6522 = vadd.f32 %v6361, %v6521
    %6523 = vmatprep.mubr.bf16.mxu0 %v853
    %6524 = vmatmul.mubr.bf16.gmra.mrb[0].mxu0 %v852
    %v6525 = vpop.f32.mrb[0].mxu0
    %v6526 = vadd.f32 %v6365, %v6525
    %v6527 = vpop.f32.mrb[0].mxu0
    %v6528 = vadd.f32 %v6367, %v6527
    %v6529 = vpop.f32.mrb[0].mxu0
    %v6530 = vadd.f32 %v6369, %v6529
    %v6531 = vpop.f32.mrb[0].mxu0
    %v6532 = vadd.f32 %v6371, %v6531
    %6533 = vmatprep.mubr.bf16.mxu0 %v857
    %6534 = vmatmul.mubr.bf16.gmra.mrb[0].mxu0 %v856
    %v6535 = vpop.f32.mrb[0].mxu0
    %v6536 = vadd.f32 %v6375, %v6535
    %v6537 = vpop.f32.mrb[0].mxu0
    %v6538 = vadd.f32 %v6377, %v6537
    %v6539 = vpop.f32.mrb[0].mxu0
    %v6540 = vadd.f32 %v6379, %v6539
    %v6541 = vpop.f32.mrb[0].mxu0
    %v6542 = vadd.f32 %v6381, %v6541
    %6543 = vmatprep.mubr.bf16.mxu0 %v861
    %6544 = vmatmul.mubr.bf16.gmra.mrb[0].mxu0 %v860
    %v6545 = vpop.f32.mrb[0].mxu0
    %v6546 = vadd.f32 %v6385, %v6545
    %v6547 = vpop.f32.mrb[0].mxu0
    %v6548 = vadd.f32 %v6387, %v6547
    %v6549 = vpop.f32.mrb[0].mxu0
    %v6550 = vadd.f32 %v6389, %v6549
    %v6551 = vpop.f32.mrb[0].mxu0
    %v6552 = vadd.f32 %v6391, %v6551
    %6553 = vmatprep.mubr.bf16.mxu0 %v865
    %6554 = vmatmul.mubr.bf16.gmra.mrb[0].mxu0 %v864
    %v6555 = vpop.f32.mrb[0].mxu0
    %v6556 = vadd.f32 %v6395, %v6555
    %v6557 = vpop.f32.mrb[0].mxu0
    %v6558 = vadd.f32 %v6397, %v6557
    %v6559 = vpop.f32.mrb[0].mxu0
    %v6560 = vadd.f32 %v6399, %v6559
    %v6561 = vpop.f32.mrb[0].mxu0
    %v6562 = vadd.f32 %v6401, %v6561
    %6563 = vmatprep.mubr.bf16.mxu0 %v869
    %6564 = vmatmul.mubr.bf16.gmra.mrb[0].mxu0 %v868
    %v6565 = vpop.f32.mrb[0].mxu0
    %v6566 = vadd.f32 %v6405, %v6565
    %v6567 = vpop.f32.mrb[0].mxu0
    %v6568 = vadd.f32 %v6407, %v6567
    %v6569 = vpop.f32.mrb[0].mxu0
    %v6570 = vadd.f32 %v6409, %v6569
    %v6571 = vpop.f32.mrb[0].mxu0
    %v6572 = vadd.f32 %v6411, %v6571
    %6573 = vmatprep.mubr.bf16.mxu0 %v873
    %6574 = vmatmul.mubr.bf16.gmra.mrb[0].mxu0 %v872
    %v6575 = vpop.f32.mrb[0].mxu0
    %v6576 = vadd.f32 %v6415, %v6575
    %v6577 = vpop.f32.mrb[0].mxu0
    %v6578 = vadd.f32 %v6417, %v6577
    %v6579 = vpop.f32.mrb[0].mxu0
    %v6580 = vadd.f32 %v6419, %v6579
    %v6581 = vpop.f32.mrb[0].mxu0
    %v6582 = vadd.f32 %v6421, %v6581
    %6583 = vmatprep.mubr.bf16.mxu0 %v877
    %6584 = vmatmul.mubr.bf16.gmra.mrb[0].mxu0 %v876
    %v6585 = vpop.f32.mrb[0].mxu0
    %v6586 = vadd.f32 %v6425, %v6585
    %v6587 = vpop.f32.mrb[0].mxu0
    %v6588 = vadd.f32 %v6427, %v6587
    %v6589 = vpop.f32.mrb[0].mxu0
    %v6590 = vadd.f32 %v6429, %v6589
    %v6591 = vpop.f32.mrb[0].mxu0
    %v6592 = vadd.f32 %v6431, %v6591
    %6593 = vmatprep.mubr.bf16.mxu0 %v881
    %6594 = vmatmul.mubr.bf16.gmra.mrb[0].mxu0 %v880
    %v6595 = vpop.f32.mrb[0].mxu0
    %v6596 = vadd.f32 %v6435, %v6595
    %v6597 = vpop.f32.mrb[0].mxu0
    %v6598 = vadd.f32 %v6437, %v6597
    %v6599 = vpop.f32.mrb[0].mxu0
    %v6600 = vadd.f32 %v6439, %v6599
    %v6601 = vpop.f32.mrb[0].mxu0
    %v6602 = vadd.f32 %v6441, %v6601
    %6603 = vmatprep.mubr.bf16.mxu0 %v885
    %6604 = vmatmul.mubr.bf16.gmra.mrb[0].mxu0 %v884
    %v6605 = vpop.f32.mrb[0].mxu0
    %v6606 = vadd.f32 %v6445, %v6605
    %v6607 = vpop.f32.mrb[0].mxu0
    %v6608 = vadd.f32 %v6447, %v6607
    %v6609 = vpop.f32.mrb[0].mxu0
    %v6610 = vadd.f32 %v6449, %v6609
    %v6611 = vpop.f32.mrb[0].mxu0
    %v6612 = vadd.f32 %v6451, %v6611
    %6613 = vmatprep.mubr.bf16.mxu0 %v889
    %6614 = vmatmul.mubr.bf16.gmra.mrb[0].mxu0 %v888
    %v6615 = vpop.f32.mrb[0].mxu0
    %v6616 = vadd.f32 %v6455, %v6615
    %v6617 = vpop.f32.mrb[0].mxu0
    %v6618 = vadd.f32 %v6457, %v6617
    %v6619 = vpop.f32.mrb[0].mxu0
    %v6620 = vpop.f32.mrb[0].mxu0
    %6621 = vdwg.mxu0
    %6622 = vst [vmem:[%s3] sm:$0xff] %v4242
    %6623 = vst [vmem:[%s3 + $0x8] sm:$0xff] %v4244
    %6624 = vst [vmem:[%s3 + $0x10] sm:$0xff] %v4564
    %6625 = vst [vmem:[%s3 + $0x18] sm:$0xff] %v4566
    %6626 = vst [vmem:[%s3 + $0x20] sm:$0xff] %v4886
    %6627 = vst [vmem:[%s3 + $0x28] sm:$0xff] %v4888
    %6628 = vst [vmem:[%s3 + $0x30] sm:$0xff] %v5208
    %6629 = vst [vmem:[%s3 + $0x38] sm:$0xff] %v5210
    %6630 = vst [vmem:[%s3 + $0x40] sm:$0xff] %v5530
    %6631 = vst [vmem:[%s3 + $0x48] sm:$0xff] %v5532
    %6632 = vst [vmem:[%s3 + $0x50] sm:$0xff] %v5852
    %6633 = vst [vmem:[%s3 + $0x58] sm:$0xff] %v5854
    %6634 = vst [vmem:[%s3 + $0x60] sm:$0xff] %v6174
    %6635 = vst [vmem:[%s3 + $0x68] sm:$0xff] %v6176
    %6636 = vst [vmem:[%s3 + $0x70] sm:$0xff] %v6496
    %6637 = vst [vmem:[%s3 + $0x78] sm:$0xff] %v6498
    %6638 = vst [vmem:[%s3 + $0x80] sm:$0xff] %v4246
    %6639 = vst [vmem:[%s3 + $0x88] sm:$0xff] %v4248
    %6640 = vst [vmem:[%s3 + $0x90] sm:$0xff] %v4568
    %6641 = vst [vmem:[%s3 + $0x98] sm:$0xff] %v4570
    %6642 = vst [vmem:[%s3 + $0xa0] sm:$0xff] %v4890
    %6643 = vst [vmem:[%s3 + $0xa8] sm:$0xff] %v4892
    %6644 = vst [vmem:[%s3 + $0xb0] sm:$0xff] %v5212
    %6645 = vst [vmem:[%s3 + $0xb8] sm:$0xff] %v5214
    %6646 = vst [vmem:[%s3 + $0xc0] sm:$0xff] %v5534
    %6647 = vst [vmem:[%s3 + $0xc8] sm:$0xff] %v5536
    %6648 = vst [vmem:[%s3 + $0xd0] sm:$0xff] %v5856
    %6649 = vst [vmem:[%s3 + $0xd8] sm:$0xff] %v5858
    %6650 = vst [vmem:[%s3 + $0xe0] sm:$0xff] %v6178
    %6651 = vst [vmem:[%s3 + $0xe8] sm:$0xff] %v6180
    %6652 = vst [vmem:[%s3 + $0xf0] sm:$0xff] %v6500
    %6653 = vst [vmem:[%s3 + $0xf8] sm:$0xff] %v6502
    %6654 = vst [vmem:[%s3 + $0x100] sm:$0xff] %v4252
    %6655 = vst [vmem:[%s3 + $0x108] sm:$0xff] %v4254
    %6656 = vst [vmem:[%s3 + $0x110] sm:$0xff] %v4574
    %6657 = vst [vmem:[%s3 + $0x118] sm:$0xff] %v4576
    %6658 = vst [vmem:[%s3 + $0x120] sm:$0xff] %v4896
    %6659 = vst [vmem:[%s3 + $0x128] sm:$0xff] %v4898
    %6660 = vst [vmem:[%s3 + $0x130] sm:$0xff] %v5218
    %6661 = vst [vmem:[%s3 + $0x138] sm:$0xff] %v5220
    %6662 = vst [vmem:[%s3 + $0x140] sm:$0xff] %v5540
    %6663 = vst [vmem:[%s3 + $0x148] sm:$0xff] %v5542
    %6664 = vst [vmem:[%s3 + $0x150] sm:$0xff] %v5862
    %6665 = vst [vmem:[%s3 + $0x158] sm:$0xff] %v5864
    %6666 = vst [vmem:[%s3 + $0x160] sm:$0xff] %v6184
    %6667 = vst [vmem:[%s3 + $0x168] sm:$0xff] %v6186
    %6668 = vst [vmem:[%s3 + $0x170] sm:$0xff] %v6506
    %6669 = vst [vmem:[%s3 + $0x178] sm:$0xff] %v6508
    %6670 = vst [vmem:[%s3 + $0x180] sm:$0xff] %v4256
    %6671 = vst [vmem:[%s3 + $0x188] sm:$0xff] %v4258
    %6672 = vst [vmem:[%s3 + $0x190] sm:$0xff] %v4578
    %6673 = vst [vmem:[%s3 + $0x198] sm:$0xff] %v4580
    %6674 = vst [vmem:[%s3 + $0x1a0] sm:$0xff] %v4900
    %6675 = vst [vmem:[%s3 + $0x1a8] sm:$0xff] %v4902
    %6676 = vst [vmem:[%s3 + $0x1b0] sm:$0xff] %v5222
    %6677 = vst [vmem:[%s3 + $0x1b8] sm:$0xff] %v5224
    %6678 = vst [vmem:[%s3 + $0x1c0] sm:$0xff] %v5544
    %6679 = vst [vmem:[%s3 + $0x1c8] sm:$0xff] %v5546
    %6680 = vst [vmem:[%s3 + $0x1d0] sm:$0xff] %v5866
    %6681 = vst [vmem:[%s3 + $0x1d8] sm:$0xff] %v5868
    %6682 = vst [vmem:[%s3 + $0x1e0] sm:$0xff] %v6188
    %6683 = vst [vmem:[%s3 + $0x1e8] sm:$0xff] %v6190
    %6684 = vst [vmem:[%s3 + $0x1f0] sm:$0xff] %v6510
    %6685 = vst [vmem:[%s3 + $0x1f8] sm:$0xff] %v6512
    %6686 = vst [vmem:[%s3 + $0x200] sm:$0xff] %v4262
    %6687 = vst [vmem:[%s3 + $0x208] sm:$0xff] %v4264
    %6688 = vst [vmem:[%s3 + $0x210] sm:$0xff] %v4584
    %6689 = vst [vmem:[%s3 + $0x218] sm:$0xff] %v4586
    %6690 = vst [vmem:[%s3 + $0x220] sm:$0xff] %v4906
    %6691 = vst [vmem:[%s3 + $0x228] sm:$0xff] %v4908
    %6692 = vst [vmem:[%s3 + $0x230] sm:$0xff] %v5228
    %6693 = vst [vmem:[%s3 + $0x238] sm:$0xff] %v5230
    %6694 = vst [vmem:[%s3 + $0x240] sm:$0xff] %v5550
    %6695 = vst [vmem:[%s3 + $0x248] sm:$0xff] %v5552
    %6696 = vst [vmem:[%s3 + $0x250] sm:$0xff] %v5872
    %6697 = vst [vmem:[%s3 + $0x258] sm:$0xff] %v5874
    %6698 = vst [vmem:[%s3 + $0x260] sm:$0xff] %v6194
    %6699 = vst [vmem:[%s3 + $0x268] sm:$0xff] %v6196
    %6700 = vst [vmem:[%s3 + $0x270] sm:$0xff] %v6516
    %6701 = vst [vmem:[%s3 + $0x278] sm:$0xff] %v6518
    %6702 = vst [vmem:[%s3 + $0x280] sm:$0xff] %v4266
    %6703 = vst [vmem:[%s3 + $0x288] sm:$0xff] %v4268
    %6704 = vst [vmem:[%s3 + $0x290] sm:$0xff] %v4588
    %6705 = vst [vmem:[%s3 + $0x298] sm:$0xff] %v4590
    %6706 = vst [vmem:[%s3 + $0x2a0] sm:$0xff] %v4910
    %6707 = vst [vmem:[%s3 + $0x2a8] sm:$0xff] %v4912
    %6708 = vst [vmem:[%s3 + $0x2b0] sm:$0xff] %v5232
    %6709 = vst [vmem:[%s3 + $0x2b8] sm:$0xff] %v5234
    %6710 = vst [vmem:[%s3 + $0x2c0] sm:$0xff] %v5554
    %6711 = vst [vmem:[%s3 + $0x2c8] sm:$0xff] %v5556
    %6712 = vst [vmem:[%s3 + $0x2d0] sm:$0xff] %v5876
    %6713 = vst [vmem:[%s3 + $0x2d8] sm:$0xff] %v5878
    %6714 = vst [vmem:[%s3 + $0x2e0] sm:$0xff] %v6198
    %6715 = vst [vmem:[%s3 + $0x2e8] sm:$0xff] %v6200
    %6716 = vst [vmem:[%s3 + $0x2f0] sm:$0xff] %v6520
    %6717 = vst [vmem:[%s3 + $0x2f8] sm:$0xff] %v6522
    %6718 = vst [vmem:[%s3 + $0x300] sm:$0xff] %v4272
    %6719 = vst [vmem:[%s3 + $0x308] sm:$0xff] %v4274
    %6720 = vst [vmem:[%s3 + $0x310] sm:$0xff] %v4594
    %6721 = vst [vmem:[%s3 + $0x318] sm:$0xff] %v4596
    %6722 = vst [vmem:[%s3 + $0x320] sm:$0xff] %v4916
    %6723 = vst [vmem:[%s3 + $0x328] sm:$0xff] %v4918
    %6724 = vst [vmem:[%s3 + $0x330] sm:$0xff] %v5238
    %6725 = vst [vmem:[%s3 + $0x338] sm:$0xff] %v5240
    %6726 = vst [vmem:[%s3 + $0x340] sm:$0xff] %v5560
    %6727 = vst [vmem:[%s3 + $0x348] sm:$0xff] %v5562
    %6728 = vst [vmem:[%s3 + $0x350] sm:$0xff] %v5882
    %6729 = vst [vmem:[%s3 + $0x358] sm:$0xff] %v5884
    %6730 = vst [vmem:[%s3 + $0x360] sm:$0xff] %v6204
    %6731 = vst [vmem:[%s3 + $0x368] sm:$0xff] %v6206
    %6732 = vst [vmem:[%s3 + $0x370] sm:$0xff] %v6526
    %6733 = vst [vmem:[%s3 + $0x378] sm:$0xff] %v6528
    %6734 = vst [vmem:[%s3 + $0x380] sm:$0xff] %v4276
    %6735 = vst [vmem:[%s3 + $0x388] sm:$0xff] %v4278
    %6736 = vst [vmem:[%s3 + $0x390] sm:$0xff] %v4598
    %6737 = vst [vmem:[%s3 + $0x398] sm:$0xff] %v4600
    %6738 = vst [vmem:[%s3 + $0x3a0] sm:$0xff] %v4920
    %6739 = vst [vmem:[%s3 + $0x3a8] sm:$0xff] %v4922
    %6740 = vst [vmem:[%s3 + $0x3b0] sm:$0xff] %v5242
    %6741 = vst [vmem:[%s3 + $0x3b8] sm:$0xff] %v5244
    %6742 = vst [vmem:[%s3 + $0x3c0] sm:$0xff] %v5564
    %6743 = vst [vmem:[%s3 + $0x3c8] sm:$0xff] %v5566
    %6744 = vst [vmem:[%s3 + $0x3d0] sm:$0xff] %v5886
    %6745 = vst [vmem:[%s3 + $0x3d8] sm:$0xff] %v5888
    %6746 = vst [vmem:[%s3 + $0x3e0] sm:$0xff] %v6208
    %6747 = vst [vmem:[%s3 + $0x3e8] sm:$0xff] %v6210
    %6748 = vst [vmem:[%s3 + $0x3f0] sm:$0xff] %v6530
    %6749 = vst [vmem:[%s3 + $0x3f8] sm:$0xff] %v6532
    %6750 = vst [vmem:[%s3 + $0x400] sm:$0xff] %v4282
    %6751 = vst [vmem:[%s3 + $0x408] sm:$0xff] %v4284
    %6752 = vst [vmem:[%s3 + $0x410] sm:$0xff] %v4604
    %6753 = vst [vmem:[%s3 + $0x418] sm:$0xff] %v4606
    %6754 = vst [vmem:[%s3 + $0x420] sm:$0xff] %v4926
    %6755 = vst [vmem:[%s3 + $0x428] sm:$0xff] %v4928
    %6756 = vst [vmem:[%s3 + $0x430] sm:$0xff] %v5248
    %6757 = vst [vmem:[%s3 + $0x438] sm:$0xff] %v5250
    %6758 = vst [vmem:[%s3 + $0x440] sm:$0xff] %v5570
    %6759 = vst [vmem:[%s3 + $0x448] sm:$0xff] %v5572
    %6760 = vst [vmem:[%s3 + $0x450] sm:$0xff] %v5892
    %6761 = vst [vmem:[%s3 + $0x458] sm:$0xff] %v5894
    %6762 = vst [vmem:[%s3 + $0x460] sm:$0xff] %v6214
    %6763 = vst [vmem:[%s3 + $0x468] sm:$0xff] %v6216
    %6764 = vst [vmem:[%s3 + $0x470] sm:$0xff] %v6536
    %6765 = vst [vmem:[%s3 + $0x478] sm:$0xff] %v6538
    %6766 = vst [vmem:[%s3 + $0x480] sm:$0xff] %v4286
    %6767 = vst [vmem:[%s3 + $0x488] sm:$0xff] %v4288
    %6768 = vst [vmem:[%s3 + $0x490] sm:$0xff] %v4608
    %6769 = vst [vmem:[%s3 + $0x498] sm:$0xff] %v4610
    %6770 = vst [vmem:[%s3 + $0x4a0] sm:$0xff] %v4930
    %6771 = vst [vmem:[%s3 + $0x4a8] sm:$0xff] %v4932
    %6772 = vst [vmem:[%s3 + $0x4b0] sm:$0xff] %v5252
    %6773 = vst [vmem:[%s3 + $0x4b8] sm:$0xff] %v5254
    %6774 = vst [vmem:[%s3 + $0x4c0] sm:$0xff] %v5574
    %6775 = vst [vmem:[%s3 + $0x4c8] sm:$0xff] %v5576
    %6776 = vst [vmem:[%s3 + $0x4d0] sm:$0xff] %v5896
    %6777 = vst [vmem:[%s3 + $0x4d8] sm:$0xff] %v5898
    %6778 = vst [vmem:[%s3 + $0x4e0] sm:$0xff] %v6218
    %6779 = vst [vmem:[%s3 + $0x4e8] sm:$0xff] %v6220
    %6780 = vst [vmem:[%s3 + $0x4f0] sm:$0xff] %v6540
    %6781 = vst [vmem:[%s3 + $0x4f8] sm:$0xff] %v6542
    %6782 = vst [vmem:[%s3 + $0x500] sm:$0xff] %v4292
    %6783 = vst [vmem:[%s3 + $0x508] sm:$0xff] %v4294
    %6784 = vst [vmem:[%s3 + $0x510] sm:$0xff] %v4614
    %6785 = vst [vmem:[%s3 + $0x518] sm:$0xff] %v4616
    %6786 = vst [vmem:[%s3 + $0x520] sm:$0xff] %v4936
    %6787 = vst [vmem:[%s3 + $0x528] sm:$0xff] %v4938
    %6788 = vst [vmem:[%s3 + $0x530] sm:$0xff] %v5258
    %6789 = vst [vmem:[%s3 + $0x538] sm:$0xff] %v5260
    %6790 = vst [vmem:[%s3 + $0x540] sm:$0xff] %v5580
    %6791 = vst [vmem:[%s3 + $0x548] sm:$0xff] %v5582
    %6792 = vst [vmem:[%s3 + $0x550] sm:$0xff] %v5902
    %6793 = vst [vmem:[%s3 + $0x558] sm:$0xff] %v5904
    %6794 = vst [vmem:[%s3 + $0x560] sm:$0xff] %v6224
    %6795 = vst [vmem:[%s3 + $0x568] sm:$0xff] %v6226
    %6796 = vst [vmem:[%s3 + $0x570] sm:$0xff] %v6546
    %6797 = vst [vmem:[%s3 + $0x578] sm:$0xff] %v6548
    %6798 = vst [vmem:[%s3 + $0x580] sm:$0xff] %v4296
    %6799 = vst [vmem:[%s3 + $0x588] sm:$0xff] %v4298
    %6800 = vst [vmem:[%s3 + $0x590] sm:$0xff] %v4618
    %6801 = vst [vmem:[%s3 + $0x598] sm:$0xff] %v4620
    %6802 = vst [vmem:[%s3 + $0x5a0] sm:$0xff] %v4940
    %6803 = vst [vmem:[%s3 + $0x5a8] sm:$0xff] %v4942
    %6804 = vst [vmem:[%s3 + $0x5b0] sm:$0xff] %v5262
    %6805 = vst [vmem:[%s3 + $0x5b8] sm:$0xff] %v5264
    %6806 = vst [vmem:[%s3 + $0x5c0] sm:$0xff] %v5584
    %6807 = vst [vmem:[%s3 + $0x5c8] sm:$0xff] %v5586
    %6808 = vst [vmem:[%s3 + $0x5d0] sm:$0xff] %v5906
    %6809 = vst [vmem:[%s3 + $0x5d8] sm:$0xff] %v5908
    %6810 = vst [vmem:[%s3 + $0x5e0] sm:$0xff] %v6228
    %6811 = vst [vmem:[%s3 + $0x5e8] sm:$0xff] %v6230
    %6812 = vst [vmem:[%s3 + $0x5f0] sm:$0xff] %v6550
    %6813 = vst [vmem:[%s3 + $0x5f8] sm:$0xff] %v6552
    %6814 = vst [vmem:[%s3 + $0x600] sm:$0xff] %v4302
    %6815 = vst [vmem:[%s3 + $0x608] sm:$0xff] %v4304
    %6816 = vst [vmem:[%s3 + $0x610] sm:$0xff] %v4624
    %6817 = vst [vmem:[%s3 + $0x618] sm:$0xff] %v4626
    %6818 = vst [vmem:[%s3 + $0x620] sm:$0xff] %v4946
    %6819 = vst [vmem:[%s3 + $0x628] sm:$0xff] %v4948
    %6820 = vst [vmem:[%s3 + $0x630] sm:$0xff] %v5268
    %6821 = vst [vmem:[%s3 + $0x638] sm:$0xff] %v5270
    %6822 = vst [vmem:[%s3 + $0x640] sm:$0xff] %v5590
    %6823 = vst [vmem:[%s3 + $0x648] sm:$0xff] %v5592
    %6824 = vst [vmem:[%s3 + $0x650] sm:$0xff] %v5912
    %6825 = vst [vmem:[%s3 + $0x658] sm:$0xff] %v5914
    %6826 = vst [vmem:[%s3 + $0x660] sm:$0xff] %v6234
    %6827 = vst [vmem:[%s3 + $0x668] sm:$0xff] %v6236
    %6828 = vst [vmem:[%s3 + $0x670] sm:$0xff] %v6556
    %6829 = vst [vmem:[%s3 + $0x678] sm:$0xff] %v6558
    %6830 = vst [vmem:[%s3 + $0x680] sm:$0xff] %v4306
    %6831 = vst [vmem:[%s3 + $0x688] sm:$0xff] %v4308
    %6832 = vst [vmem:[%s3 + $0x690] sm:$0xff] %v4628
    %6833 = vst [vmem:[%s3 + $0x698] sm:$0xff] %v4630
    %6834 = vst [vmem:[%s3 + $0x6a0] sm:$0xff] %v4950
    %6835 = vst [vmem:[%s3 + $0x6a8] sm:$0xff] %v4952
    %6836 = vst [vmem:[%s3 + $0x6b0] sm:$0xff] %v5272
    %6837 = vst [vmem:[%s3 + $0x6b8] sm:$0xff] %v5274
    %6838 = vst [vmem:[%s3 + $0x6c0] sm:$0xff] %v5594
    %6839 = vst [vmem:[%s3 + $0x6c8] sm:$0xff] %v5596
    %6840 = vst [vmem:[%s3 + $0x6d0] sm:$0xff] %v5916
    %6841 = vst [vmem:[%s3 + $0x6d8] sm:$0xff] %v5918
    %6842 = vst [vmem:[%s3 + $0x6e0] sm:$0xff] %v6238
    %6843 = vst [vmem:[%s3 + $0x6e8] sm:$0xff] %v6240
    %6844 = vst [vmem:[%s3 + $0x6f0] sm:$0xff] %v6560
    %6845 = vst [vmem:[%s3 + $0x6f8] sm:$0xff] %v6562
    %6846 = vst [vmem:[%s3 + $0x700] sm:$0xff] %v4312
    %6847 = vst [vmem:[%s3 + $0x708] sm:$0xff] %v4314
    %6848 = vst [vmem:[%s3 + $0x710] sm:$0xff] %v4634
    %6849 = vst [vmem:[%s3 + $0x718] sm:$0xff] %v4636
    %6850 = vst [vmem:[%s3 + $0x720] sm:$0xff] %v4956
    %6851 = vst [vmem:[%s3 + $0x728] sm:$0xff] %v4958
    %6852 = vst [vmem:[%s3 + $0x730] sm:$0xff] %v5278
    %6853 = vst [vmem:[%s3 + $0x738] sm:$0xff] %v5280
    %6854 = vst [vmem:[%s3 + $0x740] sm:$0xff] %v5600
    %6855 = vst [vmem:[%s3 + $0x748] sm:$0xff] %v5602
    %6856 = vst [vmem:[%s3 + $0x750] sm:$0xff] %v5922
    %6857 = vst [vmem:[%s3 + $0x758] sm:$0xff] %v5924
    %6858 = vst [vmem:[%s3 + $0x760] sm:$0xff] %v6244
    %6859 = vst [vmem:[%s3 + $0x768] sm:$0xff] %v6246
    %6860 = vst [vmem:[%s3 + $0x770] sm:$0xff] %v6566
    %6861 = vst [vmem:[%s3 + $0x778] sm:$0xff] %v6568
    %6862 = vst [vmem:[%s3 + $0x780] sm:$0xff] %v4316
    %6863 = vst [vmem:[%s3 + $0x788] sm:$0xff] %v4318
    %6864 = vst [vmem:[%s3 + $0x790] sm:$0xff] %v4638
    %6865 = vst [vmem:[%s3 + $0x798] sm:$0xff] %v4640
    %6866 = vst [vmem:[%s3 + $0x7a0] sm:$0xff] %v4960
    %6867 = vst [vmem:[%s3 + $0x7a8] sm:$0xff] %v4962
    %6868 = vst [vmem:[%s3 + $0x7b0] sm:$0xff] %v5282
    %6869 = vst [vmem:[%s3 + $0x7b8] sm:$0xff] %v5284
    %6870 = vst [vmem:[%s3 + $0x7c0] sm:$0xff] %v5604
    %6871 = vst [vmem:[%s3 + $0x7c8] sm:$0xff] %v5606
    %6872 = vst [vmem:[%s3 + $0x7d0] sm:$0xff] %v5926
    %6873 = vst [vmem:[%s3 + $0x7d8] sm:$0xff] %v5928
    %6874 = vst [vmem:[%s3 + $0x7e0] sm:$0xff] %v6248
    %6875 = vst [vmem:[%s3 + $0x7e8] sm:$0xff] %v6250
    %6876 = vst [vmem:[%s3 + $0x7f0] sm:$0xff] %v6570
    %6877 = vst [vmem:[%s3 + $0x7f8] sm:$0xff] %v6572
    %6878 = vst [vmem:[%s3 + $0x800] sm:$0xff] %v4322
    %6879 = vst [vmem:[%s3 + $0x808] sm:$0xff] %v4324
    %6880 = vst [vmem:[%s3 + $0x810] sm:$0xff] %v4644
    %6881 = vst [vmem:[%s3 + $0x818] sm:$0xff] %v4646
    %6882 = vst [vmem:[%s3 + $0x820] sm:$0xff] %v4966
    %6883 = vst [vmem:[%s3 + $0x828] sm:$0xff] %v4968
    %6884 = vst [vmem:[%s3 + $0x830] sm:$0xff] %v5288
    %6885 = vst [vmem:[%s3 + $0x838] sm:$0xff] %v5290
    %6886 = vst [vmem:[%s3 + $0x840] sm:$0xff] %v5610
    %6887 = vst [vmem:[%s3 + $0x848] sm:$0xff] %v5612
    %6888 = vst [vmem:[%s3 + $0x850] sm:$0xff] %v5932
    %6889 = vst [vmem:[%s3 + $0x858] sm:$0xff] %v5934
    %6890 = vst [vmem:[%s3 + $0x860] sm:$0xff] %v6254
    %6891 = vst [vmem:[%s3 + $0x868] sm:$0xff] %v6256
    %6892 = vst [vmem:[%s3 + $0x870] sm:$0xff] %v6576
    %6893 = vst [vmem:[%s3 + $0x878] sm:$0xff] %v6578
    %6894 = vst [vmem:[%s3 + $0x880] sm:$0xff] %v4326
    %6895 = vst [vmem:[%s3 + $0x888] sm:$0xff] %v4328
    %6896 = vst [vmem:[%s3 + $0x890] sm:$0xff] %v4648
    %6897 = vst [vmem:[%s3 + $0x898] sm:$0xff] %v4650
    %6898 = vst [vmem:[%s3 + $0x8a0] sm:$0xff] %v4970
    %6899 = vst [vmem:[%s3 + $0x8a8] sm:$0xff] %v4972
    %6900 = vst [vmem:[%s3 + $0x8b0] sm:$0xff] %v5292
    %6901 = vst [vmem:[%s3 + $0x8b8] sm:$0xff] %v5294
    %6902 = vst [vmem:[%s3 + $0x8c0] sm:$0xff] %v5614
    %6903 = vst [vmem:[%s3 + $0x8c8] sm:$0xff] %v5616
    %6904 = vst [vmem:[%s3 + $0x8d0] sm:$0xff] %v5936
    %6905 = vst [vmem:[%s3 + $0x8d8] sm:$0xff] %v5938
    %6906 = vst [vmem:[%s3 + $0x8e0] sm:$0xff] %v6258
    %6907 = vst [vmem:[%s3 + $0x8e8] sm:$0xff] %v6260
    %6908 = vst [vmem:[%s3 + $0x8f0] sm:$0xff] %v6580
    %6909 = vst [vmem:[%s3 + $0x8f8] sm:$0xff] %v6582
    %6910 = vst [vmem:[%s3 + $0x900] sm:$0xff] %v4332
    %6911 = vst [vmem:[%s3 + $0x908] sm:$0xff] %v4334
    %6912 = vst [vmem:[%s3 + $0x910] sm:$0xff] %v4654
    %6913 = vst [vmem:[%s3 + $0x918] sm:$0xff] %v4656
    %6914 = vst [vmem:[%s3 + $0x920] sm:$0xff] %v4976
    %6915 = vst [vmem:[%s3 + $0x928] sm:$0xff] %v4978
    %6916 = vst [vmem:[%s3 + $0x930] sm:$0xff] %v5298
    %6917 = vst [vmem:[%s3 + $0x938] sm:$0xff] %v5300
    %6918 = vst [vmem:[%s3 + $0x940] sm:$0xff] %v5620
    %6919 = vst [vmem:[%s3 + $0x948] sm:$0xff] %v5622
    %6920 = vst [vmem:[%s3 + $0x950] sm:$0xff] %v5942
    %6921 = vst [vmem:[%s3 + $0x958] sm:$0xff] %v5944
    %6922 = vst [vmem:[%s3 + $0x960] sm:$0xff] %v6264
    %6923 = vst [vmem:[%s3 + $0x968] sm:$0xff] %v6266
    %6924 = vst [vmem:[%s3 + $0x970] sm:$0xff] %v6586
    %6925 = vst [vmem:[%s3 + $0x978] sm:$0xff] %v6588
    %6926 = vst [vmem:[%s3 + $0x980] sm:$0xff] %v4336
    %6927 = vst [vmem:[%s3 + $0x988] sm:$0xff] %v4338
    %6928 = vst [vmem:[%s3 + $0x990] sm:$0xff] %v4658
    %6929 = vst [vmem:[%s3 + $0x998] sm:$0xff] %v4660
    %6930 = vst [vmem:[%s3 + $0x9a0] sm:$0xff] %v4980
    %6931 = vst [vmem:[%s3 + $0x9a8] sm:$0xff] %v4982
    %6932 = vst [vmem:[%s3 + $0x9b0] sm:$0xff] %v5302
    %6933 = vst [vmem:[%s3 + $0x9b8] sm:$0xff] %v5304
    %6934 = vst [vmem:[%s3 + $0x9c0] sm:$0xff] %v5624
    %6935 = vst [vmem:[%s3 + $0x9c8] sm:$0xff] %v5626
    %6936 = vst [vmem:[%s3 + $0x9d0] sm:$0xff] %v5946
    %6937 = vst [vmem:[%s3 + $0x9d8] sm:$0xff] %v5948
    %6938 = vst [vmem:[%s3 + $0x9e0] sm:$0xff] %v6268
    %6939 = vst [vmem:[%s3 + $0x9e8] sm:$0xff] %v6270
    %6940 = vst [vmem:[%s3 + $0x9f0] sm:$0xff] %v6590
    %6941 = vst [vmem:[%s3 + $0x9f8] sm:$0xff] %v6592
    %6942 = vst [vmem:[%s3 + $0xa00] sm:$0xff] %v4342
    %6943 = vst [vmem:[%s3 + $0xa08] sm:$0xff] %v4344
    %6944 = vst [vmem:[%s3 + $0xa10] sm:$0xff] %v4664
    %6945 = vst [vmem:[%s3 + $0xa18] sm:$0xff] %v4666
    %6946 = vst [vmem:[%s3 + $0xa20] sm:$0xff] %v4986
    %6947 = vst [vmem:[%s3 + $0xa28] sm:$0xff] %v4988
    %6948 = vst [vmem:[%s3 + $0xa30] sm:$0xff] %v5308
    %6949 = vst [vmem:[%s3 + $0xa38] sm:$0xff] %v5310
    %6950 = vst [vmem:[%s3 + $0xa40] sm:$0xff] %v5630
    %6951 = vst [vmem:[%s3 + $0xa48] sm:$0xff] %v5632
    %6952 = vst [vmem:[%s3 + $0xa50] sm:$0xff] %v5952
    %6953 = vst [vmem:[%s3 + $0xa58] sm:$0xff] %v5954
    %6954 = vst [vmem:[%s3 + $0xa60] sm:$0xff] %v6274
    %6955 = vst [vmem:[%s3 + $0xa68] sm:$0xff] %v6276
    %6956 = vst [vmem:[%s3 + $0xa70] sm:$0xff] %v6596
    %6957 = vst [vmem:[%s3 + $0xa78] sm:$0xff] %v6598
    %6958 = vst [vmem:[%s3 + $0xa80] sm:$0xff] %v4346
    %6959 = vst [vmem:[%s3 + $0xa88] sm:$0xff] %v4348
    %6960 = vst [vmem:[%s3 + $0xa90] sm:$0xff] %v4668
    %6961 = vst [vmem:[%s3 + $0xa98] sm:$0xff] %v4670
    %6962 = vst [vmem:[%s3 + $0xaa0] sm:$0xff] %v4990
    %6963 = vst [vmem:[%s3 + $0xaa8] sm:$0xff] %v4992
    %6964 = vst [vmem:[%s3 + $0xab0] sm:$0xff] %v5312
    %6965 = vst [vmem:[%s3 + $0xab8] sm:$0xff] %v5314
    %6966 = vst [vmem:[%s3 + $0xac0] sm:$0xff] %v5634
    %6967 = vst [vmem:[%s3 + $0xac8] sm:$0xff] %v5636
    %6968 = vst [vmem:[%s3 + $0xad0] sm:$0xff] %v5956
    %6969 = vst [vmem:[%s3 + $0xad8] sm:$0xff] %v5958
    %6970 = vst [vmem:[%s3 + $0xae0] sm:$0xff] %v6278
    %6971 = vst [vmem:[%s3 + $0xae8] sm:$0xff] %v6280
    %6972 = vst [vmem:[%s3 + $0xaf0] sm:$0xff] %v6600
    %6973 = vst [vmem:[%s3 + $0xaf8] sm:$0xff] %v6602
    %6974 = vst [vmem:[%s3 + $0xb00] sm:$0xff] %v4352
    %6975 = vst [vmem:[%s3 + $0xb08] sm:$0xff] %v4354
    %6976 = vst [vmem:[%s3 + $0xb10] sm:$0xff] %v4674
    %6977 = vst [vmem:[%s3 + $0xb18] sm:$0xff] %v4676
    %6978 = vst [vmem:[%s3 + $0xb20] sm:$0xff] %v4996
    %6979 = vst [vmem:[%s3 + $0xb28] sm:$0xff] %v4998
    %6980 = vst [vmem:[%s3 + $0xb30] sm:$0xff] %v5318
    %6981 = vst [vmem:[%s3 + $0xb38] sm:$0xff] %v5320
    %6982 = vst [vmem:[%s3 + $0xb40] sm:$0xff] %v5640
    %6983 = vst [vmem:[%s3 + $0xb48] sm:$0xff] %v5642
    %6984 = vst [vmem:[%s3 + $0xb50] sm:$0xff] %v5962
    %6985 = vst [vmem:[%s3 + $0xb58] sm:$0xff] %v5964
    %6986 = vst [vmem:[%s3 + $0xb60] sm:$0xff] %v6284
    %6987 = vst [vmem:[%s3 + $0xb68] sm:$0xff] %v6286
    %6988 = vst [vmem:[%s3 + $0xb70] sm:$0xff] %v6606
    %6989 = vst [vmem:[%s3 + $0xb78] sm:$0xff] %v6608
    %6990 = vst [vmem:[%s3 + $0xb80] sm:$0xff] %v4356
    %6991 = vst [vmem:[%s3 + $0xb88] sm:$0xff] %v4358
    %6992 = vst [vmem:[%s3 + $0xb90] sm:$0xff] %v4678
    %6993 = vst [vmem:[%s3 + $0xb98] sm:$0xff] %v4680
    %6994 = vst [vmem:[%s3 + $0xba0] sm:$0xff] %v5000
    %6995 = vst [vmem:[%s3 + $0xba8] sm:$0xff] %v5002
    %6996 = vst [vmem:[%s3 + $0xbb0] sm:$0xff] %v5322
    %6997 = vst [vmem:[%s3 + $0xbb8] sm:$0xff] %v5324
    %6998 = vst [vmem:[%s3 + $0xbc0] sm:$0xff] %v5644
    %6999 = vst [vmem:[%s3 + $0xbc8] sm:$0xff] %v5646
    %7000 = vst [vmem:[%s3 + $0xbd0] sm:$0xff] %v5966
    %7001 = vst [vmem:[%s3 + $0xbd8] sm:$0xff] %v5968
    %7002 = vst [vmem:[%s3 + $0xbe0] sm:$0xff] %v6288
    %7003 = vst [vmem:[%s3 + $0xbe8] sm:$0xff] %v6290
    %7004 = vst [vmem:[%s3 + $0xbf0] sm:$0xff] %v6610
    %7005 = vst [vmem:[%s3 + $0xbf8] sm:$0xff] %v6612
    %7006 = vst [vmem:[%s3 + $0xc00] sm:$0xf] %v4362
    %7007 = vst [vmem:[%s3 + $0xc08] sm:$0xf] %v4364
    %7008 = vst [vmem:[%s3 + $0xc10] sm:$0xf] %v4684
    %7009 = vst [vmem:[%s3 + $0xc18] sm:$0xf] %v4686
    %7010 = vst [vmem:[%s3 + $0xc20] sm:$0xf] %v5006
    %7011 = vst [vmem:[%s3 + $0xc28] sm:$0xf] %v5008
    %7012 = vst [vmem:[%s3 + $0xc30] sm:$0xf] %v5328
    %7013 = vst [vmem:[%s3 + $0xc38] sm:$0xf] %v5330
    %7014 = vst [vmem:[%s3 + $0xc40] sm:$0xf] %v5650
    %7015 = vst [vmem:[%s3 + $0xc48] sm:$0xf] %v5652
    %7016 = vst [vmem:[%s3 + $0xc50] sm:$0xf] %v5972
    %7017 = vst [vmem:[%s3 + $0xc58] sm:$0xf] %v5974
    %7018 = vst [vmem:[%s3 + $0xc60] sm:$0xf] %v6294
    %7019 = vst [vmem:[%s3 + $0xc68] sm:$0xf] %v6296
    %7020 = vst [vmem:[%s3 + $0xc70] sm:$0xf] %v6616
    %7021 = vst [vmem:[%s3 + $0xc78] sm:$0xf] %v6618
    // Predicated region
    $region18: #{layernorm_linear.1} parent=1 // pred_check
      _
    $region19: #{layernorm_linear.1} parent=1 // pred_check_branch
      %7023 = sbr.rel (0) target = $region21
    $region20: #{layernorm_linear.1} parent=1 // pred_region
      _
    $region21: #{layernorm_linear.1} parent=1 // pred_fallthru
      _
    // Predicated region
    $region22: #{layernorm_linear.1} parent=1 // pred_check
      _
    $region23: #{layernorm_linear.1} parent=1 // pred_check_branch
      %7025 = sbr.rel (0) target = $region25
    $region24: #{layernorm_linear.1} parent=1 // pred_region
      _
    $region25: #{layernorm_linear.1} parent=1 // pred_fallthru
      _
    %7026 = vsyncpa [#allocation3], 1

</llo_original>
